<compile_context>
chip_gen: v6e
topology: v6e:2x2x1
jax: 0.10.0
libtpu: 0.0.40
codegen_flags: <defaults>
</compile_context>

<pallas_src>
import jax
import jax.numpy as jnp
from jax.experimental import pallas as pl
from jax.experimental.pallas import tpu as pltpu


def _round_up(x, m):
    return ((x + m - 1) // m) * m


def _vmem_budget_bytes():
    """Per-generation VMEM budget: physical capacity minus headroom."""
    cap = None
    try:
        cap = getattr(pltpu.get_tpu_info(), "vmem_capacity_bytes", None)
    except Exception:
        cap = None
    if not cap:
        cap = 64 * 1024 * 1024          # conservative fallback: v7x per-TC VMEM
    return max(32 * 1024 * 1024, int(cap) - 8 * 1024 * 1024)


def _pick_time_chunk(T, Bt, Hp, requested, vmem_budget, *, in_itemsize, out_itemsize):
    """Largest time chunk <= requested whose pipeline buffers fit the VMEM budget."""
    Tc = max(1, min(requested, T))

    def need(tc):
        xp = 2 * tc * Bt * 3 * Hp * in_itemsize       # double-buffered input stream
        out = 2 * tc * Bt * Hp * out_itemsize         # double-buffered output stream
        whh = Hp * 3 * Hp * in_itemsize               # single-buffered constant
        h = Bt * Hp * 4                               # scratch hidden state
        return xp + out + whh + h + (2 << 20)         # + compiler scratch headroom

    while Tc > 1 and need(Tc) > vmem_budget:
        Tc = max(1, Tc // 2)
    return Tc


# ----------------------------------------------------------------------------
# Recurrent Pallas kernel: one grid step == one (batch tile, time chunk) block.
#   xp_ref : (Tc, Bt, 3*Hp)  pre-projected inputs (x W_i^T + folded biases), bf16
#   whh_ref: (Hp, 3*Hp)      fused hidden weights [W_hr^T | W_hz^T | W_hn^T], bf16
#   bhn_ref: (1, Hp)         hidden bias of the n gate, f32
#   out_ref: (Tc, Bt, Hp)    hidden states for this block
#   h_ref  : (Bt, Hp) f32    VMEM scratch, carried hidden state across time chunks
# ----------------------------------------------------------------------------
def _gru_chunk_kernel(xp_ref, whh_ref, bhn_ref, out_ref, h_ref):
    @pl.when(pl.program_id(1) == 0)          # first time chunk of this batch tile
    def _():
        h_ref[...] = jnp.zeros_like(h_ref)

    Tc = xp_ref.shape[0]
    Bt, Hp = h_ref.shape

    # Hoisted out of the serial loop (JAX does not CSE broadcast_in_dim).
    bhn_b = jnp.broadcast_to(bhn_ref[...], (Bt, Hp))

    def step(t, h):
        xp = xp_ref[t]                                           # (Bt, 3*Hp)
        # One fused matmul per step; whh is streamed from VMEM each iteration
        # (no loop-long hoisted live range), bf16 x bf16 -> f32 accumulate.
        hh = jnp.dot(h.astype(whh_ref.dtype), whh_ref[...],
                     preferred_element_type=jnp.float32)          # (Bt, 3*Hp)
        r = jax.nn.sigmoid(xp[:, :Hp] + hh[:, :Hp])
        z = jax.nn.sigmoid(xp[:, Hp:2 * Hp] + hh[:, Hp:2 * Hp])
        n = jnp.tanh(xp[:, 2 * Hp:] + r * (hh[:, 2 * Hp:] + bhn_b))
        h_new = n + z * (h - n)               # == (1-z)*n + z*h, one fewer VPU mul
        out_ref[t] = h_new.astype(out_ref.dtype)
        return h_new

    # Bounded unroll: LLO scheduler visibility without blowing up vregs at large Tc.
    h_ref[...] = jax.lax.fori_loop(0, Tc, step, h_ref[...], unroll=min(8, Tc))


def gru_recurrence(x_proj, whh, bhn, *, time_chunk, batch_tile,
                   out_dtype=jnp.float32, single_buffer_weights=True,
                   vmem_limit_bytes=None):
    """x_proj: (Tp, Bp, 3*Hp), whh: (Hp, 3*Hp), bhn: (1, Hp) -> (Tp, Bp, Hp)."""
    Tp, Bp, threeHp = x_proj.shape
    Hp = whh.shape[0]
    assert threeHp == 3 * Hp
    assert Tp % time_chunk == 0 and Bp % batch_tile == 0
    nchunks = Tp // time_chunk
    nbt = Bp // batch_tile

    # Constant blocks: single-buffer them (their index_map never changes, so a
    # second pipeline buffer is pure VMEM waste — binding on v7x's 64 MiB).
    const_mode = {"pipeline_mode": pl.Buffered(1)} if single_buffer_weights else {}

    grid_spec = pltpu.PrefetchScalarGridSpec(
        num_scalar_prefetch=0,
        grid=(nbt, nchunks),                  # (parallel batch tiles, serial time)
        in_specs=[
            pl.BlockSpec((time_chunk, batch_tile, 3 * Hp), lambda b, c: (c, b, 0)),
            pl.BlockSpec((Hp, 3 * Hp), lambda b, c: (0, 0), **const_mode),
            pl.BlockSpec((1, Hp), lambda b, c: (0, 0), **const_mode),
        ],
        out_specs=pl.BlockSpec((time_chunk, batch_tile, Hp), lambda b, c: (c, b, 0)),
        scratch_shapes=[pltpu.VMEM((batch_tile, Hp), jnp.float32)],
    )

    return pl.pallas_call(
        _gru_chunk_kernel,
        out_shape=jax.ShapeDtypeStruct((Tp, Bp, Hp), out_dtype),
        grid_spec=grid_spec,
        compiler_params=pltpu.CompilerParams(
            # batch tiles are independent -> megacore-shardable on v7x;
            # time chunks carry the hidden state -> strictly serial.
            dimension_semantics=("parallel", "arbitrary"),
            vmem_limit_bytes=vmem_limit_bytes,
        ),
    )(x_proj, whh, bhn)


# ----------------------------------------------------------------------------
# Encoder wrapper: embedding lookup + batched input-projection GEMM (plain XLA,
# MXU-shaped and fully parallel) + Pallas recurrent kernel.
# ----------------------------------------------------------------------------
def encoder_forward(input_tensor, emb_table, params, *, time_chunk=32,
                    compute_dtype=jnp.bfloat16, out_dtype=jnp.float32):
    # TODO(synk): optionally fuse the input-projection GEMM into the recurrent
    # kernel per chunk (stream (Tc,Bp,E) embeddings + wih instead of the larger
    # (Tc,Bp,3*Hp) x_proj slab) to cut the recurrence's HBM input stream further.
    T, B = input_tensor.shape
    E = emb_table.shape[1]
    H = params["whr"].shape[1]

    Hp = _round_up(max(H, 128), 128)          # lane-dense hidden dim
    Bp_min = _round_up(max(B, 8), 8)          # sublane-aligned batch
    if Bp_min <= 256:
        Bt, Bp = Bp_min, Bp_min               # single batch tile
    else:
        Bt = 256                              # batch-parallel tiles (v7x megacore)
        Bp = _round_up(B, Bt)

    vmem_budget = _vmem_budget_bytes()
    Tc = _pick_time_chunk(T, Bt, Hp, time_chunk, vmem_budget,
                          in_itemsize=jnp.dtype(compute_dtype).itemsize,
                          out_itemsize=jnp.dtype(out_dtype).itemsize)
    Tp = _round_up(T, Tc)

    pad_cols = lambda w: jnp.pad(w, ((0, 0), (0, Hp - H)))
    pad_hh = lambda w: jnp.pad(w, ((0, Hp - H), (0, Hp - H)))

    # 1) Embedding gather, padded up-front (cheap: pads (T,B,E), not (T,B,3*Hp)).
    embedded = jnp.take(emb_table, input_tensor, axis=0)              # (T, B, E)
    embedded = jnp.pad(embedded, ((0, Tp - T), (0, Bp - B), (0, 0)))  # (Tp, Bp, E)

    # 2) One big input-projection GEMM with biases folded in, padded per gate.
    #    The result is emitted directly in compute_dtype (bf16) — this is the
    #    largest HBM tensor the recurrence streams.
    wih = jnp.concatenate([pad_cols(params["wir"]),
                           pad_cols(params["wiz"]),
                           pad_cols(params["win"])], axis=1)          # (E, 3*Hp)
    bih = jnp.concatenate([pad_cols(params["br"]),
                           pad_cols(params["bz"]),
                           pad_cols(params["bin"])], axis=1)          # (1, 3*Hp)
    x_proj = embedded.reshape(Tp * Bp, E).astype(jnp.float32) @ wih + bih
    x_proj = x_proj.reshape(Tp, Bp, 3 * Hp).astype(compute_dtype)

    # 3) Fused + padded hidden-state weights for the recurrent kernel (bf16 MXU).
    whh = jnp.concatenate([pad_hh(params["whr"]),
                           pad_hh(params["whz"]),
                           pad_hh(params["whn"])], axis=1).astype(compute_dtype)
    bhn = pad_cols(params["bhn"])                                     # (1, Hp) f32

    kwargs = dict(time_chunk=Tc, batch_tile=Bt, out_dtype=out_dtype,
                  vmem_limit_bytes=vmem_budget)
    try:
        hs = gru_recurrence(x_proj, whh, bhn, single_buffer_weights=True, **kwargs)
    except Exception:
        # Fallback if pipeline_mode=pl.Buffered(1) is unsupported in this build.
        hs = gru_recurrence(x_proj, whh, bhn, single_buffer_weights=False, **kwargs)
    return hs[:T, :B, :H]                                             # (T, B, H)


# ----------------------------------------------------------------------------
# Deterministic parameter construction (mirrors nn.Embedding + nn.GRU shapes).
# ----------------------------------------------------------------------------
def make_params(key, vocab_size, embedding_dim, hidden_dim, padding_idx):
    ks = jax.random.split(key, 5)
    bound = 1.0 / jnp.sqrt(hidden_dim)
    u = lambda k, shape: jax.random.uniform(k, shape, jnp.float32, -bound, bound)

    # Embedding: N(0,1) like PyTorch default, padding row forced to zero.
    emb = jax.random.normal(ks[0], (vocab_size, embedding_dim), jnp.float32)
    emb = emb.at[padding_idx].set(0.0)

    # GRU weights. PyTorch stores weight_ih_l0: (3H, E) with gate order r,z,n.
    w_ih = u(ks[1], (3 * hidden_dim, embedding_dim))
    w_hh = u(ks[2], (3 * hidden_dim, hidden_dim))
    b_ih = u(ks[3], (3 * hidden_dim,))
    b_hh = u(ks[4], (3 * hidden_dim,))

    H = hidden_dim
    sl = lambda w, g: w[g * H:(g + 1) * H]
    params = {
        # transpose so the kernel computes x @ W^T as x @ (W.T)
        "wir": sl(w_ih, 0).T, "wiz": sl(w_ih, 1).T, "win": sl(w_ih, 2).T,
        "whr": sl(w_hh, 0).T, "whz": sl(w_hh, 1).T, "whn": sl(w_hh, 2).T,
        "br": (sl(b_ih, 0) + sl(b_hh, 0)).reshape(1, H),
        "bz": (sl(b_ih, 1) + sl(b_hh, 1)).reshape(1, H),
        "bin": sl(b_ih, 2).reshape(1, H),
        "bhn": sl(b_hh, 2).reshape(1, H),
    }
    return emb, params


# ----------------------------------------------------------------------------
# Pure-JAX reference (for correctness check).
# ----------------------------------------------------------------------------
def encoder_reference(input_tensor, emb_table, params):
    embedded = jnp.take(emb_table, input_tensor, axis=0)
    T, B, _ = embedded.shape
    H = params["whr"].shape[1]

    def step(h, x):
        r = jax.nn.sigmoid(x @ params["wir"] + h @ params["whr"] + params["br"])
        z = jax.nn.sigmoid(x @ params["wiz"] + h @ params["whz"] + params["bz"])
        n = jnp.tanh(x @ params["win"] + params["bin"]
                     + r * (h @ params["whn"] + params["bhn"]))
        h_new = (1.0 - z) * n + z * h
        return h_new, h_new

    h0 = jnp.zeros((B, H), jnp.float32)
    _, hs = jax.lax.scan(step, h0, embedded)
    return hs


if __name__ == "__main__":
    # Small, module-consistent shapes. T=20 with time_chunk=8 exercises time
    # chunking + T/B padding; B=3 exercises sublane padding.
    vocab_size, embedding_dim, hidden_dim, padding_idx = 20, 16, 32, 0
    T, B = 20, 3

    key = jax.random.PRNGKey(0)
    k_param, k_ids = jax.random.split(key)

    emb_table, params = make_params(
        k_param, vocab_size, embedding_dim, hidden_dim, padding_idx)

    # Token ids (T, B), with some padding tokens at the end of sequence 1.
    input_tensor = jax.random.randint(k_ids, (T, B), 1, vocab_size, jnp.int32)
    input_tensor = input_tensor.at[T - 3:, 1].set(padding_idx)

    hs_ref = encoder_reference(input_tensor, emb_table, params)

    # f32 compute path: bitwise-faithful check against the reference.
    hs_f32 = encoder_forward(input_tensor, emb_table, params,
                             time_chunk=8, compute_dtype=jnp.float32)
    hs_f32 = jax.block_until_ready(hs_f32)
    assert hs_f32.shape == (T, B, hidden_dim)
    assert jnp.allclose(hs_f32, hs_ref, atol=2e-5, rtol=2e-5), "f32 mismatch"

    # Default bf16 compute path (production config): looser tolerance.
    hs_bf16 = encoder_forward(input_tensor, emb_table, params, time_chunk=8)
    hs_bf16 = jax.block_until_ready(hs_bf16)
    assert hs_bf16.shape == (T, B, hidden_dim)
    assert jnp.allclose(hs_bf16, hs_ref, atol=5e-2, rtol=5e-2), "bf16 mismatch"

    print("KERNEL_OK")
</pallas_src>

<mosaic_0001>
module attributes {stable_mosaic.version = 11 : i64} {
  func.func @_gru_chunk_kernel(%arg0: i32, %arg1: i32, %arg2: memref<8x8x384xf32, #tpu.memory_space<vmem>>, %arg3: memref<128x384xf32, #tpu.memory_space<vmem>>, %arg4: memref<1x128xf32, #tpu.memory_space<vmem>>, %arg5: memref<8x8x128xf32, #tpu.memory_space<vmem>>, %arg6: memref<8x128xf32, #tpu.memory_space<vmem>>) attributes {dimension_semantics = [#tpu.dimension_semantics<parallel>, #tpu.dimension_semantics<arbitrary>], iteration_bounds = array<i64: 1, 3>, scalar_prefetch = 0 : i64, scratch_operands = 1 : i64, tpu.core_type = #tpu.core_type<tc>, window_params = [{transform_indices = @transform_0, window_bounds = array<i64: 8, 8, 384>}, {pipeline_mode = #tpu.pipeline_mode<synchronous>, transform_indices = @transform_1, window_bounds = array<i64: 128, 384>}, {pipeline_mode = #tpu.pipeline_mode<synchronous>, transform_indices = @transform_2, window_bounds = array<i64: 1, 128>}, {transform_indices = @transform_3, window_bounds = array<i64: 8, 8, 128>}]} {
    %c0_i32 = arith.constant 0 : i32
    %0 = arith.cmpi eq, %arg1, %c0_i32 : i32
    %1 = arith.extui %0 : i1 to i32
    %c0_i32_0 = arith.constant 0 : i32
    %2 = arith.cmpi ne, %1, %c0_i32_0 : i32
    scf.if %2 {
      %cst_78 = arith.constant 0.000000e+00 : f32
      %280 = vector.broadcast %cst_78 : f32 to vector<8x128xf32>
      %c0_79 = arith.constant 0 : index
      %c0_80 = arith.constant 0 : index
      %281 = vector.load %arg6[%c0_79, %c0_80] : memref<8x128xf32, #tpu.memory_space<vmem>>, vector<8x128xf32>
      tpu.vector_store %arg6[%c0_79, %c0_80], %280 {strides = array<i32>} : memref<8x128xf32, #tpu.memory_space<vmem>>, vector<8x128xf32>,
    } else {
    }
    %c0 = arith.constant 0 : index
    %c0_1 = arith.constant 0 : index
    %3 = vector.load %arg4[%c0, %c0_1] : memref<1x128xf32, #tpu.memory_space<vmem>>, vector<1x128xf32>
    %4 = vector.shape_cast %3 : vector<1x128xf32> to vector<1x128xf32>
    %5 = vector.broadcast %4 : vector<1x128xf32> to vector<8x128xf32>
    %c0_2 = arith.constant 0 : index
    %c0_3 = arith.constant 0 : index
    %6 = vector.load %arg6[%c0_2, %c0_3] : memref<8x128xf32, #tpu.memory_space<vmem>>, vector<8x128xf32>
    %c0_i32_4 = arith.constant 0 : i32
    %7 = arith.index_cast %c0_i32_4 : i32 to index
    %c0_5 = arith.constant 0 : index
    %c0_6 = arith.constant 0 : index
    %8 = vector.load %arg2[%7, %c0_5, %c0_6] : memref<8x8x384xf32, #tpu.memory_space<vmem>>, vector<1x8x384xf32>
    %9 = vector.shape_cast %8 : vector<1x8x384xf32> to vector<8x384xf32>
    %c0_7 = arith.constant 0 : index
    %c0_8 = arith.constant 0 : index
    %10 = vector.load %arg3[%c0_7, %c0_8] : memref<128x384xf32, #tpu.memory_space<vmem>>, vector<128x384xf32>
    %cst = arith.constant dense<0.000000e+00> : vector<8x384xf32>
    %11 = tpu.matmul %6, %10, %cst {dimension_numbers = #tpu.dot_dimension_numbers<[1], [0], [0], [1], [0, 0, 1, 1], [], []>} : vector<8x128xf32>, vector<128x384xf32>, vector<8x384xf32> -> vector<8x384xf32>
    %12 = vector.extract_strided_slice %9 {offsets = [0, 0], sizes = [8, 128], strides = [1, 1]} : vector<8x384xf32> to vector<8x128xf32>
    %13 = vector.extract_strided_slice %11 {offsets = [0, 0], sizes = [8, 128], strides = [1, 1]} : vector<8x384xf32> to vector<8x128xf32>
    %14 = arith.addf %12, %13 : vector<8x128xf32>
    %15 = arith.negf %14 : vector<8x128xf32>
    %16 = math.exp %15 : vector<8x128xf32>
    %cst_9 = arith.constant 1.000000e+00 : f32
    %17 = vector.broadcast %cst_9 : f32 to vector<8x128xf32>
    %18 = arith.addf %17, %16 : vector<8x128xf32>
    %19 = arith.divf %17, %18 : vector<8x128xf32>
    %20 = vector.extract_strided_slice %9 {offsets = [0, 128], sizes = [8, 128], strides = [1, 1]} : vector<8x384xf32> to vector<8x128xf32>
    %21 = vector.extract_strided_slice %11 {offsets = [0, 128], sizes = [8, 128], strides = [1, 1]} : vector<8x384xf32> to vector<8x128xf32>
    %22 = arith.addf %20, %21 : vector<8x128xf32>
    %23 = arith.negf %22 : vector<8x128xf32>
    %24 = math.exp %23 : vector<8x128xf32>
    %cst_10 = arith.constant 1.000000e+00 : f32
    %25 = vector.broadcast %cst_10 : f32 to vector<8x128xf32>
    %26 = arith.addf %25, %24 : vector<8x128xf32>
    %27 = arith.divf %25, %26 : vector<8x128xf32>
    %28 = vector.extract_strided_slice %9 {offsets = [0, 256], sizes = [8, 128], strides = [1, 1]} : vector<8x384xf32> to vector<8x128xf32>
    %29 = vector.extract_strided_slice %11 {offsets = [0, 256], sizes = [8, 128], strides = [1, 1]} : vector<8x384xf32> to vector<8x128xf32>
    %30 = arith.addf %29, %5 : vector<8x128xf32>
    %31 = arith.mulf %19, %30 : vector<8x128xf32>
    %32 = arith.addf %28, %31 : vector<8x128xf32>
    %33 = math.tanh %32 : vector<8x128xf32>
    %34 = arith.subf %6, %33 : vector<8x128xf32>
    %35 = arith.mulf %27, %34 : vector<8x128xf32>
    %36 = arith.addf %33, %35 : vector<8x128xf32>
    %37 = arith.index_cast %c0_i32_4 : i32 to index
    %c0_11 = arith.constant 0 : index
    %c0_12 = arith.constant 0 : index
    %38 = vector.load %arg5[%37, %c0_11, %c0_12] : memref<8x8x128xf32, #tpu.memory_space<vmem>>, vector<1x8x128xf32>
    %39 = vector.shape_cast %38 : vector<1x8x128xf32> to vector<8x128xf32>
    %40 = vector.shape_cast %36 : vector<8x128xf32> to vector<1x8x128xf32>
    tpu.vector_store %arg5[%37, %c0_11, %c0_12], %40 {strides = array<i32>} : memref<8x8x128xf32, #tpu.memory_space<vmem>>, vector<1x8x128xf32>,
    %c1_i32 = arith.constant 1 : i32
    %41 = arith.index_cast %c1_i32 : i32 to index
    %c0_13 = arith.constant 0 : index
    %c0_14 = arith.constant 0 : index
    %42 = vector.load %arg2[%41, %c0_13, %c0_14] : memref<8x8x384xf32, #tpu.memory_space<vmem>>, vector<1x8x384xf32>
    %43 = vector.shape_cast %42 : vector<1x8x384xf32> to vector<8x384xf32>
    %c0_15 = arith.constant 0 : index
    %c0_16 = arith.constant 0 : index
    %44 = vector.load %arg3[%c0_15, %c0_16] : memref<128x384xf32, #tpu.memory_space<vmem>>, vector<128x384xf32>
    %cst_17 = arith.constant dense<0.000000e+00> : vector<8x384xf32>
    %45 = tpu.matmul %36, %44, %cst_17 {dimension_numbers = #tpu.dot_dimension_numbers<[1], [0], [0], [1], [0, 0, 1, 1], [], []>} : vector<8x128xf32>, vector<128x384xf32>, vector<8x384xf32> -> vector<8x384xf32>
    %46 = vector.extract_strided_slice %43 {offsets = [0, 0], sizes = [8, 128], strides = [1, 1]} : vector<8x384xf32> to vector<8x128xf32>
    %47 = vector.extract_strided_slice %45 {offsets = [0, 0], sizes = [8, 128], strides = [1, 1]} : vector<8x384xf32> to vector<8x128xf32>
    %48 = arith.addf %46, %47 : vector<8x128xf32>
    %49 = arith.negf %48 : vector<8x128xf32>
    %50 = math.exp %49 : vector<8x128xf32>
    %cst_18 = arith.constant 1.000000e+00 : f32
    %51 = vector.broadcast %cst_18 : f32 to vector<8x128xf32>
    %52 = arith.addf %51, %50 : vector<8x128xf32>
    %53 = arith.divf %51, %52 : vector<8x128xf32>
    %54 = vector.extract_strided_slice %43 {offsets = [0, 128], sizes = [8, 128], strides = [1, 1]} : vector<8x384xf32> to vector<8x128xf32>
    %55 = vector.extract_strided_slice %45 {offsets = [0, 128], sizes = [8, 128], strides = [1, 1]} : vector<8x384xf32> to vector<8x128xf32>
    %56 = arith.addf %54, %55 : vector<8x128xf32>
    %57 = arith.negf %56 : vector<8x128xf32>
    %58 = math.exp %57 : vector<8x128xf32>
    %cst_19 = arith.constant 1.000000e+00 : f32
    %59 = vector.broadcast %cst_19 : f32 to vector<8x128xf32>
    %60 = arith.addf %59, %58 : vector<8x128xf32>
    %61 = arith.divf %59, %60 : vector<8x128xf32>
    %62 = vector.extract_strided_slice %43 {offsets = [0, 256], sizes = [8, 128], strides = [1, 1]} : vector<8x384xf32> to vector<8x128xf32>
    %63 = vector.extract_strided_slice %45 {offsets = [0, 256], sizes = [8, 128], strides = [1, 1]} : vector<8x384xf32> to vector<8x128xf32>
    %64 = arith.addf %63, %5 : vector<8x128xf32>
    %65 = arith.mulf %53, %64 : vector<8x128xf32>
    %66 = arith.addf %62, %65 : vector<8x128xf32>
    %67 = math.tanh %66 : vector<8x128xf32>
    %68 = arith.subf %36, %67 : vector<8x128xf32>
    %69 = arith.mulf %61, %68 : vector<8x128xf32>
    %70 = arith.addf %67, %69 : vector<8x128xf32>
    %71 = arith.index_cast %c1_i32 : i32 to index
    %c0_20 = arith.constant 0 : index
    %c0_21 = arith.constant 0 : index
    %72 = vector.load %arg5[%71, %c0_20, %c0_21] : memref<8x8x128xf32, #tpu.memory_space<vmem>>, vector<1x8x128xf32>
    %73 = vector.shape_cast %72 : vector<1x8x128xf32> to vector<8x128xf32>
    %74 = vector.shape_cast %70 : vector<8x128xf32> to vector<1x8x128xf32>
    tpu.vector_store %arg5[%71, %c0_20, %c0_21], %74 {strides = array<i32>} : memref<8x8x128xf32, #tpu.memory_space<vmem>>, vector<1x8x128xf32>,
    %c2_i32 = arith.constant 2 : i32
    %75 = arith.index_cast %c2_i32 : i32 to index
    %c0_22 = arith.constant 0 : index
    %c0_23 = arith.constant 0 : index
    %76 = vector.load %arg2[%75, %c0_22, %c0_23] : memref<8x8x384xf32, #tpu.memory_space<vmem>>, vector<1x8x384xf32>
    %77 = vector.shape_cast %76 : vector<1x8x384xf32> to vector<8x384xf32>
    %c0_24 = arith.constant 0 : index
    %c0_25 = arith.constant 0 : index
    %78 = vector.load %arg3[%c0_24, %c0_25] : memref<128x384xf32, #tpu.memory_space<vmem>>, vector<128x384xf32>
    %cst_26 = arith.constant dense<0.000000e+00> : vector<8x384xf32>
    %79 = tpu.matmul %70, %78, %cst_26 {dimension_numbers = #tpu.dot_dimension_numbers<[1], [0], [0], [1], [0, 0, 1, 1], [], []>} : vector<8x128xf32>, vector<128x384xf32>, vector<8x384xf32> -> vector<8x384xf32>
    %80 = vector.extract_strided_slice %77 {offsets = [0, 0], sizes = [8, 128], strides = [1, 1]} : vector<8x384xf32> to vector<8x128xf32>
    %81 = vector.extract_strided_slice %79 {offsets = [0, 0], sizes = [8, 128], strides = [1, 1]} : vector<8x384xf32> to vector<8x128xf32>
    %82 = arith.addf %80, %81 : vector<8x128xf32>
    %83 = arith.negf %82 : vector<8x128xf32>
    %84 = math.exp %83 : vector<8x128xf32>
    %cst_27 = arith.constant 1.000000e+00 : f32
    %85 = vector.broadcast %cst_27 : f32 to vector<8x128xf32>
    %86 = arith.addf %85, %84 : vector<8x128xf32>
    %87 = arith.divf %85, %86 : vector<8x128xf32>
    %88 = vector.extract_strided_slice %77 {offsets = [0, 128], sizes = [8, 128], strides = [1, 1]} : vector<8x384xf32> to vector<8x128xf32>
    %89 = vector.extract_strided_slice %79 {offsets = [0, 128], sizes = [8, 128], strides = [1, 1]} : vector<8x384xf32> to vector<8x128xf32>
    %90 = arith.addf %88, %89 : vector<8x128xf32>
    %91 = arith.negf %90 : vector<8x128xf32>
    %92 = math.exp %91 : vector<8x128xf32>
    %cst_28 = arith.constant 1.000000e+00 : f32
    %93 = vector.broadcast %cst_28 : f32 to vector<8x128xf32>
    %94 = arith.addf %93, %92 : vector<8x128xf32>
    %95 = arith.divf %93, %94 : vector<8x128xf32>
    %96 = vector.extract_strided_slice %77 {offsets = [0, 256], sizes = [8, 128], strides = [1, 1]} : vector<8x384xf32> to vector<8x128xf32>
    %97 = vector.extract_strided_slice %79 {offsets = [0, 256], sizes = [8, 128], strides = [1, 1]} : vector<8x384xf32> to vector<8x128xf32>
    %98 = arith.addf %97, %5 : vector<8x128xf32>
    %99 = arith.mulf %87, %98 : vector<8x128xf32>
    %100 = arith.addf %96, %99 : vector<8x128xf32>
    %101 = math.tanh %100 : vector<8x128xf32>
    %102 = arith.subf %70, %101 : vector<8x128xf32>
    %103 = arith.mulf %95, %102 : vector<8x128xf32>
    %104 = arith.addf %101, %103 : vector<8x128xf32>
    %105 = arith.index_cast %c2_i32 : i32 to index
    %c0_29 = arith.constant 0 : index
    %c0_30 = arith.constant 0 : index
    %106 = vector.load %arg5[%105, %c0_29, %c0_30] : memref<8x8x128xf32, #tpu.memory_space<vmem>>, vector<1x8x128xf32>
    %107 = vector.shape_cast %106 : vector<1x8x128xf32> to vector<8x128xf32>
    %108 = vector.shape_cast %104 : vector<8x128xf32> to vector<1x8x128xf32>
    tpu.vector_store %arg5[%105, %c0_29, %c0_30], %108 {strides = array<i32>} : memref<8x8x128xf32, #tpu.memory_space<vmem>>, vector<1x8x128xf32>,
    %c3_i32 = arith.constant 3 : i32
    %109 = arith.index_cast %c3_i32 : i32 to index
    %c0_31 = arith.constant 0 : index
    %c0_32 = arith.constant 0 : index
    %110 = vector.load %arg2[%109, %c0_31, %c0_32] : memref<8x8x384xf32, #tpu.memory_space<vmem>>, vector<1x8x384xf32>
    %111 = vector.shape_cast %110 : vector<1x8x384xf32> to vector<8x384xf32>
    %c0_33 = arith.constant 0 : index
    %c0_34 = arith.constant 0 : index
    %112 = vector.load %arg3[%c0_33, %c0_34] : memref<128x384xf32, #tpu.memory_space<vmem>>, vector<128x384xf32>
    %cst_35 = arith.constant dense<0.000000e+00> : vector<8x384xf32>
    %113 = tpu.matmul %104, %112, %cst_35 {dimension_numbers = #tpu.dot_dimension_numbers<[1], [0], [0], [1], [0, 0, 1, 1], [], []>} : vector<8x128xf32>, vector<128x384xf32>, vector<8x384xf32> -> vector<8x384xf32>
    %114 = vector.extract_strided_slice %111 {offsets = [0, 0], sizes = [8, 128], strides = [1, 1]} : vector<8x384xf32> to vector<8x128xf32>
    %115 = vector.extract_strided_slice %113 {offsets = [0, 0], sizes = [8, 128], strides = [1, 1]} : vector<8x384xf32> to vector<8x128xf32>
    %116 = arith.addf %114, %115 : vector<8x128xf32>
    %117 = arith.negf %116 : vector<8x128xf32>
    %118 = math.exp %117 : vector<8x128xf32>
    %cst_36 = arith.constant 1.000000e+00 : f32
    %119 = vector.broadcast %cst_36 : f32 to vector<8x128xf32>
    %120 = arith.addf %119, %118 : vector<8x128xf32>
    %121 = arith.divf %119, %120 : vector<8x128xf32>
    %122 = vector.extract_strided_slice %111 {offsets = [0, 128], sizes = [8, 128], strides = [1, 1]} : vector<8x384xf32> to vector<8x128xf32>
    %123 = vector.extract_strided_slice %113 {offsets = [0, 128], sizes = [8, 128], strides = [1, 1]} : vector<8x384xf32> to vector<8x128xf32>
    %124 = arith.addf %122, %123 : vector<8x128xf32>
    %125 = arith.negf %124 : vector<8x128xf32>
    %126 = math.exp %125 : vector<8x128xf32>
    %cst_37 = arith.constant 1.000000e+00 : f32
    %127 = vector.broadcast %cst_37 : f32 to vector<8x128xf32>
    %128 = arith.addf %127, %126 : vector<8x128xf32>
    %129 = arith.divf %127, %128 : vector<8x128xf32>
    %130 = vector.extract_strided_slice %111 {offsets = [0, 256], sizes = [8, 128], strides = [1, 1]} : vector<8x384xf32> to vector<8x128xf32>
    %131 = vector.extract_strided_slice %113 {offsets = [0, 256], sizes = [8, 128], strides = [1, 1]} : vector<8x384xf32> to vector<8x128xf32>
    %132 = arith.addf %131, %5 : vector<8x128xf32>
    %133 = arith.mulf %121, %132 : vector<8x128xf32>
    %134 = arith.addf %130, %133 : vector<8x128xf32>
    %135 = math.tanh %134 : vector<8x128xf32>
    %136 = arith.subf %104, %135 : vector<8x128xf32>
    %137 = arith.mulf %129, %136 : vector<8x128xf32>
    %138 = arith.addf %135, %137 : vector<8x128xf32>
    %139 = arith.index_cast %c3_i32 : i32 to index
    %c0_38 = arith.constant 0 : index
    %c0_39 = arith.constant 0 : index
    %140 = vector.load %arg5[%139, %c0_38, %c0_39] : memref<8x8x128xf32, #tpu.memory_space<vmem>>, vector<1x8x128xf32>
    %141 = vector.shape_cast %140 : vector<1x8x128xf32> to vector<8x128xf32>
    %142 = vector.shape_cast %138 : vector<8x128xf32> to vector<1x8x128xf32>
    tpu.vector_store %arg5[%139, %c0_38, %c0_39], %142 {strides = array<i32>} : memref<8x8x128xf32, #tpu.memory_space<vmem>>, vector<1x8x128xf32>,
    %c4_i32 = arith.constant 4 : i32
    %143 = arith.index_cast %c4_i32 : i32 to index
    %c0_40 = arith.constant 0 : index
    %c0_41 = arith.constant 0 : index
    %144 = vector.load %arg2[%143, %c0_40, %c0_41] : memref<8x8x384xf32, #tpu.memory_space<vmem>>, vector<1x8x384xf32>
    %145 = vector.shape_cast %144 : vector<1x8x384xf32> to vector<8x384xf32>
    %c0_42 = arith.constant 0 : index
    %c0_43 = arith.constant 0 : index
    %146 = vector.load %arg3[%c0_42, %c0_43] : memref<128x384xf32, #tpu.memory_space<vmem>>, vector<128x384xf32>
    %cst_44 = arith.constant dense<0.000000e+00> : vector<8x384xf32>
    %147 = tpu.matmul %138, %146, %cst_44 {dimension_numbers = #tpu.dot_dimension_numbers<[1], [0], [0], [1], [0, 0, 1, 1], [], []>} : vector<8x128xf32>, vector<128x384xf32>, vector<8x384xf32> -> vector<8x384xf32>
    %148 = vector.extract_strided_slice %145 {offsets = [0, 0], sizes = [8, 128], strides = [1, 1]} : vector<8x384xf32> to vector<8x128xf32>
    %149 = vector.extract_strided_slice %147 {offsets = [0, 0], sizes = [8, 128], strides = [1, 1]} : vector<8x384xf32> to vector<8x128xf32>
    %150 = arith.addf %148, %149 : vector<8x128xf32>
    %151 = arith.negf %150 : vector<8x128xf32>
    %152 = math.exp %151 : vector<8x128xf32>
    %cst_45 = arith.constant 1.000000e+00 : f32
    %153 = vector.broadcast %cst_45 : f32 to vector<8x128xf32>
    %154 = arith.addf %153, %152 : vector<8x128xf32>
    %155 = arith.divf %153, %154 : vector<8x128xf32>
    %156 = vector.extract_strided_slice %145 {offsets = [0, 128], sizes = [8, 128], strides = [1, 1]} : vector<8x384xf32> to vector<8x128xf32>
    %157 = vector.extract_strided_slice %147 {offsets = [0, 128], sizes = [8, 128], strides = [1, 1]} : vector<8x384xf32> to vector<8x128xf32>
    %158 = arith.addf %156, %157 : vector<8x128xf32>
    %159 = arith.negf %158 : vector<8x128xf32>
    %160 = math.exp %159 : vector<8x128xf32>
    %cst_46 = arith.constant 1.000000e+00 : f32
    %161 = vector.broadcast %cst_46 : f32 to vector<8x128xf32>
    %162 = arith.addf %161, %160 : vector<8x128xf32>
    %163 = arith.divf %161, %162 : vector<8x128xf32>
    %164 = vector.extract_strided_slice %145 {offsets = [0, 256], sizes = [8, 128], strides = [1, 1]} : vector<8x384xf32> to vector<8x128xf32>
    %165 = vector.extract_strided_slice %147 {offsets = [0, 256], sizes = [8, 128], strides = [1, 1]} : vector<8x384xf32> to vector<8x128xf32>
    %166 = arith.addf %165, %5 : vector<8x128xf32>
    %167 = arith.mulf %155, %166 : vector<8x128xf32>
    %168 = arith.addf %164, %167 : vector<8x128xf32>
    %169 = math.tanh %168 : vector<8x128xf32>
    %170 = arith.subf %138, %169 : vector<8x128xf32>
    %171 = arith.mulf %163, %170 : vector<8x128xf32>
    %172 = arith.addf %169, %171 : vector<8x128xf32>
    %173 = arith.index_cast %c4_i32 : i32 to index
    %c0_47 = arith.constant 0 : index
    %c0_48 = arith.constant 0 : index
    %174 = vector.load %arg5[%173, %c0_47, %c0_48] : memref<8x8x128xf32, #tpu.memory_space<vmem>>, vector<1x8x128xf32>
    %175 = vector.shape_cast %174 : vector<1x8x128xf32> to vector<8x128xf32>
    %176 = vector.shape_cast %172 : vector<8x128xf32> to vector<1x8x128xf32>
    tpu.vector_store %arg5[%173, %c0_47, %c0_48], %176 {strides = array<i32>} : memref<8x8x128xf32, #tpu.memory_space<vmem>>, vector<1x8x128xf32>,
    %c5_i32 = arith.constant 5 : i32
    %177 = arith.index_cast %c5_i32 : i32 to index
    %c0_49 = arith.constant 0 : index
    %c0_50 = arith.constant 0 : index
    %178 = vector.load %arg2[%177, %c0_49, %c0_50] : memref<8x8x384xf32, #tpu.memory_space<vmem>>, vector<1x8x384xf32>
    %179 = vector.shape_cast %178 : vector<1x8x384xf32> to vector<8x384xf32>
    %c0_51 = arith.constant 0 : index
    %c0_52 = arith.constant 0 : index
    %180 = vector.load %arg3[%c0_51, %c0_52] : memref<128x384xf32, #tpu.memory_space<vmem>>, vector<128x384xf32>
    %cst_53 = arith.constant dense<0.000000e+00> : vector<8x384xf32>
    %181 = tpu.matmul %172, %180, %cst_53 {dimension_numbers = #tpu.dot_dimension_numbers<[1], [0], [0], [1], [0, 0, 1, 1], [], []>} : vector<8x128xf32>, vector<128x384xf32>, vector<8x384xf32> -> vector<8x384xf32>
    %182 = vector.extract_strided_slice %179 {offsets = [0, 0], sizes = [8, 128], strides = [1, 1]} : vector<8x384xf32> to vector<8x128xf32>
    %183 = vector.extract_strided_slice %181 {offsets = [0, 0], sizes = [8, 128], strides = [1, 1]} : vector<8x384xf32> to vector<8x128xf32>
    %184 = arith.addf %182, %183 : vector<8x128xf32>
    %185 = arith.negf %184 : vector<8x128xf32>
    %186 = math.exp %185 : vector<8x128xf32>
    %cst_54 = arith.constant 1.000000e+00 : f32
    %187 = vector.broadcast %cst_54 : f32 to vector<8x128xf32>
    %188 = arith.addf %187, %186 : vector<8x128xf32>
    %189 = arith.divf %187, %188 : vector<8x128xf32>
    %190 = vector.extract_strided_slice %179 {offsets = [0, 128], sizes = [8, 128], strides = [1, 1]} : vector<8x384xf32> to vector<8x128xf32>
    %191 = vector.extract_strided_slice %181 {offsets = [0, 128], sizes = [8, 128], strides = [1, 1]} : vector<8x384xf32> to vector<8x128xf32>
    %192 = arith.addf %190, %191 : vector<8x128xf32>
    %193 = arith.negf %192 : vector<8x128xf32>
    %194 = math.exp %193 : vector<8x128xf32>
    %cst_55 = arith.constant 1.000000e+00 : f32
    %195 = vector.broadcast %cst_55 : f32 to vector<8x128xf32>
    %196 = arith.addf %195, %194 : vector<8x128xf32>
    %197 = arith.divf %195, %196 : vector<8x128xf32>
    %198 = vector.extract_strided_slice %179 {offsets = [0, 256], sizes = [8, 128], strides = [1, 1]} : vector<8x384xf32> to vector<8x128xf32>
    %199 = vector.extract_strided_slice %181 {offsets = [0, 256], sizes = [8, 128], strides = [1, 1]} : vector<8x384xf32> to vector<8x128xf32>
    %200 = arith.addf %199, %5 : vector<8x128xf32>
    %201 = arith.mulf %189, %200 : vector<8x128xf32>
    %202 = arith.addf %198, %201 : vector<8x128xf32>
    %203 = math.tanh %202 : vector<8x128xf32>
    %204 = arith.subf %172, %203 : vector<8x128xf32>
    %205 = arith.mulf %197, %204 : vector<8x128xf32>
    %206 = arith.addf %203, %205 : vector<8x128xf32>
    %207 = arith.index_cast %c5_i32 : i32 to index
    %c0_56 = arith.constant 0 : index
    %c0_57 = arith.constant 0 : index
    %208 = vector.load %arg5[%207, %c0_56, %c0_57] : memref<8x8x128xf32, #tpu.memory_space<vmem>>, vector<1x8x128xf32>
    %209 = vector.shape_cast %208 : vector<1x8x128xf32> to vector<8x128xf32>
    %210 = vector.shape_cast %206 : vector<8x128xf32> to vector<1x8x128xf32>
    tpu.vector_store %arg5[%207, %c0_56, %c0_57], %210 {strides = array<i32>} : memref<8x8x128xf32, #tpu.memory_space<vmem>>, vector<1x8x128xf32>,
    %c6_i32 = arith.constant 6 : i32
    %211 = arith.index_cast %c6_i32 : i32 to index
    %c0_58 = arith.constant 0 : index
    %c0_59 = arith.constant 0 : index
    %212 = vector.load %arg2[%211, %c0_58, %c0_59] : memref<8x8x384xf32, #tpu.memory_space<vmem>>, vector<1x8x384xf32>
    %213 = vector.shape_cast %212 : vector<1x8x384xf32> to vector<8x384xf32>
    %c0_60 = arith.constant 0 : index
    %c0_61 = arith.constant 0 : index
    %214 = vector.load %arg3[%c0_60, %c0_61] : memref<128x384xf32, #tpu.memory_space<vmem>>, vector<128x384xf32>
    %cst_62 = arith.constant dense<0.000000e+00> : vector<8x384xf32>
    %215 = tpu.matmul %206, %214, %cst_62 {dimension_numbers = #tpu.dot_dimension_numbers<[1], [0], [0], [1], [0, 0, 1, 1], [], []>} : vector<8x128xf32>, vector<128x384xf32>, vector<8x384xf32> -> vector<8x384xf32>
    %216 = vector.extract_strided_slice %213 {offsets = [0, 0], sizes = [8, 128], strides = [1, 1]} : vector<8x384xf32> to vector<8x128xf32>
    %217 = vector.extract_strided_slice %215 {offsets = [0, 0], sizes = [8, 128], strides = [1, 1]} : vector<8x384xf32> to vector<8x128xf32>
    %218 = arith.addf %216, %217 : vector<8x128xf32>
    %219 = arith.negf %218 : vector<8x128xf32>
    %220 = math.exp %219 : vector<8x128xf32>
    %cst_63 = arith.constant 1.000000e+00 : f32
    %221 = vector.broadcast %cst_63 : f32 to vector<8x128xf32>
    %222 = arith.addf %221, %220 : vector<8x128xf32>
    %223 = arith.divf %221, %222 : vector<8x128xf32>
    %224 = vector.extract_strided_slice %213 {offsets = [0, 128], sizes = [8, 128], strides = [1, 1]} : vector<8x384xf32> to vector<8x128xf32>
    %225 = vector.extract_strided_slice %215 {offsets = [0, 128], sizes = [8, 128], strides = [1, 1]} : vector<8x384xf32> to vector<8x128xf32>
    %226 = arith.addf %224, %225 : vector<8x128xf32>
    %227 = arith.negf %226 : vector<8x128xf32>
    %228 = math.exp %227 : vector<8x128xf32>
    %cst_64 = arith.constant 1.000000e+00 : f32
    %229 = vector.broadcast %cst_64 : f32 to vector<8x128xf32>
    %230 = arith.addf %229, %228 : vector<8x128xf32>
    %231 = arith.divf %229, %230 : vector<8x128xf32>
    %232 = vector.extract_strided_slice %213 {offsets = [0, 256], sizes = [8, 128], strides = [1, 1]} : vector<8x384xf32> to vector<8x128xf32>
    %233 = vector.extract_strided_slice %215 {offsets = [0, 256], sizes = [8, 128], strides = [1, 1]} : vector<8x384xf32> to vector<8x128xf32>
    %234 = arith.addf %233, %5 : vector<8x128xf32>
    %235 = arith.mulf %223, %234 : vector<8x128xf32>
    %236 = arith.addf %232, %235 : vector<8x128xf32>
    %237 = math.tanh %236 : vector<8x128xf32>
    %238 = arith.subf %206, %237 : vector<8x128xf32>
    %239 = arith.mulf %231, %238 : vector<8x128xf32>
    %240 = arith.addf %237, %239 : vector<8x128xf32>
    %241 = arith.index_cast %c6_i32 : i32 to index
    %c0_65 = arith.constant 0 : index
    %c0_66 = arith.constant 0 : index
    %242 = vector.load %arg5[%241, %c0_65, %c0_66] : memref<8x8x128xf32, #tpu.memory_space<vmem>>, vector<1x8x128xf32>
    %243 = vector.shape_cast %242 : vector<1x8x128xf32> to vector<8x128xf32>
    %244 = vector.shape_cast %240 : vector<8x128xf32> to vector<1x8x128xf32>
    tpu.vector_store %arg5[%241, %c0_65, %c0_66], %244 {strides = array<i32>} : memref<8x8x128xf32, #tpu.memory_space<vmem>>, vector<1x8x128xf32>,
    %c7_i32 = arith.constant 7 : i32
    %245 = arith.index_cast %c7_i32 : i32 to index
    %c0_67 = arith.constant 0 : index
    %c0_68 = arith.constant 0 : index
    %246 = vector.load %arg2[%245, %c0_67, %c0_68] : memref<8x8x384xf32, #tpu.memory_space<vmem>>, vector<1x8x384xf32>
    %247 = vector.shape_cast %246 : vector<1x8x384xf32> to vector<8x384xf32>
    %c0_69 = arith.constant 0 : index
    %c0_70 = arith.constant 0 : index
    %248 = vector.load %arg3[%c0_69, %c0_70] : memref<128x384xf32, #tpu.memory_space<vmem>>, vector<128x384xf32>
    %cst_71 = arith.constant dense<0.000000e+00> : vector<8x384xf32>
    %249 = tpu.matmul %240, %248, %cst_71 {dimension_numbers = #tpu.dot_dimension_numbers<[1], [0], [0], [1], [0, 0, 1, 1], [], []>} : vector<8x128xf32>, vector<128x384xf32>, vector<8x384xf32> -> vector<8x384xf32>
    %250 = vector.extract_strided_slice %247 {offsets = [0, 0], sizes = [8, 128], strides = [1, 1]} : vector<8x384xf32> to vector<8x128xf32>
    %251 = vector.extract_strided_slice %249 {offsets = [0, 0], sizes = [8, 128], strides = [1, 1]} : vector<8x384xf32> to vector<8x128xf32>
    %252 = arith.addf %250, %251 : vector<8x128xf32>
    %253 = arith.negf %252 : vector<8x128xf32>
    %254 = math.exp %253 : vector<8x128xf32>
    %cst_72 = arith.constant 1.000000e+00 : f32
    %255 = vector.broadcast %cst_72 : f32 to vector<8x128xf32>
    %256 = arith.addf %255, %254 : vector<8x128xf32>
    %257 = arith.divf %255, %256 : vector<8x128xf32>
    %258 = vector.extract_strided_slice %247 {offsets = [0, 128], sizes = [8, 128], strides = [1, 1]} : vector<8x384xf32> to vector<8x128xf32>
    %259 = vector.extract_strided_slice %249 {offsets = [0, 128], sizes = [8, 128], strides = [1, 1]} : vector<8x384xf32> to vector<8x128xf32>
    %260 = arith.addf %258, %259 : vector<8x128xf32>
    %261 = arith.negf %260 : vector<8x128xf32>
    %262 = math.exp %261 : vector<8x128xf32>
    %cst_73 = arith.constant 1.000000e+00 : f32
    %263 = vector.broadcast %cst_73 : f32 to vector<8x128xf32>
    %264 = arith.addf %263, %262 : vector<8x128xf32>
    %265 = arith.divf %263, %264 : vector<8x128xf32>
    %266 = vector.extract_strided_slice %247 {offsets = [0, 256], sizes = [8, 128], strides = [1, 1]} : vector<8x384xf32> to vector<8x128xf32>
    %267 = vector.extract_strided_slice %249 {offsets = [0, 256], sizes = [8, 128], strides = [1, 1]} : vector<8x384xf32> to vector<8x128xf32>
    %268 = arith.addf %267, %5 : vector<8x128xf32>
    %269 = arith.mulf %257, %268 : vector<8x128xf32>
    %270 = arith.addf %266, %269 : vector<8x128xf32>
    %271 = math.tanh %270 : vector<8x128xf32>
    %272 = arith.subf %240, %271 : vector<8x128xf32>
    %273 = arith.mulf %265, %272 : vector<8x128xf32>
    %274 = arith.addf %271, %273 : vector<8x128xf32>
    %275 = arith.index_cast %c7_i32 : i32 to index
    %c0_74 = arith.constant 0 : index
    %c0_75 = arith.constant 0 : index
    %276 = vector.load %arg5[%275, %c0_74, %c0_75] : memref<8x8x128xf32, #tpu.memory_space<vmem>>, vector<1x8x128xf32>
    %277 = vector.shape_cast %276 : vector<1x8x128xf32> to vector<8x128xf32>
    %278 = vector.shape_cast %274 : vector<8x128xf32> to vector<1x8x128xf32>
    tpu.vector_store %arg5[%275, %c0_74, %c0_75], %278 {strides = array<i32>} : memref<8x8x128xf32, #tpu.memory_space<vmem>>, vector<1x8x128xf32>,
    %c8_i32 = arith.constant 8 : i32
    %c0_76 = arith.constant 0 : index
    %c0_77 = arith.constant 0 : index
    %279 = vector.load %arg6[%c0_76, %c0_77] : memref<8x128xf32, #tpu.memory_space<vmem>>, vector<8x128xf32>
    tpu.vector_store %arg6[%c0_76, %c0_77], %274 {strides = array<i32>} : memref<8x128xf32, #tpu.memory_space<vmem>>, vector<8x128xf32>,
    return
  }
  func.func @transform_0(%arg0: i32, %arg1: i32) -> (i32, i32, i32) {
    %c0_i32 = arith.constant 0 : i32
    %c0_i32_0 = arith.constant 0 : i32
    return %arg1, %arg0, %c0_i32 : i32, i32, i32
  }
  func.func @transform_1(%arg0: i32, %arg1: i32) -> (i32, i32) {
    %c0_i32 = arith.constant 0 : i32
    %c0_i32_0 = arith.constant 0 : i32
    %c0_i32_1 = arith.constant 0 : i32
    return %c0_i32, %c0_i32_0 : i32, i32
  }
  func.func @transform_2(%arg0: i32, %arg1: i32) -> (i32, i32) {
    %c0_i32 = arith.constant 0 : i32
    %c0_i32_0 = arith.constant 0 : i32
    %c0_i32_1 = arith.constant 0 : i32
    return %c0_i32, %c0_i32_0 : i32, i32
  }
  func.func @transform_3(%arg0: i32, %arg1: i32) -> (i32, i32, i32) {
    %c0_i32 = arith.constant 0 : i32
    %c0_i32_0 = arith.constant 0 : i32
    return %arg1, %arg0, %c0_i32 : i32, i32, i32
  }
}

module attributes {stable_mosaic.version = 11 : i64} {
  func.func @_gru_chunk_kernel(%arg0: i32, %arg1: i32, %arg2: memref<8x8x384xf32, #tpu.memory_space<vmem>>, %arg3: memref<128x384xf32, #tpu.memory_space<vmem>>, %arg4: memref<1x128xf32, #tpu.memory_space<vmem>>, %arg5: memref<8x8x128xf32, #tpu.memory_space<vmem>>, %arg6: memref<8x128xf32, #tpu.memory_space<vmem>>) attributes {dimension_semantics = [#tpu.dimension_semantics<parallel>, #tpu.dimension_semantics<arbitrary>], iteration_bounds = array<i64: 1, 3>, scalar_prefetch = 0 : i64, scratch_operands = 1 : i64, tpu.core_type = #tpu.core_type<tc>, window_params = [{transform_indices = @transform_0, window_bounds = array<i64: 8, 8, 384>}, {pipeline_mode = #tpu.pipeline_mode<synchronous>, transform_indices = @transform_1, window_bounds = array<i64: 128, 384>}, {pipeline_mode = #tpu.pipeline_mode<synchronous>, transform_indices = @transform_2, window_bounds = array<i64: 1, 128>}, {transform_indices = @transform_3, window_bounds = array<i64: 8, 8, 128>}]} {
    %c0_i32 = arith.constant 0 : i32
    %0 = arith.cmpi eq, %arg1, %c0_i32 : i32
    %1 = arith.extui %0 : i1 to i32
    %c0_i32_0 = arith.constant 0 : i32
    %2 = arith.cmpi ne, %1, %c0_i32_0 : i32
    scf.if %2 {
      %cst_78 = arith.constant 0.000000e+00 : f32
      %280 = vector.broadcast %cst_78 : f32 to vector<8x128xf32>
      %c0_79 = arith.constant 0 : index
      %c0_80 = arith.constant 0 : index
      %281 = vector.load %arg6[%c0_79, %c0_80] : memref<8x128xf32, #tpu.memory_space<vmem>>, vector<8x128xf32>
      tpu.vector_store %arg6[%c0_79, %c0_80], %280 {strides = array<i32>} : memref<8x128xf32, #tpu.memory_space<vmem>>, vector<8x128xf32>,
    } else {
    }
    %c0 = arith.constant 0 : index
    %c0_1 = arith.constant 0 : index
    %3 = vector.load %arg4[%c0, %c0_1] : memref<1x128xf32, #tpu.memory_space<vmem>>, vector<1x128xf32>
    %4 = vector.shape_cast %3 : vector<1x128xf32> to vector<1x128xf32>
    %5 = vector.broadcast %4 : vector<1x128xf32> to vector<8x128xf32>
    %c0_2 = arith.constant 0 : index
    %c0_3 = arith.constant 0 : index
    %6 = vector.load %arg6[%c0_2, %c0_3] : memref<8x128xf32, #tpu.memory_space<vmem>>, vector<8x128xf32>
    %c0_i32_4 = arith.constant 0 : i32
    %7 = arith.index_cast %c0_i32_4 : i32 to index
    %c0_5 = arith.constant 0 : index
    %c0_6 = arith.constant 0 : index
    %8 = vector.load %arg2[%7, %c0_5, %c0_6] : memref<8x8x384xf32, #tpu.memory_space<vmem>>, vector<1x8x384xf32>
    %9 = vector.shape_cast %8 : vector<1x8x384xf32> to vector<8x384xf32>
    %c0_7 = arith.constant 0 : index
    %c0_8 = arith.constant 0 : index
    %10 = vector.load %arg3[%c0_7, %c0_8] : memref<128x384xf32, #tpu.memory_space<vmem>>, vector<128x384xf32>
    %cst = arith.constant dense<0.000000e+00> : vector<8x384xf32>
    %11 = tpu.matmul %6, %10, %cst {dimension_numbers = #tpu.dot_dimension_numbers<[1], [0], [0], [1], [0, 0, 1, 1], [], []>} : vector<8x128xf32>, vector<128x384xf32>, vector<8x384xf32> -> vector<8x384xf32>
    %12 = vector.extract_strided_slice %9 {offsets = [0, 0], sizes = [8, 128], strides = [1, 1]} : vector<8x384xf32> to vector<8x128xf32>
    %13 = vector.extract_strided_slice %11 {offsets = [0, 0], sizes = [8, 128], strides = [1, 1]} : vector<8x384xf32> to vector<8x128xf32>
    %14 = arith.addf %12, %13 : vector<8x128xf32>
    %15 = arith.negf %14 : vector<8x128xf32>
    %16 = math.exp %15 : vector<8x128xf32>
    %cst_9 = arith.constant 1.000000e+00 : f32
    %17 = vector.broadcast %cst_9 : f32 to vector<8x128xf32>
    %18 = arith.addf %17, %16 : vector<8x128xf32>
    %19 = arith.divf %17, %18 : vector<8x128xf32>
    %20 = vector.extract_strided_slice %9 {offsets = [0, 128], sizes = [8, 128], strides = [1, 1]} : vector<8x384xf32> to vector<8x128xf32>
    %21 = vector.extract_strided_slice %11 {offsets = [0, 128], sizes = [8, 128], strides = [1, 1]} : vector<8x384xf32> to vector<8x128xf32>
    %22 = arith.addf %20, %21 : vector<8x128xf32>
    %23 = arith.negf %22 : vector<8x128xf32>
    %24 = math.exp %23 : vector<8x128xf32>
    %cst_10 = arith.constant 1.000000e+00 : f32
    %25 = vector.broadcast %cst_10 : f32 to vector<8x128xf32>
    %26 = arith.addf %25, %24 : vector<8x128xf32>
    %27 = arith.divf %25, %26 : vector<8x128xf32>
    %28 = vector.extract_strided_slice %9 {offsets = [0, 256], sizes = [8, 128], strides = [1, 1]} : vector<8x384xf32> to vector<8x128xf32>
    %29 = vector.extract_strided_slice %11 {offsets = [0, 256], sizes = [8, 128], strides = [1, 1]} : vector<8x384xf32> to vector<8x128xf32>
    %30 = arith.addf %29, %5 : vector<8x128xf32>
    %31 = arith.mulf %19, %30 : vector<8x128xf32>
    %32 = arith.addf %28, %31 : vector<8x128xf32>
    %33 = math.tanh %32 : vector<8x128xf32>
    %34 = arith.subf %6, %33 : vector<8x128xf32>
    %35 = arith.mulf %27, %34 : vector<8x128xf32>
    %36 = arith.addf %33, %35 : vector<8x128xf32>
    %37 = arith.index_cast %c0_i32_4 : i32 to index
    %c0_11 = arith.constant 0 : index
    %c0_12 = arith.constant 0 : index
    %38 = vector.load %arg5[%37, %c0_11, %c0_12] : memref<8x8x128xf32, #tpu.memory_space<vmem>>, vector<1x8x128xf32>
    %39 = vector.shape_cast %38 : vector<1x8x128xf32> to vector<8x128xf32>
    %40 = vector.shape_cast %36 : vector<8x128xf32> to vector<1x8x128xf32>
    tpu.vector_store %arg5[%37, %c0_11, %c0_12], %40 {strides = array<i32>} : memref<8x8x128xf32, #tpu.memory_space<vmem>>, vector<1x8x128xf32>,
    %c1_i32 = arith.constant 1 : i32
    %41 = arith.index_cast %c1_i32 : i32 to index
    %c0_13 = arith.constant 0 : index
    %c0_14 = arith.constant 0 : index
    %42 = vector.load %arg2[%41, %c0_13, %c0_14] : memref<8x8x384xf32, #tpu.memory_space<vmem>>, vector<1x8x384xf32>
    %43 = vector.shape_cast %42 : vector<1x8x384xf32> to vector<8x384xf32>
    %c0_15 = arith.constant 0 : index
    %c0_16 = arith.constant 0 : index
    %44 = vector.load %arg3[%c0_15, %c0_16] : memref<128x384xf32, #tpu.memory_space<vmem>>, vector<128x384xf32>
    %cst_17 = arith.constant dense<0.000000e+00> : vector<8x384xf32>
    %45 = tpu.matmul %36, %44, %cst_17 {dimension_numbers = #tpu.dot_dimension_numbers<[1], [0], [0], [1], [0, 0, 1, 1], [], []>} : vector<8x128xf32>, vector<128x384xf32>, vector<8x384xf32> -> vector<8x384xf32>
    %46 = vector.extract_strided_slice %43 {offsets = [0, 0], sizes = [8, 128], strides = [1, 1]} : vector<8x384xf32> to vector<8x128xf32>
    %47 = vector.extract_strided_slice %45 {offsets = [0, 0], sizes = [8, 128], strides = [1, 1]} : vector<8x384xf32> to vector<8x128xf32>
    %48 = arith.addf %46, %47 : vector<8x128xf32>
    %49 = arith.negf %48 : vector<8x128xf32>
    %50 = math.exp %49 : vector<8x128xf32>
    %cst_18 = arith.constant 1.000000e+00 : f32
    %51 = vector.broadcast %cst_18 : f32 to vector<8x128xf32>
    %52 = arith.addf %51, %50 : vector<8x128xf32>
    %53 = arith.divf %51, %52 : vector<8x128xf32>
    %54 = vector.extract_strided_slice %43 {offsets = [0, 128], sizes = [8, 128], strides = [1, 1]} : vector<8x384xf32> to vector<8x128xf32>
    %55 = vector.extract_strided_slice %45 {offsets = [0, 128], sizes = [8, 128], strides = [1, 1]} : vector<8x384xf32> to vector<8x128xf32>
    %56 = arith.addf %54, %55 : vector<8x128xf32>
    %57 = arith.negf %56 : vector<8x128xf32>
    %58 = math.exp %57 : vector<8x128xf32>
    %cst_19 = arith.constant 1.000000e+00 : f32
    %59 = vector.broadcast %cst_19 : f32 to vector<8x128xf32>
    %60 = arith.addf %59, %58 : vector<8x128xf32>
    %61 = arith.divf %59, %60 : vector<8x128xf32>
    %62 = vector.extract_strided_slice %43 {offsets = [0, 256], sizes = [8, 128], strides = [1, 1]} : vector<8x384xf32> to vector<8x128xf32>
    %63 = vector.extract_strided_slice %45 {offsets = [0, 256], sizes = [8, 128], strides = [1, 1]} : vector<8x384xf32> to vector<8x128xf32>
    %64 = arith.addf %63, %5 : vector<8x128xf32>
    %65 = arith.mulf %53, %64 : vector<8x128xf32>
    %66 = arith.addf %62, %65 : vector<8x128xf32>
    %67 = math.tanh %66 : vector<8x128xf32>
    %68 = arith.subf %36, %67 : vector<8x128xf32>
    %69 = arith.mulf %61, %68 : vector<8x128xf32>
    %70 = arith.addf %67, %69 : vector<8x128xf32>
    %71 = arith.index_cast %c1_i32 : i32 to index
    %c0_20 = arith.constant 0 : index
    %c0_21 = arith.constant 0 : index
    %72 = vector.load %arg5[%71, %c0_20, %c0_21] : memref<8x8x128xf32, #tpu.memory_space<vmem>>, vector<1x8x128xf32>
    %73 = vector.shape_cast %72 : vector<1x8x128xf32> to vector<8x128xf32>
    %74 = vector.shape_cast %70 : vector<8x128xf32> to vector<1x8x128xf32>
    tpu.vector_store %arg5[%71, %c0_20, %c0_21], %74 {strides = array<i32>} : memref<8x8x128xf32, #tpu.memory_space<vmem>>, vector<1x8x128xf32>,
    %c2_i32 = arith.constant 2 : i32
    %75 = arith.index_cast %c2_i32 : i32 to index
    %c0_22 = arith.constant 0 : index
    %c0_23 = arith.constant 0 : index
    %76 = vector.load %arg2[%75, %c0_22, %c0_23] : memref<8x8x384xf32, #tpu.memory_space<vmem>>, vector<1x8x384xf32>
    %77 = vector.shape_cast %76 : vector<1x8x384xf32> to vector<8x384xf32>
    %c0_24 = arith.constant 0 : index
    %c0_25 = arith.constant 0 : index
    %78 = vector.load %arg3[%c0_24, %c0_25] : memref<128x384xf32, #tpu.memory_space<vmem>>, vector<128x384xf32>
    %cst_26 = arith.constant dense<0.000000e+00> : vector<8x384xf32>
    %79 = tpu.matmul %70, %78, %cst_26 {dimension_numbers = #tpu.dot_dimension_numbers<[1], [0], [0], [1], [0, 0, 1, 1], [], []>} : vector<8x128xf32>, vector<128x384xf32>, vector<8x384xf32> -> vector<8x384xf32>
    %80 = vector.extract_strided_slice %77 {offsets = [0, 0], sizes = [8, 128], strides = [1, 1]} : vector<8x384xf32> to vector<8x128xf32>
    %81 = vector.extract_strided_slice %79 {offsets = [0, 0], sizes = [8, 128], strides = [1, 1]} : vector<8x384xf32> to vector<8x128xf32>
    %82 = arith.addf %80, %81 : vector<8x128xf32>
    %83 = arith.negf %82 : vector<8x128xf32>
    %84 = math.exp %83 : vector<8x128xf32>
    %cst_27 = arith.constant 1.000000e+00 : f32
    %85 = vector.broadcast %cst_27 : f32 to vector<8x128xf32>
    %86 = arith.addf %85, %84 : vector<8x128xf32>
    %87 = arith.divf %85, %86 : vector<8x128xf32>
    %88 = vector.extract_strided_slice %77 {offsets = [0, 128], sizes = [8, 128], strides = [1, 1]} : vector<8x384xf32> to vector<8x128xf32>
    %89 = vector.extract_strided_slice %79 {offsets = [0, 128], sizes = [8, 128], strides = [1, 1]} : vector<8x384xf32> to vector<8x128xf32>
    %90 = arith.addf %88, %89 : vector<8x128xf32>
    %91 = arith.negf %90 : vector<8x128xf32>
    %92 = math.exp %91 : vector<8x128xf32>
    %cst_28 = arith.constant 1.000000e+00 : f32
    %93 = vector.broadcast %cst_28 : f32 to vector<8x128xf32>
    %94 = arith.addf %93, %92 : vector<8x128xf32>
    %95 = arith.divf %93, %94 : vector<8x128xf32>
    %96 = vector.extract_strided_slice %77 {offsets = [0, 256], sizes = [8, 128], strides = [1, 1]} : vector<8x384xf32> to vector<8x128xf32>
    %97 = vector.extract_strided_slice %79 {offsets = [0, 256], sizes = [8, 128], strides = [1, 1]} : vector<8x384xf32> to vector<8x128xf32>
    %98 = arith.addf %97, %5 : vector<8x128xf32>
    %99 = arith.mulf %87, %98 : vector<8x128xf32>
    %100 = arith.addf %96, %99 : vector<8x128xf32>
    %101 = math.tanh %100 : vector<8x128xf32>
    %102 = arith.subf %70, %101 : vector<8x128xf32>
    %103 = arith.mulf %95, %102 : vector<8x128xf32>
    %104 = arith.addf %101, %103 : vector<8x128xf32>
    %105 = arith.index_cast %c2_i32 : i32 to index
    %c0_29 = arith.constant 0 : index
    %c0_30 = arith.constant 0 : index
    %106 = vector.load %arg5[%105, %c0_29, %c0_30] : memref<8x8x128xf32, #tpu.memory_space<vmem>>, vector<1x8x128xf32>
    %107 = vector.shape_cast %106 : vector<1x8x128xf32> to vector<8x128xf32>
    %108 = vector.shape_cast %104 : vector<8x128xf32> to vector<1x8x128xf32>
    tpu.vector_store %arg5[%105, %c0_29, %c0_30], %108 {strides = array<i32>} : memref<8x8x128xf32, #tpu.memory_space<vmem>>, vector<1x8x128xf32>,
    %c3_i32 = arith.constant 3 : i32
    %109 = arith.index_cast %c3_i32 : i32 to index
    %c0_31 = arith.constant 0 : index
    %c0_32 = arith.constant 0 : index
    %110 = vector.load %arg2[%109, %c0_31, %c0_32] : memref<8x8x384xf32, #tpu.memory_space<vmem>>, vector<1x8x384xf32>
    %111 = vector.shape_cast %110 : vector<1x8x384xf32> to vector<8x384xf32>
    %c0_33 = arith.constant 0 : index
    %c0_34 = arith.constant 0 : index
    %112 = vector.load %arg3[%c0_33, %c0_34] : memref<128x384xf32, #tpu.memory_space<vmem>>, vector<128x384xf32>
    %cst_35 = arith.constant dense<0.000000e+00> : vector<8x384xf32>
    %113 = tpu.matmul %104, %112, %cst_35 {dimension_numbers = #tpu.dot_dimension_numbers<[1], [0], [0], [1], [0, 0, 1, 1], [], []>} : vector<8x128xf32>, vector<128x384xf32>, vector<8x384xf32> -> vector<8x384xf32>
    %114 = vector.extract_strided_slice %111 {offsets = [0, 0], sizes = [8, 128], strides = [1, 1]} : vector<8x384xf32> to vector<8x128xf32>
    %115 = vector.extract_strided_slice %113 {offsets = [0, 0], sizes = [8, 128], strides = [1, 1]} : vector<8x384xf32> to vector<8x128xf32>
    %116 = arith.addf %114, %115 : vector<8x128xf32>
    %117 = arith.negf %116 : vector<8x128xf32>
    %118 = math.exp %117 : vector<8x128xf32>
    %cst_36 = arith.constant 1.000000e+00 : f32
    %119 = vector.broadcast %cst_36 : f32 to vector<8x128xf32>
    %120 = arith.addf %119, %118 : vector<8x128xf32>
    %121 = arith.divf %119, %120 : vector<8x128xf32>
    %122 = vector.extract_strided_slice %111 {offsets = [0, 128], sizes = [8, 128], strides = [1, 1]} : vector<8x384xf32> to vector<8x128xf32>
    %123 = vector.extract_strided_slice %113 {offsets = [0, 128], sizes = [8, 128], strides = [1, 1]} : vector<8x384xf32> to vector<8x128xf32>
    %124 = arith.addf %122, %123 : vector<8x128xf32>
    %125 = arith.negf %124 : vector<8x128xf32>
    %126 = math.exp %125 : vector<8x128xf32>
    %cst_37 = arith.constant 1.000000e+00 : f32
    %127 = vector.broadcast %cst_37 : f32 to vector<8x128xf32>
    %128 = arith.addf %127, %126 : vector<8x128xf32>
    %129 = arith.divf %127, %128 : vector<8x128xf32>
    %130 = vector.extract_strided_slice %111 {offsets = [0, 256], sizes = [8, 128], strides = [1, 1]} : vector<8x384xf32> to vector<8x128xf32>
    %131 = vector.extract_strided_slice %113 {offsets = [0, 256], sizes = [8, 128], strides = [1, 1]} : vector<8x384xf32> to vector<8x128xf32>
    %132 = arith.addf %131, %5 : vector<8x128xf32>
    %133 = arith.mulf %121, %132 : vector<8x128xf32>
    %134 = arith.addf %130, %133 : vector<8x128xf32>
    %135 = math.tanh %134 : vector<8x128xf32>
    %136 = arith.subf %104, %135 : vector<8x128xf32>
    %137 = arith.mulf %129, %136 : vector<8x128xf32>
    %138 = arith.addf %135, %137 : vector<8x128xf32>
    %139 = arith.index_cast %c3_i32 : i32 to index
    %c0_38 = arith.constant 0 : index
    %c0_39 = arith.constant 0 : index
    %140 = vector.load %arg5[%139, %c0_38, %c0_39] : memref<8x8x128xf32, #tpu.memory_space<vmem>>, vector<1x8x128xf32>
    %141 = vector.shape_cast %140 : vector<1x8x128xf32> to vector<8x128xf32>
    %142 = vector.shape_cast %138 : vector<8x128xf32> to vector<1x8x128xf32>
    tpu.vector_store %arg5[%139, %c0_38, %c0_39], %142 {strides = array<i32>} : memref<8x8x128xf32, #tpu.memory_space<vmem>>, vector<1x8x128xf32>,
    %c4_i32 = arith.constant 4 : i32
    %143 = arith.index_cast %c4_i32 : i32 to index
    %c0_40 = arith.constant 0 : index
    %c0_41 = arith.constant 0 : index
    %144 = vector.load %arg2[%143, %c0_40, %c0_41] : memref<8x8x384xf32, #tpu.memory_space<vmem>>, vector<1x8x384xf32>
    %145 = vector.shape_cast %144 : vector<1x8x384xf32> to vector<8x384xf32>
    %c0_42 = arith.constant 0 : index
    %c0_43 = arith.constant 0 : index
    %146 = vector.load %arg3[%c0_42, %c0_43] : memref<128x384xf32, #tpu.memory_space<vmem>>, vector<128x384xf32>
    %cst_44 = arith.constant dense<0.000000e+00> : vector<8x384xf32>
    %147 = tpu.matmul %138, %146, %cst_44 {dimension_numbers = #tpu.dot_dimension_numbers<[1], [0], [0], [1], [0, 0, 1, 1], [], []>} : vector<8x128xf32>, vector<128x384xf32>, vector<8x384xf32> -> vector<8x384xf32>
    %148 = vector.extract_strided_slice %145 {offsets = [0, 0], sizes = [8, 128], strides = [1, 1]} : vector<8x384xf32> to vector<8x128xf32>
    %149 = vector.extract_strided_slice %147 {offsets = [0, 0], sizes = [8, 128], strides = [1, 1]} : vector<8x384xf32> to vector<8x128xf32>
    %150 = arith.addf %148, %149 : vector<8x128xf32>
    %151 = arith.negf %150 : vector<8x128xf32>
    %152 = math.exp %151 : vector<8x128xf32>
    %cst_45 = arith.constant 1.000000e+00 : f32
    %153 = vector.broadcast %cst_45 : f32 to vector<8x128xf32>
    %154 = arith.addf %153, %152 : vector<8x128xf32>
    %155 = arith.divf %153, %154 : vector<8x128xf32>
    %156 = vector.extract_strided_slice %145 {offsets = [0, 128], sizes = [8, 128], strides = [1, 1]} : vector<8x384xf32> to vector<8x128xf32>
    %157 = vector.extract_strided_slice %147 {offsets = [0, 128], sizes = [8, 128], strides = [1, 1]} : vector<8x384xf32> to vector<8x128xf32>
    %158 = arith.addf %156, %157 : vector<8x128xf32>
    %159 = arith.negf %158 : vector<8x128xf32>
    %160 = math.exp %159 : vector<8x128xf32>
    %cst_46 = arith.constant 1.000000e+00 : f32
    %161 = vector.broadcast %cst_46 : f32 to vector<8x128xf32>
    %162 = arith.addf %161, %160 : vector<8x128xf32>
    %163 = arith.divf %161, %162 : vector<8x128xf32>
    %164 = vector.extract_strided_slice %145 {offsets = [0, 256], sizes = [8, 128], strides = [1, 1]} : vector<8x384xf32> to vector<8x128xf32>
    %165 = vector.extract_strided_slice %147 {offsets = [0, 256], sizes = [8, 128], strides = [1, 1]} : vector<8x384xf32> to vector<8x128xf32>
    %166 = arith.addf %165, %5 : vector<8x128xf32>
    %167 = arith.mulf %155, %166 : vector<8x128xf32>
    %168 = arith.addf %164, %167 : vector<8x128xf32>
    %169 = math.tanh %168 : vector<8x128xf32>
    %170 = arith.subf %138, %169 : vector<8x128xf32>
    %171 = arith.mulf %163, %170 : vector<8x128xf32>
    %172 = arith.addf %169, %171 : vector<8x128xf32>
    %173 = arith.index_cast %c4_i32 : i32 to index
    %c0_47 = arith.constant 0 : index
    %c0_48 = arith.constant 0 : index
    %174 = vector.load %arg5[%173, %c0_47, %c0_48] : memref<8x8x128xf32, #tpu.memory_space<vmem>>, vector<1x8x128xf32>
    %175 = vector.shape_cast %174 : vector<1x8x128xf32> to vector<8x128xf32>
    %176 = vector.shape_cast %172 : vector<8x128xf32> to vector<1x8x128xf32>
    tpu.vector_store %arg5[%173, %c0_47, %c0_48], %176 {strides = array<i32>} : memref<8x8x128xf32, #tpu.memory_space<vmem>>, vector<1x8x128xf32>,
    %c5_i32 = arith.constant 5 : i32
    %177 = arith.index_cast %c5_i32 : i32 to index
    %c0_49 = arith.constant 0 : index
    %c0_50 = arith.constant 0 : index
    %178 = vector.load %arg2[%177, %c0_49, %c0_50] : memref<8x8x384xf32, #tpu.memory_space<vmem>>, vector<1x8x384xf32>
    %179 = vector.shape_cast %178 : vector<1x8x384xf32> to vector<8x384xf32>
    %c0_51 = arith.constant 0 : index
    %c0_52 = arith.constant 0 : index
    %180 = vector.load %arg3[%c0_51, %c0_52] : memref<128x384xf32, #tpu.memory_space<vmem>>, vector<128x384xf32>
    %cst_53 = arith.constant dense<0.000000e+00> : vector<8x384xf32>
    %181 = tpu.matmul %172, %180, %cst_53 {dimension_numbers = #tpu.dot_dimension_numbers<[1], [0], [0], [1], [0, 0, 1, 1], [], []>} : vector<8x128xf32>, vector<128x384xf32>, vector<8x384xf32> -> vector<8x384xf32>
    %182 = vector.extract_strided_slice %179 {offsets = [0, 0], sizes = [8, 128], strides = [1, 1]} : vector<8x384xf32> to vector<8x128xf32>
    %183 = vector.extract_strided_slice %181 {offsets = [0, 0], sizes = [8, 128], strides = [1, 1]} : vector<8x384xf32> to vector<8x128xf32>
    %184 = arith.addf %182, %183 : vector<8x128xf32>
    %185 = arith.negf %184 : vector<8x128xf32>
    %186 = math.exp %185 : vector<8x128xf32>
    %cst_54 = arith.constant 1.000000e+00 : f32
    %187 = vector.broadcast %cst_54 : f32 to vector<8x128xf32>
    %188 = arith.addf %187, %186 : vector<8x128xf32>
    %189 = arith.divf %187, %188 : vector<8x128xf32>
    %190 = vector.extract_strided_slice %179 {offsets = [0, 128], sizes = [8, 128], strides = [1, 1]} : vector<8x384xf32> to vector<8x128xf32>
    %191 = vector.extract_strided_slice %181 {offsets = [0, 128], sizes = [8, 128], strides = [1, 1]} : vector<8x384xf32> to vector<8x128xf32>
    %192 = arith.addf %190, %191 : vector<8x128xf32>
    %193 = arith.negf %192 : vector<8x128xf32>
    %194 = math.exp %193 : vector<8x128xf32>
    %cst_55 = arith.constant 1.000000e+00 : f32
    %195 = vector.broadcast %cst_55 : f32 to vector<8x128xf32>
    %196 = arith.addf %195, %194 : vector<8x128xf32>
    %197 = arith.divf %195, %196 : vector<8x128xf32>
    %198 = vector.extract_strided_slice %179 {offsets = [0, 256], sizes = [8, 128], strides = [1, 1]} : vector<8x384xf32> to vector<8x128xf32>
    %199 = vector.extract_strided_slice %181 {offsets = [0, 256], sizes = [8, 128], strides = [1, 1]} : vector<8x384xf32> to vector<8x128xf32>
    %200 = arith.addf %199, %5 : vector<8x128xf32>
    %201 = arith.mulf %189, %200 : vector<8x128xf32>
    %202 = arith.addf %198, %201 : vector<8x128xf32>
    %203 = math.tanh %202 : vector<8x128xf32>
    %204 = arith.subf %172, %203 : vector<8x128xf32>
    %205 = arith.mulf %197, %204 : vector<8x128xf32>
    %206 = arith.addf %203, %205 : vector<8x128xf32>
    %207 = arith.index_cast %c5_i32 : i32 to index
    %c0_56 = arith.constant 0 : index
    %c0_57 = arith.constant 0 : index
    %208 = vector.load %arg5[%207, %c0_56, %c0_57] : memref<8x8x128xf32, #tpu.memory_space<vmem>>, vector<1x8x128xf32>
    %209 = vector.shape_cast %208 : vector<1x8x128xf32> to vector<8x128xf32>
    %210 = vector.shape_cast %206 : vector<8x128xf32> to vector<1x8x128xf32>
    tpu.vector_store %arg5[%207, %c0_56, %c0_57], %210 {strides = array<i32>} : memref<8x8x128xf32, #tpu.memory_space<vmem>>, vector<1x8x128xf32>,
    %c6_i32 = arith.constant 6 : i32
    %211 = arith.index_cast %c6_i32 : i32 to index
    %c0_58 = arith.constant 0 : index
    %c0_59 = arith.constant 0 : index
    %212 = vector.load %arg2[%211, %c0_58, %c0_59] : memref<8x8x384xf32, #tpu.memory_space<vmem>>, vector<1x8x384xf32>
    %213 = vector.shape_cast %212 : vector<1x8x384xf32> to vector<8x384xf32>
    %c0_60 = arith.constant 0 : index
    %c0_61 = arith.constant 0 : index
    %214 = vector.load %arg3[%c0_60, %c0_61] : memref<128x384xf32, #tpu.memory_space<vmem>>, vector<128x384xf32>
    %cst_62 = arith.constant dense<0.000000e+00> : vector<8x384xf32>
    %215 = tpu.matmul %206, %214, %cst_62 {dimension_numbers = #tpu.dot_dimension_numbers<[1], [0], [0], [1], [0, 0, 1, 1], [], []>} : vector<8x128xf32>, vector<128x384xf32>, vector<8x384xf32> -> vector<8x384xf32>
    %216 = vector.extract_strided_slice %213 {offsets = [0, 0], sizes = [8, 128], strides = [1, 1]} : vector<8x384xf32> to vector<8x128xf32>
    %217 = vector.extract_strided_slice %215 {offsets = [0, 0], sizes = [8, 128], strides = [1, 1]} : vector<8x384xf32> to vector<8x128xf32>
    %218 = arith.addf %216, %217 : vector<8x128xf32>
    %219 = arith.negf %218 : vector<8x128xf32>
    %220 = math.exp %219 : vector<8x128xf32>
    %cst_63 = arith.constant 1.000000e+00 : f32
    %221 = vector.broadcast %cst_63 : f32 to vector<8x128xf32>
    %222 = arith.addf %221, %220 : vector<8x128xf32>
    %223 = arith.divf %221, %222 : vector<8x128xf32>
    %224 = vector.extract_strided_slice %213 {offsets = [0, 128], sizes = [8, 128], strides = [1, 1]} : vector<8x384xf32> to vector<8x128xf32>
    %225 = vector.extract_strided_slice %215 {offsets = [0, 128], sizes = [8, 128], strides = [1, 1]} : vector<8x384xf32> to vector<8x128xf32>
    %226 = arith.addf %224, %225 : vector<8x128xf32>
    %227 = arith.negf %226 : vector<8x128xf32>
    %228 = math.exp %227 : vector<8x128xf32>
    %cst_64 = arith.constant 1.000000e+00 : f32
    %229 = vector.broadcast %cst_64 : f32 to vector<8x128xf32>
    %230 = arith.addf %229, %228 : vector<8x128xf32>
    %231 = arith.divf %229, %230 : vector<8x128xf32>
    %232 = vector.extract_strided_slice %213 {offsets = [0, 256], sizes = [8, 128], strides = [1, 1]} : vector<8x384xf32> to vector<8x128xf32>
    %233 = vector.extract_strided_slice %215 {offsets = [0, 256], sizes = [8, 128], strides = [1, 1]} : vector<8x384xf32> to vector<8x128xf32>
    %234 = arith.addf %233, %5 : vector<8x128xf32>
    %235 = arith.mulf %223, %234 : vector<8x128xf32>
    %236 = arith.addf %232, %235 : vector<8x128xf32>
    %237 = math.tanh %236 : vector<8x128xf32>
    %238 = arith.subf %206, %237 : vector<8x128xf32>
    %239 = arith.mulf %231, %238 : vector<8x128xf32>
    %240 = arith.addf %237, %239 : vector<8x128xf32>
    %241 = arith.index_cast %c6_i32 : i32 to index
    %c0_65 = arith.constant 0 : index
    %c0_66 = arith.constant 0 : index
    %242 = vector.load %arg5[%241, %c0_65, %c0_66] : memref<8x8x128xf32, #tpu.memory_space<vmem>>, vector<1x8x128xf32>
    %243 = vector.shape_cast %242 : vector<1x8x128xf32> to vector<8x128xf32>
    %244 = vector.shape_cast %240 : vector<8x128xf32> to vector<1x8x128xf32>
    tpu.vector_store %arg5[%241, %c0_65, %c0_66], %244 {strides = array<i32>} : memref<8x8x128xf32, #tpu.memory_space<vmem>>, vector<1x8x128xf32>,
    %c7_i32 = arith.constant 7 : i32
    %245 = arith.index_cast %c7_i32 : i32 to index
    %c0_67 = arith.constant 0 : index
    %c0_68 = arith.constant 0 : index
    %246 = vector.load %arg2[%245, %c0_67, %c0_68] : memref<8x8x384xf32, #tpu.memory_space<vmem>>, vector<1x8x384xf32>
    %247 = vector.shape_cast %246 : vector<1x8x384xf32> to vector<8x384xf32>
    %c0_69 = arith.constant 0 : index
    %c0_70 = arith.constant 0 : index
    %248 = vector.load %arg3[%c0_69, %c0_70] : memref<128x384xf32, #tpu.memory_space<vmem>>, vector<128x384xf32>
    %cst_71 = arith.constant dense<0.000000e+00> : vector<8x384xf32>
    %249 = tpu.matmul %240, %248, %cst_71 {dimension_numbers = #tpu.dot_dimension_numbers<[1], [0], [0], [1], [0, 0, 1, 1], [], []>} : vector<8x128xf32>, vector<128x384xf32>, vector<8x384xf32> -> vector<8x384xf32>
    %250 = vector.extract_strided_slice %247 {offsets = [0, 0], sizes = [8, 128], strides = [1, 1]} : vector<8x384xf32> to vector<8x128xf32>
    %251 = vector.extract_strided_slice %249 {offsets = [0, 0], sizes = [8, 128], strides = [1, 1]} : vector<8x384xf32> to vector<8x128xf32>
    %252 = arith.addf %250, %251 : vector<8x128xf32>
    %253 = arith.negf %252 : vector<8x128xf32>
    %254 = math.exp %253 : vector<8x128xf32>
    %cst_72 = arith.constant 1.000000e+00 : f32
    %255 = vector.broadcast %cst_72 : f32 to vector<8x128xf32>
    %256 = arith.addf %255, %254 : vector<8x128xf32>
    %257 = arith.divf %255, %256 : vector<8x128xf32>
    %258 = vector.extract_strided_slice %247 {offsets = [0, 128], sizes = [8, 128], strides = [1, 1]} : vector<8x384xf32> to vector<8x128xf32>
    %259 = vector.extract_strided_slice %249 {offsets = [0, 128], sizes = [8, 128], strides = [1, 1]} : vector<8x384xf32> to vector<8x128xf32>
    %260 = arith.addf %258, %259 : vector<8x128xf32>
    %261 = arith.negf %260 : vector<8x128xf32>
    %262 = math.exp %261 : vector<8x128xf32>
    %cst_73 = arith.constant 1.000000e+00 : f32
    %263 = vector.broadcast %cst_73 : f32 to vector<8x128xf32>
    %264 = arith.addf %263, %262 : vector<8x128xf32>
    %265 = arith.divf %263, %264 : vector<8x128xf32>
    %266 = vector.extract_strided_slice %247 {offsets = [0, 256], sizes = [8, 128], strides = [1, 1]} : vector<8x384xf32> to vector<8x128xf32>
    %267 = vector.extract_strided_slice %249 {offsets = [0, 256], sizes = [8, 128], strides = [1, 1]} : vector<8x384xf32> to vector<8x128xf32>
    %268 = arith.addf %267, %5 : vector<8x128xf32>
    %269 = arith.mulf %257, %268 : vector<8x128xf32>
    %270 = arith.addf %266, %269 : vector<8x128xf32>
    %271 = math.tanh %270 : vector<8x128xf32>
    %272 = arith.subf %240, %271 : vector<8x128xf32>
    %273 = arith.mulf %265, %272 : vector<8x128xf32>
    %274 = arith.addf %271, %273 : vector<8x128xf32>
    %275 = arith.index_cast %c7_i32 : i32 to index
    %c0_74 = arith.constant 0 : index
    %c0_75 = arith.constant 0 : index
    %276 = vector.load %arg5[%275, %c0_74, %c0_75] : memref<8x8x128xf32, #tpu.memory_space<vmem>>, vector<1x8x128xf32>
    %277 = vector.shape_cast %276 : vector<1x8x128xf32> to vector<8x128xf32>
    %278 = vector.shape_cast %274 : vector<8x128xf32> to vector<1x8x128xf32>
    tpu.vector_store %arg5[%275, %c0_74, %c0_75], %278 {strides = array<i32>} : memref<8x8x128xf32, #tpu.memory_space<vmem>>, vector<1x8x128xf32>,
    %c8_i32 = arith.constant 8 : i32
    %c0_76 = arith.constant 0 : index
    %c0_77 = arith.constant 0 : index
    %279 = vector.load %arg6[%c0_76, %c0_77] : memref<8x128xf32, #tpu.memory_space<vmem>>, vector<8x128xf32>
    tpu.vector_store %arg6[%c0_76, %c0_77], %274 {strides = array<i32>} : memref<8x128xf32, #tpu.memory_space<vmem>>, vector<8x128xf32>,
    return
  }
  func.func @transform_0(%arg0: i32, %arg1: i32) -> (i32, i32, i32) {
    %c0_i32 = arith.constant 0 : i32
    %c0_i32_0 = arith.constant 0 : i32
    return %arg1, %arg0, %c0_i32 : i32, i32, i32
  }
  func.func @transform_1(%arg0: i32, %arg1: i32) -> (i32, i32) {
    %c0_i32 = arith.constant 0 : i32
    %c0_i32_0 = arith.constant 0 : i32
    %c0_i32_1 = arith.constant 0 : i32
    return %c0_i32, %c0_i32_0 : i32, i32
  }
  func.func @transform_2(%arg0: i32, %arg1: i32) -> (i32, i32) {
    %c0_i32 = arith.constant 0 : i32
    %c0_i32_0 = arith.constant 0 : i32
    %c0_i32_1 = arith.constant 0 : i32
    return %c0_i32, %c0_i32_0 : i32, i32
  }
  func.func @transform_3(%arg0: i32, %arg1: i32) -> (i32, i32, i32) {
    %c0_i32 = arith.constant 0 : i32
    %c0_i32_0 = arith.constant 0 : i32
    return %arg1, %arg0, %c0_i32 : i32, i32, i32
  }
}

</mosaic_0001>

<llo_original>
// kernel: tpu_custom_call.1
$region0: #{tpu_custom_call.1}
  #allocation0 [shape = 'u32[]', space=smem, size = 0x4, offset = 0x4, fixed_abs, tag = 'smem constant byte address 0x4 - core index']
  #allocation1 [shape = 'u32[144,128]{1,0:T(1,128)}', space=vmem, size = 0x12000, scoped, tag = 'internal scratch']
  #allocation2 [shape = 'f32[8,128]{1,0:T(8,128)}', space=vmem, size = 0x1000, scoped, tag = 'scratch operand']
  %s0 = inlined_call_operand.hbm [shape: f32[24,8,384], index: 0, kind: input, shape index: {}]
  %s1 = inlined_call_operand.hbm [shape: f32[128,384], index: 1, kind: input, shape index: {}]
  %s2 = inlined_call_operand.vmem [shape: f32[1,128], index: 2, kind: input, shape index: {}]
  %s3 = inlined_call_operand.hbm [shape: f32[24,8,128], index: 3, kind: output, shape index: {}]
  %s4 = sld [smem:[#allocation0]]
  $region57: #{tpu_custom_call.1} parent=0
    _
  %s6 = ssub.s32 1, %s4
  %s7 = scalar_select 0, %s6, %s4
  $region1: #{tpu_custom_call.1} parent=0
    #allocation3 [shape = 'u8[196608]{0}', space=vmem, size = 0x30000, scoped, tag = 'input window, operand 0']
    #allocation4 [shape = 's32[2]{0}', space=sflag, size = 0x8, scoped, tag = 'scoped memory for tpu_custom_call.1']
    #allocation5 [shape = 's32[2]{0}', space=sflag, size = 0x8, scoped, tag = 'scoped memory for tpu_custom_call.1']
    #allocation6 [shape = 'u8[196608]{0}', space=vmem, size = 0x30000, scoped, tag = 'input window, operand 1, single buffered']
    #allocation7 [shape = 's32[1]{0}', space=sflag, size = 0x4, scoped, tag = 'scoped memory for tpu_custom_call.1']
    #allocation8 [shape = 'u8[65536]{0}', space=vmem, size = 0x10000, scoped, tag = 'output window, operand 0']
    %8 = vsyncpa [#allocation4], 0
    %s9 = scalar_lea.sflag [#allocation4], 1
    %10 = vsyncpa %s9, 0
    %11 = vsyncpa [#allocation7], 0
    %12 = vsyncpa [#allocation5], 0
    %s13 = scalar_lea.sflag [#allocation5], 1
    %14 = vsyncpa %s13, 0
    loop: start=0, step=1, limit=5
    $region2: #{tpu_custom_call.1} parent=1 // loop_pre_header
      _
    $region3: #{tpu_custom_call.1} parent=1 // loop_header
      %s16 = sphi 0, %s20
      %p17 = scmp.ge.s32.totalorder %s16, 5
      %s23 = sphi 0, %s35
      %s24 = sphi 0, %s31
      %s25 = sphi 0, %s23
      %s26 = sphi 0, %s24
      %s27 = sphi 0, %s25
      %s28 = sphi 0, %s26
      %s40 = sphi 0, %s42
      %s43 = sphi 0, %s40
      %s44 = sphi 0, %s43
      %s60 = sphi 0, %s44
      %s64 = sphi 0, %s64
      %s66 = sphi 0, %s64
      %s67 = sphi 0, %s66
      %s81 = sphi 0, %s67
      %s85 = sphi 0, %s85
      %s87 = sphi 0, %s85
      %s88 = sphi 0, %s87
      %s102 = sphi 0, %s88
      %s110 = sphi 0, %s112
      %s113 = sphi 0, %s110
      %s114 = sphi 0, %s113
      %s130 = sphi 0, %s114
    $region4: #{tpu_custom_call.1} parent=1 // loop_header_branch
      %19 = sbr.rel (%p17) target = $region8
    $region5: #{tpu_custom_call.1} parent=1 // loop_body
      %s21 = ssub.s32 %s16, 1
      %s22 = ssub.s32 %s16, 2
      %s29 = sadd.s32 1, %s24
      %p30 = scmp.ge.s32.totalorder %s29, 3
      %s31 = scalar_select %p30, 0, %s29
      %s32 = sadd.s32 1, %s23
      %s33 = scalar_select %p30, %s32, %s23
      %p34 = scmp.ge.s32.totalorder %s33, 1
      %s35 = scalar_select %p34, 0, %s33
      %s36 = ssub.s32 %s24, %s31
      %s37 = ssub.s32 %s23, %s35
      %s38 = sor.u32 %s36, %s37
      %p39 = scmp.eq.s32.totalorder %s38, 0
      %s41 = sadd.s32 %s40, 1
      %s42 = scalar_select %p39, %s40, %s41
      %p45 = pneg %p39
      %p46 = scmp.eq.s32.totalorder %s16, 2
      %p47 = por %p45, %p46
      %p48 = scmp.ne.s32.totalorder %s40, %s43
      %p49 = scmp.eq.s32.totalorder %s16, 0
      %p50 = por %p48, %p49
      %p51 = scmp.ne.s32.totalorder %s40, %s43
      %p52 = scmp.eq.s32.totalorder %s21, 2
      %p53 = por %p51, %p52
      %p54 = scmp.ne.s32.totalorder %s43, %s44
      %p55 = scmp.eq.s32.totalorder %s21, 0
      %p56 = por %p54, %p55
      %p57 = scmp.ne.s32.totalorder %s43, %s44
      %p58 = scmp.eq.s32.totalorder %s22, 2
      %p59 = por %p57, %p58
      %p61 = scmp.ne.s32.totalorder %s44, %s60
      %p62 = scmp.eq.s32.totalorder %s22, 0
      %p63 = por %p61, %p62
      %s65 = sadd.s32 %s64, 1
      %p68 = scmp.eq.s32.totalorder %s16, 2
      %p69 = scmp.ne.s32.totalorder %s64, %s66
      %p70 = scmp.eq.s32.totalorder %s16, 0
      %p71 = por %p69, %p70
      %p72 = scmp.ne.s32.totalorder %s64, %s66
      %p73 = scmp.eq.s32.totalorder %s21, 2
      %p74 = por %p72, %p73
      %p75 = scmp.ne.s32.totalorder %s66, %s67
      %p76 = scmp.eq.s32.totalorder %s21, 0
      %p77 = por %p75, %p76
      %p78 = scmp.ne.s32.totalorder %s66, %s67
      %p79 = scmp.eq.s32.totalorder %s22, 2
      %p80 = por %p78, %p79
      %p82 = scmp.ne.s32.totalorder %s67, %s81
      %p83 = scmp.eq.s32.totalorder %s22, 0
      %p84 = por %p82, %p83
      %s86 = sadd.s32 %s85, 1
      %p89 = scmp.eq.s32.totalorder %s16, 2
      %p90 = scmp.ne.s32.totalorder %s85, %s87
      %p91 = scmp.eq.s32.totalorder %s16, 0
      %p92 = por %p90, %p91
      %p93 = scmp.ne.s32.totalorder %s85, %s87
      %p94 = scmp.eq.s32.totalorder %s21, 2
      %p95 = por %p93, %p94
      %p96 = scmp.ne.s32.totalorder %s87, %s88
      %p97 = scmp.eq.s32.totalorder %s21, 0
      %p98 = por %p96, %p97
      %p99 = scmp.ne.s32.totalorder %s87, %s88
      %p100 = scmp.eq.s32.totalorder %s22, 2
      %p101 = por %p99, %p100
      %p103 = scmp.ne.s32.totalorder %s88, %s102
      %p104 = scmp.eq.s32.totalorder %s22, 0
      %p105 = por %p103, %p104
      %s106 = ssub.s32 %s24, %s31
      %s107 = ssub.s32 %s23, %s35
      %s108 = sor.u32 %s106, %s107
      %p109 = scmp.eq.s32.totalorder %s108, 0
      %s111 = sadd.s32 %s110, 1
      %s112 = scalar_select %p109, %s110, %s111
      %p115 = pneg %p109
      %p116 = scmp.eq.s32.totalorder %s16, 2
      %p117 = por %p115, %p116
      %p118 = scmp.ne.s32.totalorder %s110, %s113
      %p119 = scmp.eq.s32.totalorder %s16, 0
      %p120 = por %p118, %p119
      %p121 = scmp.ne.s32.totalorder %s110, %s113
      %p122 = scmp.eq.s32.totalorder %s21, 2
      %p123 = por %p121, %p122
      %p124 = scmp.ne.s32.totalorder %s113, %s114
      %p125 = scmp.eq.s32.totalorder %s21, 0
      %p126 = por %p124, %p125
      %p127 = scmp.ne.s32.totalorder %s113, %s114
      %p128 = scmp.eq.s32.totalorder %s22, 2
      %p129 = por %p127, %p128
      %p131 = scmp.ne.s32.totalorder %s114, %s130
      %p132 = scmp.eq.s32.totalorder %s22, 0
      %p133 = por %p131, %p132
      %p134 = scmp.le.s32.totalorder 1, %s16
      %p135 = scmp.lt.s32.totalorder %s16, 4
      %p136 = pnand %p134, %p135
      %p137 = pneg %p136
      // Predicated region
      $region9: #{tpu_custom_call.1} parent=5 // pred_check
        _
      $region10: #{tpu_custom_call.1} parent=5 // pred_check_branch
        %139 = sbr.rel (%p136) target = $region12
      $region11: #{tpu_custom_call.1} parent=5 // pred_region
        %s140 = ssub.s32 %s16, 1
        // Predicated region
        $region13: #{tpu_custom_call.1} parent=11 // pred_check
          %p141 = pneg %p77
        $region14: #{tpu_custom_call.1} parent=11 // pred_check_branch
          %143 = sbr.rel (%p141) target = $region16
        $region15: #{tpu_custom_call.1} parent=11 // pred_region
          %s145 = ssub.s32 6144, 6144
          %146 = vsyncadd [#allocation7], %s145
          %s147 = sshll.u32 [#allocation6], 4
          %s148 = int_to_ptr.vmem [resolvable:$true] %s147
          %153 = dma.hbm_to_vmem [thread:$0]  %s1, 6144, %s148, [#allocation7], 384, 384, 24
        $region16: #{tpu_custom_call.1} parent=11 // pred_fallthru
          _
        // Predicated region
        $region17: #{tpu_custom_call.1} parent=11 // pred_check
          %p154 = pneg %p98
        $region18: #{tpu_custom_call.1} parent=11 // pred_check_branch
          %156 = sbr.rel (%p154) target = $region20
        $region19: #{tpu_custom_call.1} parent=11 // pred_region
          _
        $region20: #{tpu_custom_call.1} parent=11 // pred_fallthru
          _
      $region12: #{tpu_custom_call.1} parent=5 // pred_fallthru
        _
      %p157 = scmp.lt.s32.totalorder %s16, 3
      // Predicated region
      $region21: #{tpu_custom_call.1} parent=5 // pred_check
        %p158 = pneg %p157
      $region22: #{tpu_custom_call.1} parent=5 // pred_check_branch
        %160 = sbr.rel (%p158) target = $region24
      $region23: #{tpu_custom_call.1} parent=5 // pred_region
        // Predicated region
        $region25: #{tpu_custom_call.1} parent=23 // pred_check
          %p161 = pneg %p50
        $region26: #{tpu_custom_call.1} parent=23 // pred_check_branch
          %163 = sbr.rel (%p161) target = $region28
        $region27: #{tpu_custom_call.1} parent=23 // pred_region
          %s164 = sand.u32 %s40, 1
          %s165 = scalar_lea.sflag [#allocation4], %s164
          %s166 = sand.u32 %s40, 1
          %s167 = smul.addr %s166, 192
          %s168 = scalar_lea.vmem [#allocation3], %s167
          %s169 = smul.u32 8, %s24
          %s171 = ssub.s32 3072, 3072
          %172 = vsyncadd %s165, %s171
          %s173 = smul.addr %s23, 3
          %s174 = smul.addr %s169, 3
          %s175 = sadd.s32 %s173, %s174
          %s176 = smul.addr %s175, 128
          %s177 = scalar_lea.hbm %s0, %s176
          %s178 = sshll.u32 %s168, 4
          %s179 = int_to_ptr.vmem [resolvable:$true] %s178
          %184 = dma.hbm_to_vmem [thread:$0]  %s177, 3072, %s179, %s165, 384, 384, 24
        $region28: #{tpu_custom_call.1} parent=23 // pred_fallthru
          _
      $region24: #{tpu_custom_call.1} parent=5 // pred_fallthru
        _
      %p185 = scmp.le.s32.totalorder 1, %s16
      %p186 = scmp.lt.s32.totalorder %s16, 4
      %p187 = pnand %p185, %p186
      %p188 = pneg %p187
      // Predicated region
      $region29: #{tpu_custom_call.1} parent=5 // pred_check
        _
      $region30: #{tpu_custom_call.1} parent=5 // pred_check_branch
        %190 = sbr.rel (%p187) target = $region32
      $region31: #{tpu_custom_call.1} parent=5 // pred_region
        %s191 = ssub.s32 %s16, 1
        %s192 = sand.u32 %s43, 1
        %s193 = scalar_lea.sflag [#allocation4], %s192
        %s194 = sand.u32 %s43, 1
        %s195 = smul.addr %s194, 192
        %s196 = scalar_lea.vmem [#allocation3], %s195
        // Predicated region
        $region33: #{tpu_custom_call.1} parent=31 // pred_check
          %p197 = pneg %p56
        $region34: #{tpu_custom_call.1} parent=31 // pred_check_branch
          %199 = sbr.rel (%p197) target = $region36
        $region35: #{tpu_custom_call.1} parent=31 // pred_region
          %200 = dma.done %s193, 3072
        $region36: #{tpu_custom_call.1} parent=31 // pred_fallthru
          _
        // Predicated region
        $region37: #{tpu_custom_call.1} parent=31 // pred_check
          %p201 = pneg %p77
        $region38: #{tpu_custom_call.1} parent=31 // pred_check_branch
          %203 = sbr.rel (%p201) target = $region40
        $region39: #{tpu_custom_call.1} parent=31 // pred_region
          %204 = dma.done [#allocation7], 6144
        $region40: #{tpu_custom_call.1} parent=31 // pred_fallthru
          _
        %s205 = sand.u32 %s43, 1
        %s206 = scalar_lea.sflag [#allocation4], %s205
        %s207 = sand.u32 %s43, 1
        %s208 = smul.addr %s207, 192
        %s209 = scalar_lea.vmem [#allocation3], %s208
        %p210 = pneg %p56
        %p211 = pneg %p53
        %p212 = pneg %p77
        %p213 = pneg %p74
        %p214 = pneg %p98
        %p215 = pneg %p95
        %p216 = pneg %p126
        %p217 = pneg %p123
        %s218 = sand.u32 %s113, 1
        %s219 = scalar_lea.sflag [#allocation5], %s218
        %s220 = sand.u32 %s113, 1
        %s221 = smul.addr %s220, 64
        %s222 = scalar_lea.vmem [#allocation8], %s221
        %s223 = smul.u32 8, %s26
        %s224 = smul.u32 8, %s26
        %p225 = scmp.eq.s32.totalorder %s26, 0
        // Predicated region
        $region41: #{tpu_custom_call.1} parent=31 // pred_check
          %p226 = pneg %p225
        $region42: #{tpu_custom_call.1} parent=31 // pred_check_branch
          %228 = sbr.rel (%p226) target = $region44
        $region43: #{tpu_custom_call.1} parent=31 // pred_region
          %229 = vst [vmem:[#allocation2] sm:$0xff] 0.0
        $region44: #{tpu_custom_call.1} parent=31 // pred_fallthru
          _
        %v230 = vld [vmem:[%s2] sm:$0x1]
        %v232 = vlaneseq
        %v233 = vshrl.u32 %v232, 7
        %v234 = vsub.s32 0, %v233
        %v235 = vrot.slane %v230, %v234
        %v237 = vld [vmem:[#allocation2] sm:$0xff]
        %v238 = vld [vmem:[%s196] sm:$0xff]
        %v239 = vld [vmem:[%s196 + $0x8] sm:$0xff]
        %v240 = vld [vmem:[%s196 + $0x10] sm:$0xff]
        %v241 = vld [vmem:[#allocation6] sm:$0xff]
        %v242 = vld [vmem:[#allocation6 + $0x8] sm:$0xff]
        %v243 = vld [vmem:[#allocation6 + $0x10] sm:$0xff]
        %v244 = vld [vmem:[#allocation6 + $0x18] sm:$0xff]
        %v245 = vld [vmem:[#allocation6 + $0x20] sm:$0xff]
        %v246 = vld [vmem:[#allocation6 + $0x28] sm:$0xff]
        %v247 = vld [vmem:[#allocation6 + $0x30] sm:$0xff]
        %v248 = vld [vmem:[#allocation6 + $0x38] sm:$0xff]
        %v249 = vld [vmem:[#allocation6 + $0x40] sm:$0xff]
        %v250 = vld [vmem:[#allocation6 + $0x48] sm:$0xff]
        %v251 = vld [vmem:[#allocation6 + $0x50] sm:$0xff]
        %v252 = vld [vmem:[#allocation6 + $0x58] sm:$0xff]
        %v253 = vld [vmem:[#allocation6 + $0x60] sm:$0xff]
        %v254 = vld [vmem:[#allocation6 + $0x68] sm:$0xff]
        %v255 = vld [vmem:[#allocation6 + $0x70] sm:$0xff]
        %v256 = vld [vmem:[#allocation6 + $0x78] sm:$0xff]
        %v257 = vld [vmem:[#allocation6 + $0x80] sm:$0xff]
        %v258 = vld [vmem:[#allocation6 + $0x88] sm:$0xff]
        %v259 = vld [vmem:[#allocation6 + $0x90] sm:$0xff]
        %v260 = vld [vmem:[#allocation6 + $0x98] sm:$0xff]
        %v261 = vld [vmem:[#allocation6 + $0xa0] sm:$0xff]
        %v262 = vld [vmem:[#allocation6 + $0xa8] sm:$0xff]
        %v263 = vld [vmem:[#allocation6 + $0xb0] sm:$0xff]
        %v264 = vld [vmem:[#allocation6 + $0xb8] sm:$0xff]
        %v265 = vld [vmem:[#allocation6 + $0xc0] sm:$0xff]
        %v266 = vld [vmem:[#allocation6 + $0xc8] sm:$0xff]
        %v267 = vld [vmem:[#allocation6 + $0xd0] sm:$0xff]
        %v268 = vld [vmem:[#allocation6 + $0xd8] sm:$0xff]
        %v269 = vld [vmem:[#allocation6 + $0xe0] sm:$0xff]
        %v270 = vld [vmem:[#allocation6 + $0xe8] sm:$0xff]
        %v271 = vld [vmem:[#allocation6 + $0xf0] sm:$0xff]
        %v272 = vld [vmem:[#allocation6 + $0xf8] sm:$0xff]
        %v273 = vld [vmem:[#allocation6 + $0x100] sm:$0xff]
        %v274 = vld [vmem:[#allocation6 + $0x108] sm:$0xff]
        %v275 = vld [vmem:[#allocation6 + $0x110] sm:$0xff]
        %v276 = vld [vmem:[#allocation6 + $0x118] sm:$0xff]
        %v277 = vld [vmem:[#allocation6 + $0x120] sm:$0xff]
        %v278 = vld [vmem:[#allocation6 + $0x128] sm:$0xff]
        %v279 = vld [vmem:[#allocation6 + $0x130] sm:$0xff]
        %v280 = vld [vmem:[#allocation6 + $0x138] sm:$0xff]
        %v281 = vld [vmem:[#allocation6 + $0x140] sm:$0xff]
        %v282 = vld [vmem:[#allocation6 + $0x148] sm:$0xff]
        %v283 = vld [vmem:[#allocation6 + $0x150] sm:$0xff]
        %v284 = vld [vmem:[#allocation6 + $0x158] sm:$0xff]
        %v285 = vld [vmem:[#allocation6 + $0x160] sm:$0xff]
        %v286 = vld [vmem:[#allocation6 + $0x168] sm:$0xff]
        %v287 = vld [vmem:[#allocation6 + $0x170] sm:$0xff]
        %v288 = vld [vmem:[#allocation6 + $0x178] sm:$0xff]
        %289 = vmatprep.subr.mxu0 %v287
        %290 = vmatpush1.msra.mxu0 %v286
        %291 = vmatprep.subr.mxu0 %v284
        %292 = vmatpush1.msra.mxu0 %v283
        %293 = vmatprep.subr.mxu0 %v281
        %294 = vmatpush1.msra.mxu0 %v280
        %295 = vmatprep.subr.mxu0 %v278
        %296 = vmatpush1.msra.mxu0 %v277
        %297 = vmatprep.subr.mxu0 %v275
        %298 = vmatpush1.msra.mxu0 %v274
        %299 = vmatprep.subr.mxu0 %v272
        %300 = vmatpush1.msra.mxu0 %v271
        %301 = vmatprep.subr.mxu0 %v269
        %302 = vmatpush1.msra.mxu0 %v268
        %303 = vmatprep.subr.mxu0 %v266
        %304 = vmatpush1.msra.mxu0 %v265
        %305 = vmatprep.subr.mxu0 %v263
        %306 = vmatpush1.msra.mxu0 %v262
        %307 = vmatprep.subr.mxu0 %v260
        %308 = vmatpush1.msra.mxu0 %v259
        %309 = vmatprep.subr.mxu0 %v257
        %310 = vmatpush1.msra.mxu0 %v256
        %311 = vmatprep.subr.mxu0 %v254
        %312 = vmatpush1.msra.mxu0 %v253
        %313 = vmatprep.subr.mxu0 %v251
        %314 = vmatpush1.msra.mxu0 %v250
        %315 = vmatprep.subr.mxu0 %v248
        %316 = vmatpush1.msra.mxu0 %v247
        %317 = vmatprep.subr.mxu0 %v245
        %318 = vmatpush1.msra.mxu0 %v244
        %319 = vmatprep.subr.mxu0 %v242
        %320 = vmatpush1.msra.mxu0 %v241
        %321 = vmatprep.subr.mxu0 0.0
        %322 = vmatpush2.msra.mxu0 0.0
        %323 = vmatprep.subr.mxu0 0.0
        %324 = vmatpush2.msra.mxu0 0.0
        %325 = vmatprep.subr.mxu0 0.0
        %326 = vmatpush2.msra.mxu0 0.0
        %327 = vmatprep.subr.mxu0 0.0
        %328 = vmatpush2.msra.mxu0 0.0
        %329 = vmatprep.subr.mxu0 0.0
        %330 = vmatpush2.msra.mxu0 0.0
        %331 = vmatprep.subr.mxu0 0.0
        %332 = vmatpush2.msra.mxu0 0.0
        %333 = vmatprep.subr.mxu0 0.0
        %334 = vmatpush2.msra.mxu0 0.0
        %335 = vmatprep.subr.mxu0 0.0
        %336 = vmatpush2.msra.mxu0 0.0
        %337 = vmatprep.subr.mxu0 0.0
        %338 = vmatpush2.msra.mxu0 0.0
        %339 = vmatprep.subr.mxu0 0.0
        %340 = vmatpush2.msra.mxu0 0.0
        %341 = vmatprep.subr.mxu0 0.0
        %342 = vmatpush2.msra.mxu0 0.0
        %343 = vmatprep.subr.mxu0 0.0
        %344 = vmatpush2.msra.mxu0 0.0
        %345 = vmatprep.subr.mxu0 0.0
        %346 = vmatpush2.msra.mxu0 0.0
        %347 = vmatprep.subr.mxu0 0.0
        %348 = vmatpush2.msra.mxu0 0.0
        %349 = vmatprep.subr.mxu0 0.0
        %350 = vmatpush2.msra.mxu0 0.0
        %351 = vmatprep.subr.mxu0 0.0
        %352 = vmatpush2.msra.mxu0 0.0
        %353 = vmatprep.mubr.f32.mxu0 0.0
        %354 = vmatmul.mubr.f32.gmra.mxu0 %v237
        %v355 = vpop.f32.mrf.mxu0
        %v356 = vadd.f32 0.0, %v355
        %v357 = vpop.f32.mrf.mxu0
        %v358 = vadd.f32 0.0, %v357
        %359 = vdwg.mxu0
        %360 = vmatprep.subr.mxu0 0.0
        %361 = vmatpush1.msra.mxu0 %v288
        %362 = vmatprep.subr.mxu0 0.0
        %363 = vmatpush1.msra.mxu0 %v285
        %364 = vmatprep.subr.mxu0 0.0
        %365 = vmatpush1.msra.mxu0 %v282
        %366 = vmatprep.subr.mxu0 0.0
        %367 = vmatpush1.msra.mxu0 %v279
        %368 = vmatprep.subr.mxu0 0.0
        %369 = vmatpush1.msra.mxu0 %v276
        %370 = vmatprep.subr.mxu0 0.0
        %371 = vmatpush1.msra.mxu0 %v273
        %372 = vmatprep.subr.mxu0 0.0
        %373 = vmatpush1.msra.mxu0 %v270
        %374 = vmatprep.subr.mxu0 0.0
        %375 = vmatpush1.msra.mxu0 %v267
        %376 = vmatprep.subr.mxu0 0.0
        %377 = vmatpush1.msra.mxu0 %v264
        %378 = vmatprep.subr.mxu0 0.0
        %379 = vmatpush1.msra.mxu0 %v261
        %380 = vmatprep.subr.mxu0 0.0
        %381 = vmatpush1.msra.mxu0 %v258
        %382 = vmatprep.subr.mxu0 0.0
        %383 = vmatpush1.msra.mxu0 %v255
        %384 = vmatprep.subr.mxu0 0.0
        %385 = vmatpush1.msra.mxu0 %v252
        %386 = vmatprep.subr.mxu0 0.0
        %387 = vmatpush1.msra.mxu0 %v249
        %388 = vmatprep.subr.mxu0 0.0
        %389 = vmatpush1.msra.mxu0 %v246
        %390 = vmatprep.subr.mxu0 0.0
        %391 = vmatpush1.msra.mxu0 %v243
        %392 = vmatprep.subr.mxu0 0.0
        %393 = vmatpush2.msra.mxu0 0.0
        %394 = vmatprep.subr.mxu0 0.0
        %395 = vmatpush2.msra.mxu0 0.0
        %396 = vmatprep.subr.mxu0 0.0
        %397 = vmatpush2.msra.mxu0 0.0
        %398 = vmatprep.subr.mxu0 0.0
        %399 = vmatpush2.msra.mxu0 0.0
        %400 = vmatprep.subr.mxu0 0.0
        %401 = vmatpush2.msra.mxu0 0.0
        %402 = vmatprep.subr.mxu0 0.0
        %403 = vmatpush2.msra.mxu0 0.0
        %404 = vmatprep.subr.mxu0 0.0
        %405 = vmatpush2.msra.mxu0 0.0
        %406 = vmatprep.subr.mxu0 0.0
        %407 = vmatpush2.msra.mxu0 0.0
        %408 = vmatprep.subr.mxu0 0.0
        %409 = vmatpush2.msra.mxu0 0.0
        %410 = vmatprep.subr.mxu0 0.0
        %411 = vmatpush2.msra.mxu0 0.0
        %412 = vmatprep.subr.mxu0 0.0
        %413 = vmatpush2.msra.mxu0 0.0
        %414 = vmatprep.subr.mxu0 0.0
        %415 = vmatpush2.msra.mxu0 0.0
        %416 = vmatprep.subr.mxu0 0.0
        %417 = vmatpush2.msra.mxu0 0.0
        %418 = vmatprep.subr.mxu0 0.0
        %419 = vmatpush2.msra.mxu0 0.0
        %420 = vmatprep.subr.mxu0 0.0
        %421 = vmatpush2.msra.mxu0 0.0
        %422 = vmatprep.subr.mxu0 0.0
        %423 = vmatpush2.msra.mxu0 0.0
        %424 = vmatprep.mubr.f32.mxu0 0.0
        %425 = vmatmul.mubr.f32.gmra.mxu0 %v237
        %v426 = vpop.f32.mrf.mxu0
        %v427 = vadd.f32 0.0, %v426
        %v428 = vpop.f32.mrf.mxu0
        %429 = vdwg.mxu0
        %v430 = vadd.f32 %v238, %v356
        %v431 = vxor.u32 %v430, 2147483648
        %v432 = vmul.f32 %v431, 1.442695
        %v433 = vpow.pop %v432
        %v434 = vadd.f32 %v433, 1.0
        %v435 = vrcp.pop %v434
        %v436 = vmul.f32 1.0, %v435
        %v437 = vadd.f32 %v239, %v358
        %v438 = vxor.u32 %v437, 2147483648
        %v439 = vmul.f32 %v438, 1.442695
        %v440 = vpow.pop %v439
        %v441 = vadd.f32 %v440, 1.0
        %v442 = vrcp.pop %v441
        %v443 = vmul.f32 1.0, %v442
        %v444 = vadd.f32 %v427, %v235
        %v445 = vmul.f32 %v436, %v444
        %v446 = vadd.f32 %v240, %v445
        %v447 = vtanh.pop %v446
        %v448 = vsub.f32 %v237, %v447
        %v449 = vmul.f32 %v443, %v448
        %v450 = vadd.f32 %v447, %v449
        %451 = vst [vmem:[%s222] sm:$0xff] %v450
        %s452 = scalar_lea.vmem %s196, 24 [#allocation3]
        %v453 = vld [vmem:[%s452] sm:$0xff]
        %v454 = vld [vmem:[%s452 + $0x8] sm:$0xff]
        %v455 = vld [vmem:[%s452 + $0x10] sm:$0xff]
        %v456 = vld [vmem:[#allocation6] sm:$0xff]
        %v457 = vld [vmem:[#allocation6 + $0x8] sm:$0xff]
        %v458 = vld [vmem:[#allocation6 + $0x10] sm:$0xff]
        %v459 = vld [vmem:[#allocation6 + $0x18] sm:$0xff]
        %v460 = vld [vmem:[#allocation6 + $0x20] sm:$0xff]
        %v461 = vld [vmem:[#allocation6 + $0x28] sm:$0xff]
        %v462 = vld [vmem:[#allocation6 + $0x30] sm:$0xff]
        %v463 = vld [vmem:[#allocation6 + $0x38] sm:$0xff]
        %v464 = vld [vmem:[#allocation6 + $0x40] sm:$0xff]
        %v465 = vld [vmem:[#allocation6 + $0x48] sm:$0xff]
        %v466 = vld [vmem:[#allocation6 + $0x50] sm:$0xff]
        %v467 = vld [vmem:[#allocation6 + $0x58] sm:$0xff]
        %v468 = vld [vmem:[#allocation6 + $0x60] sm:$0xff]
        %v469 = vld [vmem:[#allocation6 + $0x68] sm:$0xff]
        %v470 = vld [vmem:[#allocation6 + $0x70] sm:$0xff]
        %v471 = vld [vmem:[#allocation6 + $0x78] sm:$0xff]
        %v472 = vld [vmem:[#allocation6 + $0x80] sm:$0xff]
        %v473 = vld [vmem:[#allocation6 + $0x88] sm:$0xff]
        %v474 = vld [vmem:[#allocation6 + $0x90] sm:$0xff]
        %v475 = vld [vmem:[#allocation6 + $0x98] sm:$0xff]
        %v476 = vld [vmem:[#allocation6 + $0xa0] sm:$0xff]
        %v477 = vld [vmem:[#allocation6 + $0xa8] sm:$0xff]
        %v478 = vld [vmem:[#allocation6 + $0xb0] sm:$0xff]
        %v479 = vld [vmem:[#allocation6 + $0xb8] sm:$0xff]
        %v480 = vld [vmem:[#allocation6 + $0xc0] sm:$0xff]
        %v481 = vld [vmem:[#allocation6 + $0xc8] sm:$0xff]
        %v482 = vld [vmem:[#allocation6 + $0xd0] sm:$0xff]
        %v483 = vld [vmem:[#allocation6 + $0xd8] sm:$0xff]
        %v484 = vld [vmem:[#allocation6 + $0xe0] sm:$0xff]
        %v485 = vld [vmem:[#allocation6 + $0xe8] sm:$0xff]
        %v486 = vld [vmem:[#allocation6 + $0xf0] sm:$0xff]
        %v487 = vld [vmem:[#allocation6 + $0xf8] sm:$0xff]
        %v488 = vld [vmem:[#allocation6 + $0x100] sm:$0xff]
        %v489 = vld [vmem:[#allocation6 + $0x108] sm:$0xff]
        %v490 = vld [vmem:[#allocation6 + $0x110] sm:$0xff]
        %v491 = vld [vmem:[#allocation6 + $0x118] sm:$0xff]
        %v492 = vld [vmem:[#allocation6 + $0x120] sm:$0xff]
        %v493 = vld [vmem:[#allocation6 + $0x128] sm:$0xff]
        %v494 = vld [vmem:[#allocation6 + $0x130] sm:$0xff]
        %v495 = vld [vmem:[#allocation6 + $0x138] sm:$0xff]
        %v496 = vld [vmem:[#allocation6 + $0x140] sm:$0xff]
        %v497 = vld [vmem:[#allocation6 + $0x148] sm:$0xff]
        %v498 = vld [vmem:[#allocation6 + $0x150] sm:$0xff]
        %v499 = vld [vmem:[#allocation6 + $0x158] sm:$0xff]
        %v500 = vld [vmem:[#allocation6 + $0x160] sm:$0xff]
        %v501 = vld [vmem:[#allocation6 + $0x168] sm:$0xff]
        %v502 = vld [vmem:[#allocation6 + $0x170] sm:$0xff]
        %v503 = vld [vmem:[#allocation6 + $0x178] sm:$0xff]
        %504 = vmatprep.subr.mxu0 %v502
        %505 = vmatpush1.msra.mxu0 %v501
        %506 = vmatprep.subr.mxu0 %v499
        %507 = vmatpush1.msra.mxu0 %v498
        %508 = vmatprep.subr.mxu0 %v496
        %509 = vmatpush1.msra.mxu0 %v495
        %510 = vmatprep.subr.mxu0 %v493
        %511 = vmatpush1.msra.mxu0 %v492
        %512 = vmatprep.subr.mxu0 %v490
        %513 = vmatpush1.msra.mxu0 %v489
        %514 = vmatprep.subr.mxu0 %v487
        %515 = vmatpush1.msra.mxu0 %v486
        %516 = vmatprep.subr.mxu0 %v484
        %517 = vmatpush1.msra.mxu0 %v483
        %518 = vmatprep.subr.mxu0 %v481
        %519 = vmatpush1.msra.mxu0 %v480
        %520 = vmatprep.subr.mxu0 %v478
        %521 = vmatpush1.msra.mxu0 %v477
        %522 = vmatprep.subr.mxu0 %v475
        %523 = vmatpush1.msra.mxu0 %v474
        %524 = vmatprep.subr.mxu0 %v472
        %525 = vmatpush1.msra.mxu0 %v471
        %526 = vmatprep.subr.mxu0 %v469
        %527 = vmatpush1.msra.mxu0 %v468
        %528 = vmatprep.subr.mxu0 %v466
        %529 = vmatpush1.msra.mxu0 %v465
        %530 = vmatprep.subr.mxu0 %v463
        %531 = vmatpush1.msra.mxu0 %v462
        %532 = vmatprep.subr.mxu0 %v460
        %533 = vmatpush1.msra.mxu0 %v459
        %534 = vmatprep.subr.mxu0 %v457
        %535 = vmatpush1.msra.mxu0 %v456
        %536 = vmatprep.subr.mxu0 0.0
        %537 = vmatpush2.msra.mxu0 0.0
        %538 = vmatprep.subr.mxu0 0.0
        %539 = vmatpush2.msra.mxu0 0.0
        %540 = vmatprep.subr.mxu0 0.0
        %541 = vmatpush2.msra.mxu0 0.0
        %542 = vmatprep.subr.mxu0 0.0
        %543 = vmatpush2.msra.mxu0 0.0
        %544 = vmatprep.subr.mxu0 0.0
        %545 = vmatpush2.msra.mxu0 0.0
        %546 = vmatprep.subr.mxu0 0.0
        %547 = vmatpush2.msra.mxu0 0.0
        %548 = vmatprep.subr.mxu0 0.0
        %549 = vmatpush2.msra.mxu0 0.0
        %550 = vmatprep.subr.mxu0 0.0
        %551 = vmatpush2.msra.mxu0 0.0
        %552 = vmatprep.subr.mxu0 0.0
        %553 = vmatpush2.msra.mxu0 0.0
        %554 = vmatprep.subr.mxu0 0.0
        %555 = vmatpush2.msra.mxu0 0.0
        %556 = vmatprep.subr.mxu0 0.0
        %557 = vmatpush2.msra.mxu0 0.0
        %558 = vmatprep.subr.mxu0 0.0
        %559 = vmatpush2.msra.mxu0 0.0
        %560 = vmatprep.subr.mxu0 0.0
        %561 = vmatpush2.msra.mxu0 0.0
        %562 = vmatprep.subr.mxu0 0.0
        %563 = vmatpush2.msra.mxu0 0.0
        %564 = vmatprep.subr.mxu0 0.0
        %565 = vmatpush2.msra.mxu0 0.0
        %566 = vmatprep.subr.mxu0 0.0
        %567 = vmatpush2.msra.mxu0 0.0
        %568 = vmatprep.mubr.f32.mxu0 0.0
        %569 = vmatmul.mubr.f32.gmra.mxu0 %v450
        %v570 = vpop.f32.mrf.mxu0
        %v571 = vadd.f32 0.0, %v570
        %v572 = vpop.f32.mrf.mxu0
        %v573 = vadd.f32 0.0, %v572
        %574 = vdwg.mxu0
        %575 = vmatprep.subr.mxu0 0.0
        %576 = vmatpush1.msra.mxu0 %v503
        %577 = vmatprep.subr.mxu0 0.0
        %578 = vmatpush1.msra.mxu0 %v500
        %579 = vmatprep.subr.mxu0 0.0
        %580 = vmatpush1.msra.mxu0 %v497
        %581 = vmatprep.subr.mxu0 0.0
        %582 = vmatpush1.msra.mxu0 %v494
        %583 = vmatprep.subr.mxu0 0.0
        %584 = vmatpush1.msra.mxu0 %v491
        %585 = vmatprep.subr.mxu0 0.0
        %586 = vmatpush1.msra.mxu0 %v488
        %587 = vmatprep.subr.mxu0 0.0
        %588 = vmatpush1.msra.mxu0 %v485
        %589 = vmatprep.subr.mxu0 0.0
        %590 = vmatpush1.msra.mxu0 %v482
        %591 = vmatprep.subr.mxu0 0.0
        %592 = vmatpush1.msra.mxu0 %v479
        %593 = vmatprep.subr.mxu0 0.0
        %594 = vmatpush1.msra.mxu0 %v476
        %595 = vmatprep.subr.mxu0 0.0
        %596 = vmatpush1.msra.mxu0 %v473
        %597 = vmatprep.subr.mxu0 0.0
        %598 = vmatpush1.msra.mxu0 %v470
        %599 = vmatprep.subr.mxu0 0.0
        %600 = vmatpush1.msra.mxu0 %v467
        %601 = vmatprep.subr.mxu0 0.0
        %602 = vmatpush1.msra.mxu0 %v464
        %603 = vmatprep.subr.mxu0 0.0
        %604 = vmatpush1.msra.mxu0 %v461
        %605 = vmatprep.subr.mxu0 0.0
        %606 = vmatpush1.msra.mxu0 %v458
        %607 = vmatprep.subr.mxu0 0.0
        %608 = vmatpush2.msra.mxu0 0.0
        %609 = vmatprep.subr.mxu0 0.0
        %610 = vmatpush2.msra.mxu0 0.0
        %611 = vmatprep.subr.mxu0 0.0
        %612 = vmatpush2.msra.mxu0 0.0
        %613 = vmatprep.subr.mxu0 0.0
        %614 = vmatpush2.msra.mxu0 0.0
        %615 = vmatprep.subr.mxu0 0.0
        %616 = vmatpush2.msra.mxu0 0.0
        %617 = vmatprep.subr.mxu0 0.0
        %618 = vmatpush2.msra.mxu0 0.0
        %619 = vmatprep.subr.mxu0 0.0
        %620 = vmatpush2.msra.mxu0 0.0
        %621 = vmatprep.subr.mxu0 0.0
        %622 = vmatpush2.msra.mxu0 0.0
        %623 = vmatprep.subr.mxu0 0.0
        %624 = vmatpush2.msra.mxu0 0.0
        %625 = vmatprep.subr.mxu0 0.0
        %626 = vmatpush2.msra.mxu0 0.0
        %627 = vmatprep.subr.mxu0 0.0
        %628 = vmatpush2.msra.mxu0 0.0
        %629 = vmatprep.subr.mxu0 0.0
        %630 = vmatpush2.msra.mxu0 0.0
        %631 = vmatprep.subr.mxu0 0.0
        %632 = vmatpush2.msra.mxu0 0.0
        %633 = vmatprep.subr.mxu0 0.0
        %634 = vmatpush2.msra.mxu0 0.0
        %635 = vmatprep.subr.mxu0 0.0
        %636 = vmatpush2.msra.mxu0 0.0
        %637 = vmatprep.subr.mxu0 0.0
        %638 = vmatpush2.msra.mxu0 0.0
        %639 = vmatprep.mubr.f32.mxu0 0.0
        %640 = vmatmul.mubr.f32.gmra.mxu0 %v450
        %v641 = vpop.f32.mrf.mxu0
        %v642 = vadd.f32 0.0, %v641
        %v643 = vpop.f32.mrf.mxu0
        %644 = vdwg.mxu0
        %v645 = vadd.f32 %v453, %v571
        %v646 = vxor.u32 %v645, 2147483648
        %v647 = vmul.f32 %v646, 1.442695
        %v648 = vpow.pop %v647
        %v649 = vadd.f32 %v648, 1.0
        %v650 = vrcp.pop %v649
        %v651 = vmul.f32 1.0, %v650
        %v652 = vadd.f32 %v454, %v573
        %v653 = vxor.u32 %v652, 2147483648
        %v654 = vmul.f32 %v653, 1.442695
        %v655 = vpow.pop %v654
        %v656 = vadd.f32 %v655, 1.0
        %v657 = vrcp.pop %v656
        %v658 = vmul.f32 1.0, %v657
        %v659 = vadd.f32 %v642, %v235
        %v660 = vmul.f32 %v651, %v659
        %v661 = vadd.f32 %v455, %v660
        %v662 = vtanh.pop %v661
        %v663 = vsub.f32 %v450, %v662
        %v664 = vmul.f32 %v658, %v663
        %v665 = vadd.f32 %v662, %v664
        %s666 = scalar_lea.vmem %s222, 8 [#allocation8]
        %667 = vst [vmem:[%s666] sm:$0xff] %v665
        %s668 = scalar_lea.vmem %s196, 48 [#allocation3]
        %v669 = vld [vmem:[%s668] sm:$0xff]
        %v670 = vld [vmem:[%s668 + $0x8] sm:$0xff]
        %v671 = vld [vmem:[%s668 + $0x10] sm:$0xff]
        %v672 = vld [vmem:[#allocation6] sm:$0xff]
        %v673 = vld [vmem:[#allocation6 + $0x8] sm:$0xff]
        %v674 = vld [vmem:[#allocation6 + $0x10] sm:$0xff]
        %v675 = vld [vmem:[#allocation6 + $0x18] sm:$0xff]
        %v676 = vld [vmem:[#allocation6 + $0x20] sm:$0xff]
        %v677 = vld [vmem:[#allocation6 + $0x28] sm:$0xff]
        %v678 = vld [vmem:[#allocation6 + $0x30] sm:$0xff]
        %v679 = vld [vmem:[#allocation6 + $0x38] sm:$0xff]
        %v680 = vld [vmem:[#allocation6 + $0x40] sm:$0xff]
        %v681 = vld [vmem:[#allocation6 + $0x48] sm:$0xff]
        %v682 = vld [vmem:[#allocation6 + $0x50] sm:$0xff]
        %v683 = vld [vmem:[#allocation6 + $0x58] sm:$0xff]
        %v684 = vld [vmem:[#allocation6 + $0x60] sm:$0xff]
        %v685 = vld [vmem:[#allocation6 + $0x68] sm:$0xff]
        %v686 = vld [vmem:[#allocation6 + $0x70] sm:$0xff]
        %v687 = vld [vmem:[#allocation6 + $0x78] sm:$0xff]
        %v688 = vld [vmem:[#allocation6 + $0x80] sm:$0xff]
        %v689 = vld [vmem:[#allocation6 + $0x88] sm:$0xff]
        %v690 = vld [vmem:[#allocation6 + $0x90] sm:$0xff]
        %v691 = vld [vmem:[#allocation6 + $0x98] sm:$0xff]
        %v692 = vld [vmem:[#allocation6 + $0xa0] sm:$0xff]
        %v693 = vld [vmem:[#allocation6 + $0xa8] sm:$0xff]
        %v694 = vld [vmem:[#allocation6 + $0xb0] sm:$0xff]
        %v695 = vld [vmem:[#allocation6 + $0xb8] sm:$0xff]
        %v696 = vld [vmem:[#allocation6 + $0xc0] sm:$0xff]
        %v697 = vld [vmem:[#allocation6 + $0xc8] sm:$0xff]
        %v698 = vld [vmem:[#allocation6 + $0xd0] sm:$0xff]
        %v699 = vld [vmem:[#allocation6 + $0xd8] sm:$0xff]
        %v700 = vld [vmem:[#allocation6 + $0xe0] sm:$0xff]
        %v701 = vld [vmem:[#allocation6 + $0xe8] sm:$0xff]
        %v702 = vld [vmem:[#allocation6 + $0xf0] sm:$0xff]
        %v703 = vld [vmem:[#allocation6 + $0xf8] sm:$0xff]
        %v704 = vld [vmem:[#allocation6 + $0x100] sm:$0xff]
        %v705 = vld [vmem:[#allocation6 + $0x108] sm:$0xff]
        %v706 = vld [vmem:[#allocation6 + $0x110] sm:$0xff]
        %v707 = vld [vmem:[#allocation6 + $0x118] sm:$0xff]
        %v708 = vld [vmem:[#allocation6 + $0x120] sm:$0xff]
        %v709 = vld [vmem:[#allocation6 + $0x128] sm:$0xff]
        %v710 = vld [vmem:[#allocation6 + $0x130] sm:$0xff]
        %v711 = vld [vmem:[#allocation6 + $0x138] sm:$0xff]
        %v712 = vld [vmem:[#allocation6 + $0x140] sm:$0xff]
        %v713 = vld [vmem:[#allocation6 + $0x148] sm:$0xff]
        %v714 = vld [vmem:[#allocation6 + $0x150] sm:$0xff]
        %v715 = vld [vmem:[#allocation6 + $0x158] sm:$0xff]
        %v716 = vld [vmem:[#allocation6 + $0x160] sm:$0xff]
        %v717 = vld [vmem:[#allocation6 + $0x168] sm:$0xff]
        %v718 = vld [vmem:[#allocation6 + $0x170] sm:$0xff]
        %v719 = vld [vmem:[#allocation6 + $0x178] sm:$0xff]
        %720 = vmatprep.subr.mxu0 %v718
        %721 = vmatpush1.msra.mxu0 %v717
        %722 = vmatprep.subr.mxu0 %v715
        %723 = vmatpush1.msra.mxu0 %v714
        %724 = vmatprep.subr.mxu0 %v712
        %725 = vmatpush1.msra.mxu0 %v711
        %726 = vmatprep.subr.mxu0 %v709
        %727 = vmatpush1.msra.mxu0 %v708
        %728 = vmatprep.subr.mxu0 %v706
        %729 = vmatpush1.msra.mxu0 %v705
        %730 = vmatprep.subr.mxu0 %v703
        %731 = vmatpush1.msra.mxu0 %v702
        %732 = vmatprep.subr.mxu0 %v700
        %733 = vmatpush1.msra.mxu0 %v699
        %734 = vmatprep.subr.mxu0 %v697
        %735 = vmatpush1.msra.mxu0 %v696
        %736 = vmatprep.subr.mxu0 %v694
        %737 = vmatpush1.msra.mxu0 %v693
        %738 = vmatprep.subr.mxu0 %v691
        %739 = vmatpush1.msra.mxu0 %v690
        %740 = vmatprep.subr.mxu0 %v688
        %741 = vmatpush1.msra.mxu0 %v687
        %742 = vmatprep.subr.mxu0 %v685
        %743 = vmatpush1.msra.mxu0 %v684
        %744 = vmatprep.subr.mxu0 %v682
        %745 = vmatpush1.msra.mxu0 %v681
        %746 = vmatprep.subr.mxu0 %v679
        %747 = vmatpush1.msra.mxu0 %v678
        %748 = vmatprep.subr.mxu0 %v676
        %749 = vmatpush1.msra.mxu0 %v675
        %750 = vmatprep.subr.mxu0 %v673
        %751 = vmatpush1.msra.mxu0 %v672
        %752 = vmatprep.subr.mxu0 0.0
        %753 = vmatpush2.msra.mxu0 0.0
        %754 = vmatprep.subr.mxu0 0.0
        %755 = vmatpush2.msra.mxu0 0.0
        %756 = vmatprep.subr.mxu0 0.0
        %757 = vmatpush2.msra.mxu0 0.0
        %758 = vmatprep.subr.mxu0 0.0
        %759 = vmatpush2.msra.mxu0 0.0
        %760 = vmatprep.subr.mxu0 0.0
        %761 = vmatpush2.msra.mxu0 0.0
        %762 = vmatprep.subr.mxu0 0.0
        %763 = vmatpush2.msra.mxu0 0.0
        %764 = vmatprep.subr.mxu0 0.0
        %765 = vmatpush2.msra.mxu0 0.0
        %766 = vmatprep.subr.mxu0 0.0
        %767 = vmatpush2.msra.mxu0 0.0
        %768 = vmatprep.subr.mxu0 0.0
        %769 = vmatpush2.msra.mxu0 0.0
        %770 = vmatprep.subr.mxu0 0.0
        %771 = vmatpush2.msra.mxu0 0.0
        %772 = vmatprep.subr.mxu0 0.0
        %773 = vmatpush2.msra.mxu0 0.0
        %774 = vmatprep.subr.mxu0 0.0
        %775 = vmatpush2.msra.mxu0 0.0
        %776 = vmatprep.subr.mxu0 0.0
        %777 = vmatpush2.msra.mxu0 0.0
        %778 = vmatprep.subr.mxu0 0.0
        %779 = vmatpush2.msra.mxu0 0.0
        %780 = vmatprep.subr.mxu0 0.0
        %781 = vmatpush2.msra.mxu0 0.0
        %782 = vmatprep.subr.mxu0 0.0
        %783 = vmatpush2.msra.mxu0 0.0
        %784 = vmatprep.mubr.f32.mxu0 0.0
        %785 = vmatmul.mubr.f32.gmra.mxu0 %v665
        %v786 = vpop.f32.mrf.mxu0
        %v787 = vadd.f32 0.0, %v786
        %v788 = vpop.f32.mrf.mxu0
        %v789 = vadd.f32 0.0, %v788
        %790 = vdwg.mxu0
        %791 = vmatprep.subr.mxu0 0.0
        %792 = vmatpush1.msra.mxu0 %v719
        %793 = vmatprep.subr.mxu0 0.0
        %794 = vmatpush1.msra.mxu0 %v716
        %795 = vmatprep.subr.mxu0 0.0
        %796 = vmatpush1.msra.mxu0 %v713
        %797 = vmatprep.subr.mxu0 0.0
        %798 = vmatpush1.msra.mxu0 %v710
        %799 = vmatprep.subr.mxu0 0.0
        %800 = vmatpush1.msra.mxu0 %v707
        %801 = vmatprep.subr.mxu0 0.0
        %802 = vmatpush1.msra.mxu0 %v704
        %803 = vmatprep.subr.mxu0 0.0
        %804 = vmatpush1.msra.mxu0 %v701
        %805 = vmatprep.subr.mxu0 0.0
        %806 = vmatpush1.msra.mxu0 %v698
        %807 = vmatprep.subr.mxu0 0.0
        %808 = vmatpush1.msra.mxu0 %v695
        %809 = vmatprep.subr.mxu0 0.0
        %810 = vmatpush1.msra.mxu0 %v692
        %811 = vmatprep.subr.mxu0 0.0
        %812 = vmatpush1.msra.mxu0 %v689
        %813 = vmatprep.subr.mxu0 0.0
        %814 = vmatpush1.msra.mxu0 %v686
        %815 = vmatprep.subr.mxu0 0.0
        %816 = vmatpush1.msra.mxu0 %v683
        %817 = vmatprep.subr.mxu0 0.0
        %818 = vmatpush1.msra.mxu0 %v680
        %819 = vmatprep.subr.mxu0 0.0
        %820 = vmatpush1.msra.mxu0 %v677
        %821 = vmatprep.subr.mxu0 0.0
        %822 = vmatpush1.msra.mxu0 %v674
        %823 = vmatprep.subr.mxu0 0.0
        %824 = vmatpush2.msra.mxu0 0.0
        %825 = vmatprep.subr.mxu0 0.0
        %826 = vmatpush2.msra.mxu0 0.0
        %827 = vmatprep.subr.mxu0 0.0
        %828 = vmatpush2.msra.mxu0 0.0
        %829 = vmatprep.subr.mxu0 0.0
        %830 = vmatpush2.msra.mxu0 0.0
        %831 = vmatprep.subr.mxu0 0.0
        %832 = vmatpush2.msra.mxu0 0.0
        %833 = vmatprep.subr.mxu0 0.0
        %834 = vmatpush2.msra.mxu0 0.0
        %835 = vmatprep.subr.mxu0 0.0
        %836 = vmatpush2.msra.mxu0 0.0
        %837 = vmatprep.subr.mxu0 0.0
        %838 = vmatpush2.msra.mxu0 0.0
        %839 = vmatprep.subr.mxu0 0.0
        %840 = vmatpush2.msra.mxu0 0.0
        %841 = vmatprep.subr.mxu0 0.0
        %842 = vmatpush2.msra.mxu0 0.0
        %843 = vmatprep.subr.mxu0 0.0
        %844 = vmatpush2.msra.mxu0 0.0
        %845 = vmatprep.subr.mxu0 0.0
        %846 = vmatpush2.msra.mxu0 0.0
        %847 = vmatprep.subr.mxu0 0.0
        %848 = vmatpush2.msra.mxu0 0.0
        %849 = vmatprep.subr.mxu0 0.0
        %850 = vmatpush2.msra.mxu0 0.0
        %851 = vmatprep.subr.mxu0 0.0
        %852 = vmatpush2.msra.mxu0 0.0
        %853 = vmatprep.subr.mxu0 0.0
        %854 = vmatpush2.msra.mxu0 0.0
        %855 = vmatprep.mubr.f32.mxu0 0.0
        %856 = vmatmul.mubr.f32.gmra.mxu0 %v665
        %v857 = vpop.f32.mrf.mxu0
        %v858 = vadd.f32 0.0, %v857
        %v859 = vpop.f32.mrf.mxu0
        %860 = vdwg.mxu0
        %v861 = vadd.f32 %v669, %v787
        %v862 = vxor.u32 %v861, 2147483648
        %v863 = vmul.f32 %v862, 1.442695
        %v864 = vpow.pop %v863
        %v865 = vadd.f32 %v864, 1.0
        %v866 = vrcp.pop %v865
        %v867 = vmul.f32 1.0, %v866
        %v868 = vadd.f32 %v670, %v789
        %v869 = vxor.u32 %v868, 2147483648
        %v870 = vmul.f32 %v869, 1.442695
        %v871 = vpow.pop %v870
        %v872 = vadd.f32 %v871, 1.0
        %v873 = vrcp.pop %v872
        %v874 = vmul.f32 1.0, %v873
        %v875 = vadd.f32 %v858, %v235
        %v876 = vmul.f32 %v867, %v875
        %v877 = vadd.f32 %v671, %v876
        %v878 = vtanh.pop %v877
        %v879 = vsub.f32 %v665, %v878
        %v880 = vmul.f32 %v874, %v879
        %v881 = vadd.f32 %v878, %v880
        %s882 = scalar_lea.vmem %s222, 16 [#allocation8]
        %883 = vst [vmem:[%s882] sm:$0xff] %v881
        %s884 = scalar_lea.vmem %s196, 72 [#allocation3]
        %v885 = vld [vmem:[%s884] sm:$0xff]
        %v886 = vld [vmem:[%s884 + $0x8] sm:$0xff]
        %v887 = vld [vmem:[%s884 + $0x10] sm:$0xff]
        %v888 = vld [vmem:[#allocation6] sm:$0xff]
        %v889 = vld [vmem:[#allocation6 + $0x8] sm:$0xff]
        %v890 = vld [vmem:[#allocation6 + $0x10] sm:$0xff]
        %v891 = vld [vmem:[#allocation6 + $0x18] sm:$0xff]
        %v892 = vld [vmem:[#allocation6 + $0x20] sm:$0xff]
        %v893 = vld [vmem:[#allocation6 + $0x28] sm:$0xff]
        %v894 = vld [vmem:[#allocation6 + $0x30] sm:$0xff]
        %v895 = vld [vmem:[#allocation6 + $0x38] sm:$0xff]
        %v896 = vld [vmem:[#allocation6 + $0x40] sm:$0xff]
        %v897 = vld [vmem:[#allocation6 + $0x48] sm:$0xff]
        %v898 = vld [vmem:[#allocation6 + $0x50] sm:$0xff]
        %v899 = vld [vmem:[#allocation6 + $0x58] sm:$0xff]
        %v900 = vld [vmem:[#allocation6 + $0x60] sm:$0xff]
        %v901 = vld [vmem:[#allocation6 + $0x68] sm:$0xff]
        %v902 = vld [vmem:[#allocation6 + $0x70] sm:$0xff]
        %v903 = vld [vmem:[#allocation6 + $0x78] sm:$0xff]
        %v904 = vld [vmem:[#allocation6 + $0x80] sm:$0xff]
        %v905 = vld [vmem:[#allocation6 + $0x88] sm:$0xff]
        %v906 = vld [vmem:[#allocation6 + $0x90] sm:$0xff]
        %v907 = vld [vmem:[#allocation6 + $0x98] sm:$0xff]
        %v908 = vld [vmem:[#allocation6 + $0xa0] sm:$0xff]
        %v909 = vld [vmem:[#allocation6 + $0xa8] sm:$0xff]
        %v910 = vld [vmem:[#allocation6 + $0xb0] sm:$0xff]
        %v911 = vld [vmem:[#allocation6 + $0xb8] sm:$0xff]
        %v912 = vld [vmem:[#allocation6 + $0xc0] sm:$0xff]
        %v913 = vld [vmem:[#allocation6 + $0xc8] sm:$0xff]
        %v914 = vld [vmem:[#allocation6 + $0xd0] sm:$0xff]
        %v915 = vld [vmem:[#allocation6 + $0xd8] sm:$0xff]
        %v916 = vld [vmem:[#allocation6 + $0xe0] sm:$0xff]
        %v917 = vld [vmem:[#allocation6 + $0xe8] sm:$0xff]
        %v918 = vld [vmem:[#allocation6 + $0xf0] sm:$0xff]
        %v919 = vld [vmem:[#allocation6 + $0xf8] sm:$0xff]
        %v920 = vld [vmem:[#allocation6 + $0x100] sm:$0xff]
        %v921 = vld [vmem:[#allocation6 + $0x108] sm:$0xff]
        %v922 = vld [vmem:[#allocation6 + $0x110] sm:$0xff]
        %v923 = vld [vmem:[#allocation6 + $0x118] sm:$0xff]
        %v924 = vld [vmem:[#allocation6 + $0x120] sm:$0xff]
        %v925 = vld [vmem:[#allocation6 + $0x128] sm:$0xff]
        %v926 = vld [vmem:[#allocation6 + $0x130] sm:$0xff]
        %v927 = vld [vmem:[#allocation6 + $0x138] sm:$0xff]
        %v928 = vld [vmem:[#allocation6 + $0x140] sm:$0xff]
        %v929 = vld [vmem:[#allocation6 + $0x148] sm:$0xff]
        %v930 = vld [vmem:[#allocation6 + $0x150] sm:$0xff]
        %v931 = vld [vmem:[#allocation6 + $0x158] sm:$0xff]
        %v932 = vld [vmem:[#allocation6 + $0x160] sm:$0xff]
        %v933 = vld [vmem:[#allocation6 + $0x168] sm:$0xff]
        %v934 = vld [vmem:[#allocation6 + $0x170] sm:$0xff]
        %v935 = vld [vmem:[#allocation6 + $0x178] sm:$0xff]
        %936 = vmatprep.subr.mxu0 %v934
        %937 = vmatpush1.msra.mxu0 %v933
        %938 = vmatprep.subr.mxu0 %v931
        %939 = vmatpush1.msra.mxu0 %v930
        %940 = vmatprep.subr.mxu0 %v928
        %941 = vmatpush1.msra.mxu0 %v927
        %942 = vmatprep.subr.mxu0 %v925
        %943 = vmatpush1.msra.mxu0 %v924
        %944 = vmatprep.subr.mxu0 %v922
        %945 = vmatpush1.msra.mxu0 %v921
        %946 = vmatprep.subr.mxu0 %v919
        %947 = vmatpush1.msra.mxu0 %v918
        %948 = vmatprep.subr.mxu0 %v916
        %949 = vmatpush1.msra.mxu0 %v915
        %950 = vmatprep.subr.mxu0 %v913
        %951 = vmatpush1.msra.mxu0 %v912
        %952 = vmatprep.subr.mxu0 %v910
        %953 = vmatpush1.msra.mxu0 %v909
        %954 = vmatprep.subr.mxu0 %v907
        %955 = vmatpush1.msra.mxu0 %v906
        %956 = vmatprep.subr.mxu0 %v904
        %957 = vmatpush1.msra.mxu0 %v903
        %958 = vmatprep.subr.mxu0 %v901
        %959 = vmatpush1.msra.mxu0 %v900
        %960 = vmatprep.subr.mxu0 %v898
        %961 = vmatpush1.msra.mxu0 %v897
        %962 = vmatprep.subr.mxu0 %v895
        %963 = vmatpush1.msra.mxu0 %v894
        %964 = vmatprep.subr.mxu0 %v892
        %965 = vmatpush1.msra.mxu0 %v891
        %966 = vmatprep.subr.mxu0 %v889
        %967 = vmatpush1.msra.mxu0 %v888
        %968 = vmatprep.subr.mxu0 0.0
        %969 = vmatpush2.msra.mxu0 0.0
        %970 = vmatprep.subr.mxu0 0.0
        %971 = vmatpush2.msra.mxu0 0.0
        %972 = vmatprep.subr.mxu0 0.0
        %973 = vmatpush2.msra.mxu0 0.0
        %974 = vmatprep.subr.mxu0 0.0
        %975 = vmatpush2.msra.mxu0 0.0
        %976 = vmatprep.subr.mxu0 0.0
        %977 = vmatpush2.msra.mxu0 0.0
        %978 = vmatprep.subr.mxu0 0.0
        %979 = vmatpush2.msra.mxu0 0.0
        %980 = vmatprep.subr.mxu0 0.0
        %981 = vmatpush2.msra.mxu0 0.0
        %982 = vmatprep.subr.mxu0 0.0
        %983 = vmatpush2.msra.mxu0 0.0
        %984 = vmatprep.subr.mxu0 0.0
        %985 = vmatpush2.msra.mxu0 0.0
        %986 = vmatprep.subr.mxu0 0.0
        %987 = vmatpush2.msra.mxu0 0.0
        %988 = vmatprep.subr.mxu0 0.0
        %989 = vmatpush2.msra.mxu0 0.0
        %990 = vmatprep.subr.mxu0 0.0
        %991 = vmatpush2.msra.mxu0 0.0
        %992 = vmatprep.subr.mxu0 0.0
        %993 = vmatpush2.msra.mxu0 0.0
        %994 = vmatprep.subr.mxu0 0.0
        %995 = vmatpush2.msra.mxu0 0.0
        %996 = vmatprep.subr.mxu0 0.0
        %997 = vmatpush2.msra.mxu0 0.0
        %998 = vmatprep.subr.mxu0 0.0
        %999 = vmatpush2.msra.mxu0 0.0
        %1000 = vmatprep.mubr.f32.mxu0 0.0
        %1001 = vmatmul.mubr.f32.gmra.mxu0 %v881
        %v1002 = vpop.f32.mrf.mxu0
        %v1003 = vadd.f32 0.0, %v1002
        %v1004 = vpop.f32.mrf.mxu0
        %v1005 = vadd.f32 0.0, %v1004
        %1006 = vdwg.mxu0
        %1007 = vmatprep.subr.mxu0 0.0
        %1008 = vmatpush1.msra.mxu0 %v935
        %1009 = vmatprep.subr.mxu0 0.0
        %1010 = vmatpush1.msra.mxu0 %v932
        %1011 = vmatprep.subr.mxu0 0.0
        %1012 = vmatpush1.msra.mxu0 %v929
        %1013 = vmatprep.subr.mxu0 0.0
        %1014 = vmatpush1.msra.mxu0 %v926
        %1015 = vmatprep.subr.mxu0 0.0
        %1016 = vmatpush1.msra.mxu0 %v923
        %1017 = vmatprep.subr.mxu0 0.0
        %1018 = vmatpush1.msra.mxu0 %v920
        %1019 = vmatprep.subr.mxu0 0.0
        %1020 = vmatpush1.msra.mxu0 %v917
        %1021 = vmatprep.subr.mxu0 0.0
        %1022 = vmatpush1.msra.mxu0 %v914
        %1023 = vmatprep.subr.mxu0 0.0
        %1024 = vmatpush1.msra.mxu0 %v911
        %1025 = vmatprep.subr.mxu0 0.0
        %1026 = vmatpush1.msra.mxu0 %v908
        %1027 = vmatprep.subr.mxu0 0.0
        %1028 = vmatpush1.msra.mxu0 %v905
        %1029 = vmatprep.subr.mxu0 0.0
        %1030 = vmatpush1.msra.mxu0 %v902
        %1031 = vmatprep.subr.mxu0 0.0
        %1032 = vmatpush1.msra.mxu0 %v899
        %1033 = vmatprep.subr.mxu0 0.0
        %1034 = vmatpush1.msra.mxu0 %v896
        %1035 = vmatprep.subr.mxu0 0.0
        %1036 = vmatpush1.msra.mxu0 %v893
        %1037 = vmatprep.subr.mxu0 0.0
        %1038 = vmatpush1.msra.mxu0 %v890
        %1039 = vmatprep.subr.mxu0 0.0
        %1040 = vmatpush2.msra.mxu0 0.0
        %1041 = vmatprep.subr.mxu0 0.0
        %1042 = vmatpush2.msra.mxu0 0.0
        %1043 = vmatprep.subr.mxu0 0.0
        %1044 = vmatpush2.msra.mxu0 0.0
        %1045 = vmatprep.subr.mxu0 0.0
        %1046 = vmatpush2.msra.mxu0 0.0
        %1047 = vmatprep.subr.mxu0 0.0
        %1048 = vmatpush2.msra.mxu0 0.0
        %1049 = vmatprep.subr.mxu0 0.0
        %1050 = vmatpush2.msra.mxu0 0.0
        %1051 = vmatprep.subr.mxu0 0.0
        %1052 = vmatpush2.msra.mxu0 0.0
        %1053 = vmatprep.subr.mxu0 0.0
        %1054 = vmatpush2.msra.mxu0 0.0
        %1055 = vmatprep.subr.mxu0 0.0
        %1056 = vmatpush2.msra.mxu0 0.0
        %1057 = vmatprep.subr.mxu0 0.0
        %1058 = vmatpush2.msra.mxu0 0.0
        %1059 = vmatprep.subr.mxu0 0.0
        %1060 = vmatpush2.msra.mxu0 0.0
        %1061 = vmatprep.subr.mxu0 0.0
        %1062 = vmatpush2.msra.mxu0 0.0
        %1063 = vmatprep.subr.mxu0 0.0
        %1064 = vmatpush2.msra.mxu0 0.0
        %1065 = vmatprep.subr.mxu0 0.0
        %1066 = vmatpush2.msra.mxu0 0.0
        %1067 = vmatprep.subr.mxu0 0.0
        %1068 = vmatpush2.msra.mxu0 0.0
        %1069 = vmatprep.subr.mxu0 0.0
        %1070 = vmatpush2.msra.mxu0 0.0
        %1071 = vmatprep.mubr.f32.mxu0 0.0
        %1072 = vmatmul.mubr.f32.gmra.mxu0 %v881
        %v1073 = vpop.f32.mrf.mxu0
        %v1074 = vadd.f32 0.0, %v1073
        %v1075 = vpop.f32.mrf.mxu0
        %1076 = vdwg.mxu0
        %v1077 = vadd.f32 %v885, %v1003
        %v1078 = vxor.u32 %v1077, 2147483648
        %v1079 = vmul.f32 %v1078, 1.442695
        %v1080 = vpow.pop %v1079
        %v1081 = vadd.f32 %v1080, 1.0
        %v1082 = vrcp.pop %v1081
        %v1083 = vmul.f32 1.0, %v1082
        %v1084 = vadd.f32 %v886, %v1005
        %v1085 = vxor.u32 %v1084, 2147483648
        %v1086 = vmul.f32 %v1085, 1.442695
        %v1087 = vpow.pop %v1086
        %v1088 = vadd.f32 %v1087, 1.0
        %v1089 = vrcp.pop %v1088
        %v1090 = vmul.f32 1.0, %v1089
        %v1091 = vadd.f32 %v1074, %v235
        %v1092 = vmul.f32 %v1083, %v1091
        %v1093 = vadd.f32 %v887, %v1092
        %v1094 = vtanh.pop %v1093
        %v1095 = vsub.f32 %v881, %v1094
        %v1096 = vmul.f32 %v1090, %v1095
        %v1097 = vadd.f32 %v1094, %v1096
        %s1098 = scalar_lea.vmem %s222, 24 [#allocation8]
        %1099 = vst [vmem:[%s1098] sm:$0xff] %v1097
        %s1100 = scalar_lea.vmem %s196, 96 [#allocation3]
        %v1101 = vld [vmem:[%s1100] sm:$0xff]
        %v1102 = vld [vmem:[%s1100 + $0x8] sm:$0xff]
        %v1103 = vld [vmem:[%s1100 + $0x10] sm:$0xff]
        %v1104 = vld [vmem:[#allocation6] sm:$0xff]
        %v1105 = vld [vmem:[#allocation6 + $0x8] sm:$0xff]
        %v1106 = vld [vmem:[#allocation6 + $0x10] sm:$0xff]
        %v1107 = vld [vmem:[#allocation6 + $0x18] sm:$0xff]
        %v1108 = vld [vmem:[#allocation6 + $0x20] sm:$0xff]
        %v1109 = vld [vmem:[#allocation6 + $0x28] sm:$0xff]
        %v1110 = vld [vmem:[#allocation6 + $0x30] sm:$0xff]
        %v1111 = vld [vmem:[#allocation6 + $0x38] sm:$0xff]
        %v1112 = vld [vmem:[#allocation6 + $0x40] sm:$0xff]
        %v1113 = vld [vmem:[#allocation6 + $0x48] sm:$0xff]
        %v1114 = vld [vmem:[#allocation6 + $0x50] sm:$0xff]
        %v1115 = vld [vmem:[#allocation6 + $0x58] sm:$0xff]
        %v1116 = vld [vmem:[#allocation6 + $0x60] sm:$0xff]
        %v1117 = vld [vmem:[#allocation6 + $0x68] sm:$0xff]
        %v1118 = vld [vmem:[#allocation6 + $0x70] sm:$0xff]
        %v1119 = vld [vmem:[#allocation6 + $0x78] sm:$0xff]
        %v1120 = vld [vmem:[#allocation6 + $0x80] sm:$0xff]
        %v1121 = vld [vmem:[#allocation6 + $0x88] sm:$0xff]
        %v1122 = vld [vmem:[#allocation6 + $0x90] sm:$0xff]
        %v1123 = vld [vmem:[#allocation6 + $0x98] sm:$0xff]
        %v1124 = vld [vmem:[#allocation6 + $0xa0] sm:$0xff]
        %v1125 = vld [vmem:[#allocation6 + $0xa8] sm:$0xff]
        %v1126 = vld [vmem:[#allocation6 + $0xb0] sm:$0xff]
        %v1127 = vld [vmem:[#allocation6 + $0xb8] sm:$0xff]
        %v1128 = vld [vmem:[#allocation6 + $0xc0] sm:$0xff]
        %v1129 = vld [vmem:[#allocation6 + $0xc8] sm:$0xff]
        %v1130 = vld [vmem:[#allocation6 + $0xd0] sm:$0xff]
        %v1131 = vld [vmem:[#allocation6 + $0xd8] sm:$0xff]
        %v1132 = vld [vmem:[#allocation6 + $0xe0] sm:$0xff]
        %v1133 = vld [vmem:[#allocation6 + $0xe8] sm:$0xff]
        %v1134 = vld [vmem:[#allocation6 + $0xf0] sm:$0xff]
        %v1135 = vld [vmem:[#allocation6 + $0xf8] sm:$0xff]
        %v1136 = vld [vmem:[#allocation6 + $0x100] sm:$0xff]
        %v1137 = vld [vmem:[#allocation6 + $0x108] sm:$0xff]
        %v1138 = vld [vmem:[#allocation6 + $0x110] sm:$0xff]
        %v1139 = vld [vmem:[#allocation6 + $0x118] sm:$0xff]
        %v1140 = vld [vmem:[#allocation6 + $0x120] sm:$0xff]
        %v1141 = vld [vmem:[#allocation6 + $0x128] sm:$0xff]
        %v1142 = vld [vmem:[#allocation6 + $0x130] sm:$0xff]
        %v1143 = vld [vmem:[#allocation6 + $0x138] sm:$0xff]
        %v1144 = vld [vmem:[#allocation6 + $0x140] sm:$0xff]
        %v1145 = vld [vmem:[#allocation6 + $0x148] sm:$0xff]
        %v1146 = vld [vmem:[#allocation6 + $0x150] sm:$0xff]
        %v1147 = vld [vmem:[#allocation6 + $0x158] sm:$0xff]
        %v1148 = vld [vmem:[#allocation6 + $0x160] sm:$0xff]
        %v1149 = vld [vmem:[#allocation6 + $0x168] sm:$0xff]
        %v1150 = vld [vmem:[#allocation6 + $0x170] sm:$0xff]
        %v1151 = vld [vmem:[#allocation6 + $0x178] sm:$0xff]
        %1152 = vmatprep.subr.mxu0 %v1150
        %1153 = vmatpush1.msra.mxu0 %v1149
        %1154 = vmatprep.subr.mxu0 %v1147
        %1155 = vmatpush1.msra.mxu0 %v1146
        %1156 = vmatprep.subr.mxu0 %v1144
        %1157 = vmatpush1.msra.mxu0 %v1143
        %1158 = vmatprep.subr.mxu0 %v1141
        %1159 = vmatpush1.msra.mxu0 %v1140
        %1160 = vmatprep.subr.mxu0 %v1138
        %1161 = vmatpush1.msra.mxu0 %v1137
        %1162 = vmatprep.subr.mxu0 %v1135
        %1163 = vmatpush1.msra.mxu0 %v1134
        %1164 = vmatprep.subr.mxu0 %v1132
        %1165 = vmatpush1.msra.mxu0 %v1131
        %1166 = vmatprep.subr.mxu0 %v1129
        %1167 = vmatpush1.msra.mxu0 %v1128
        %1168 = vmatprep.subr.mxu0 %v1126
        %1169 = vmatpush1.msra.mxu0 %v1125
        %1170 = vmatprep.subr.mxu0 %v1123
        %1171 = vmatpush1.msra.mxu0 %v1122
        %1172 = vmatprep.subr.mxu0 %v1120
        %1173 = vmatpush1.msra.mxu0 %v1119
        %1174 = vmatprep.subr.mxu0 %v1117
        %1175 = vmatpush1.msra.mxu0 %v1116
        %1176 = vmatprep.subr.mxu0 %v1114
        %1177 = vmatpush1.msra.mxu0 %v1113
        %1178 = vmatprep.subr.mxu0 %v1111
        %1179 = vmatpush1.msra.mxu0 %v1110
        %1180 = vmatprep.subr.mxu0 %v1108
        %1181 = vmatpush1.msra.mxu0 %v1107
        %1182 = vmatprep.subr.mxu0 %v1105
        %1183 = vmatpush1.msra.mxu0 %v1104
        %1184 = vmatprep.subr.mxu0 0.0
        %1185 = vmatpush2.msra.mxu0 0.0
        %1186 = vmatprep.subr.mxu0 0.0
        %1187 = vmatpush2.msra.mxu0 0.0
        %1188 = vmatprep.subr.mxu0 0.0
        %1189 = vmatpush2.msra.mxu0 0.0
        %1190 = vmatprep.subr.mxu0 0.0
        %1191 = vmatpush2.msra.mxu0 0.0
        %1192 = vmatprep.subr.mxu0 0.0
        %1193 = vmatpush2.msra.mxu0 0.0
        %1194 = vmatprep.subr.mxu0 0.0
        %1195 = vmatpush2.msra.mxu0 0.0
        %1196 = vmatprep.subr.mxu0 0.0
        %1197 = vmatpush2.msra.mxu0 0.0
        %1198 = vmatprep.subr.mxu0 0.0
        %1199 = vmatpush2.msra.mxu0 0.0
        %1200 = vmatprep.subr.mxu0 0.0
        %1201 = vmatpush2.msra.mxu0 0.0
        %1202 = vmatprep.subr.mxu0 0.0
        %1203 = vmatpush2.msra.mxu0 0.0
        %1204 = vmatprep.subr.mxu0 0.0
        %1205 = vmatpush2.msra.mxu0 0.0
        %1206 = vmatprep.subr.mxu0 0.0
        %1207 = vmatpush2.msra.mxu0 0.0
        %1208 = vmatprep.subr.mxu0 0.0
        %1209 = vmatpush2.msra.mxu0 0.0
        %1210 = vmatprep.subr.mxu0 0.0
        %1211 = vmatpush2.msra.mxu0 0.0
        %1212 = vmatprep.subr.mxu0 0.0
        %1213 = vmatpush2.msra.mxu0 0.0
        %1214 = vmatprep.subr.mxu0 0.0
        %1215 = vmatpush2.msra.mxu0 0.0
        %1216 = vmatprep.mubr.f32.mxu0 0.0
        %1217 = vmatmul.mubr.f32.gmra.mxu0 %v1097
        %v1218 = vpop.f32.mrf.mxu0
        %v1219 = vadd.f32 0.0, %v1218
        %v1220 = vpop.f32.mrf.mxu0
        %v1221 = vadd.f32 0.0, %v1220
        %1222 = vdwg.mxu0
        %1223 = vmatprep.subr.mxu0 0.0
        %1224 = vmatpush1.msra.mxu0 %v1151
        %1225 = vmatprep.subr.mxu0 0.0
        %1226 = vmatpush1.msra.mxu0 %v1148
        %1227 = vmatprep.subr.mxu0 0.0
        %1228 = vmatpush1.msra.mxu0 %v1145
        %1229 = vmatprep.subr.mxu0 0.0
        %1230 = vmatpush1.msra.mxu0 %v1142
        %1231 = vmatprep.subr.mxu0 0.0
        %1232 = vmatpush1.msra.mxu0 %v1139
        %1233 = vmatprep.subr.mxu0 0.0
        %1234 = vmatpush1.msra.mxu0 %v1136
        %1235 = vmatprep.subr.mxu0 0.0
        %1236 = vmatpush1.msra.mxu0 %v1133
        %1237 = vmatprep.subr.mxu0 0.0
        %1238 = vmatpush1.msra.mxu0 %v1130
        %1239 = vmatprep.subr.mxu0 0.0
        %1240 = vmatpush1.msra.mxu0 %v1127
        %1241 = vmatprep.subr.mxu0 0.0
        %1242 = vmatpush1.msra.mxu0 %v1124
        %1243 = vmatprep.subr.mxu0 0.0
        %1244 = vmatpush1.msra.mxu0 %v1121
        %1245 = vmatprep.subr.mxu0 0.0
        %1246 = vmatpush1.msra.mxu0 %v1118
        %1247 = vmatprep.subr.mxu0 0.0
        %1248 = vmatpush1.msra.mxu0 %v1115
        %1249 = vmatprep.subr.mxu0 0.0
        %1250 = vmatpush1.msra.mxu0 %v1112
        %1251 = vmatprep.subr.mxu0 0.0
        %1252 = vmatpush1.msra.mxu0 %v1109
        %1253 = vmatprep.subr.mxu0 0.0
        %1254 = vmatpush1.msra.mxu0 %v1106
        %1255 = vmatprep.subr.mxu0 0.0
        %1256 = vmatpush2.msra.mxu0 0.0
        %1257 = vmatprep.subr.mxu0 0.0
        %1258 = vmatpush2.msra.mxu0 0.0
        %1259 = vmatprep.subr.mxu0 0.0
        %1260 = vmatpush2.msra.mxu0 0.0
        %1261 = vmatprep.subr.mxu0 0.0
        %1262 = vmatpush2.msra.mxu0 0.0
        %1263 = vmatprep.subr.mxu0 0.0
        %1264 = vmatpush2.msra.mxu0 0.0
        %1265 = vmatprep.subr.mxu0 0.0
        %1266 = vmatpush2.msra.mxu0 0.0
        %1267 = vmatprep.subr.mxu0 0.0
        %1268 = vmatpush2.msra.mxu0 0.0
        %1269 = vmatprep.subr.mxu0 0.0
        %1270 = vmatpush2.msra.mxu0 0.0
        %1271 = vmatprep.subr.mxu0 0.0
        %1272 = vmatpush2.msra.mxu0 0.0
        %1273 = vmatprep.subr.mxu0 0.0
        %1274 = vmatpush2.msra.mxu0 0.0
        %1275 = vmatprep.subr.mxu0 0.0
        %1276 = vmatpush2.msra.mxu0 0.0
        %1277 = vmatprep.subr.mxu0 0.0
        %1278 = vmatpush2.msra.mxu0 0.0
        %1279 = vmatprep.subr.mxu0 0.0
        %1280 = vmatpush2.msra.mxu0 0.0
        %1281 = vmatprep.subr.mxu0 0.0
        %1282 = vmatpush2.msra.mxu0 0.0
        %1283 = vmatprep.subr.mxu0 0.0
        %1284 = vmatpush2.msra.mxu0 0.0
        %1285 = vmatprep.subr.mxu0 0.0
        %1286 = vmatpush2.msra.mxu0 0.0
        %1287 = vmatprep.mubr.f32.mxu0 0.0
        %1288 = vmatmul.mubr.f32.gmra.mxu0 %v1097
        %v1289 = vpop.f32.mrf.mxu0
        %v1290 = vadd.f32 0.0, %v1289
        %v1291 = vpop.f32.mrf.mxu0
        %1292 = vdwg.mxu0
        %v1293 = vadd.f32 %v1101, %v1219
        %v1294 = vxor.u32 %v1293, 2147483648
        %v1295 = vmul.f32 %v1294, 1.442695
        %v1296 = vpow.pop %v1295
        %v1297 = vadd.f32 %v1296, 1.0
        %v1298 = vrcp.pop %v1297
        %v1299 = vmul.f32 1.0, %v1298
        %v1300 = vadd.f32 %v1102, %v1221
        %v1301 = vxor.u32 %v1300, 2147483648
        %v1302 = vmul.f32 %v1301, 1.442695
        %v1303 = vpow.pop %v1302
        %v1304 = vadd.f32 %v1303, 1.0
        %v1305 = vrcp.pop %v1304
        %v1306 = vmul.f32 1.0, %v1305
        %v1307 = vadd.f32 %v1290, %v235
        %v1308 = vmul.f32 %v1299, %v1307
        %v1309 = vadd.f32 %v1103, %v1308
        %v1310 = vtanh.pop %v1309
        %v1311 = vsub.f32 %v1097, %v1310
        %v1312 = vmul.f32 %v1306, %v1311
        %v1313 = vadd.f32 %v1310, %v1312
        %s1314 = scalar_lea.vmem %s222, 32 [#allocation8]
        %1315 = vst [vmem:[%s1314] sm:$0xff] %v1313
        %s1316 = scalar_lea.vmem %s196, 120 [#allocation3]
        %v1317 = vld [vmem:[%s1316] sm:$0xff]
        %v1318 = vld [vmem:[%s1316 + $0x8] sm:$0xff]
        %v1319 = vld [vmem:[%s1316 + $0x10] sm:$0xff]
        %v1320 = vld [vmem:[#allocation6] sm:$0xff]
        %v1321 = vld [vmem:[#allocation6 + $0x8] sm:$0xff]
        %v1322 = vld [vmem:[#allocation6 + $0x10] sm:$0xff]
        %v1323 = vld [vmem:[#allocation6 + $0x18] sm:$0xff]
        %v1324 = vld [vmem:[#allocation6 + $0x20] sm:$0xff]
        %v1325 = vld [vmem:[#allocation6 + $0x28] sm:$0xff]
        %v1326 = vld [vmem:[#allocation6 + $0x30] sm:$0xff]
        %v1327 = vld [vmem:[#allocation6 + $0x38] sm:$0xff]
        %v1328 = vld [vmem:[#allocation6 + $0x40] sm:$0xff]
        %v1329 = vld [vmem:[#allocation6 + $0x48] sm:$0xff]
        %v1330 = vld [vmem:[#allocation6 + $0x50] sm:$0xff]
        %v1331 = vld [vmem:[#allocation6 + $0x58] sm:$0xff]
        %v1332 = vld [vmem:[#allocation6 + $0x60] sm:$0xff]
        %v1333 = vld [vmem:[#allocation6 + $0x68] sm:$0xff]
        %v1334 = vld [vmem:[#allocation6 + $0x70] sm:$0xff]
        %v1335 = vld [vmem:[#allocation6 + $0x78] sm:$0xff]
        %v1336 = vld [vmem:[#allocation6 + $0x80] sm:$0xff]
        %v1337 = vld [vmem:[#allocation6 + $0x88] sm:$0xff]
        %v1338 = vld [vmem:[#allocation6 + $0x90] sm:$0xff]
        %v1339 = vld [vmem:[#allocation6 + $0x98] sm:$0xff]
        %v1340 = vld [vmem:[#allocation6 + $0xa0] sm:$0xff]
        %v1341 = vld [vmem:[#allocation6 + $0xa8] sm:$0xff]
        %v1342 = vld [vmem:[#allocation6 + $0xb0] sm:$0xff]
        %v1343 = vld [vmem:[#allocation6 + $0xb8] sm:$0xff]
        %v1344 = vld [vmem:[#allocation6 + $0xc0] sm:$0xff]
        %v1345 = vld [vmem:[#allocation6 + $0xc8] sm:$0xff]
        %v1346 = vld [vmem:[#allocation6 + $0xd0] sm:$0xff]
        %v1347 = vld [vmem:[#allocation6 + $0xd8] sm:$0xff]
        %v1348 = vld [vmem:[#allocation6 + $0xe0] sm:$0xff]
        %v1349 = vld [vmem:[#allocation6 + $0xe8] sm:$0xff]
        %v1350 = vld [vmem:[#allocation6 + $0xf0] sm:$0xff]
        %v1351 = vld [vmem:[#allocation6 + $0xf8] sm:$0xff]
        %v1352 = vld [vmem:[#allocation6 + $0x100] sm:$0xff]
        %v1353 = vld [vmem:[#allocation6 + $0x108] sm:$0xff]
        %v1354 = vld [vmem:[#allocation6 + $0x110] sm:$0xff]
        %v1355 = vld [vmem:[#allocation6 + $0x118] sm:$0xff]
        %v1356 = vld [vmem:[#allocation6 + $0x120] sm:$0xff]
        %v1357 = vld [vmem:[#allocation6 + $0x128] sm:$0xff]
        %v1358 = vld [vmem:[#allocation6 + $0x130] sm:$0xff]
        %v1359 = vld [vmem:[#allocation6 + $0x138] sm:$0xff]
        %v1360 = vld [vmem:[#allocation6 + $0x140] sm:$0xff]
        %v1361 = vld [vmem:[#allocation6 + $0x148] sm:$0xff]
        %v1362 = vld [vmem:[#allocation6 + $0x150] sm:$0xff]
        %v1363 = vld [vmem:[#allocation6 + $0x158] sm:$0xff]
        %v1364 = vld [vmem:[#allocation6 + $0x160] sm:$0xff]
        %v1365 = vld [vmem:[#allocation6 + $0x168] sm:$0xff]
        %v1366 = vld [vmem:[#allocation6 + $0x170] sm:$0xff]
        %v1367 = vld [vmem:[#allocation6 + $0x178] sm:$0xff]
        %1368 = vmatprep.subr.mxu0 %v1366
        %1369 = vmatpush1.msra.mxu0 %v1365
        %1370 = vmatprep.subr.mxu0 %v1363
        %1371 = vmatpush1.msra.mxu0 %v1362
        %1372 = vmatprep.subr.mxu0 %v1360
        %1373 = vmatpush1.msra.mxu0 %v1359
        %1374 = vmatprep.subr.mxu0 %v1357
        %1375 = vmatpush1.msra.mxu0 %v1356
        %1376 = vmatprep.subr.mxu0 %v1354
        %1377 = vmatpush1.msra.mxu0 %v1353
        %1378 = vmatprep.subr.mxu0 %v1351
        %1379 = vmatpush1.msra.mxu0 %v1350
        %1380 = vmatprep.subr.mxu0 %v1348
        %1381 = vmatpush1.msra.mxu0 %v1347
        %1382 = vmatprep.subr.mxu0 %v1345
        %1383 = vmatpush1.msra.mxu0 %v1344
        %1384 = vmatprep.subr.mxu0 %v1342
        %1385 = vmatpush1.msra.mxu0 %v1341
        %1386 = vmatprep.subr.mxu0 %v1339
        %1387 = vmatpush1.msra.mxu0 %v1338
        %1388 = vmatprep.subr.mxu0 %v1336
        %1389 = vmatpush1.msra.mxu0 %v1335
        %1390 = vmatprep.subr.mxu0 %v1333
        %1391 = vmatpush1.msra.mxu0 %v1332
        %1392 = vmatprep.subr.mxu0 %v1330
        %1393 = vmatpush1.msra.mxu0 %v1329
        %1394 = vmatprep.subr.mxu0 %v1327
        %1395 = vmatpush1.msra.mxu0 %v1326
        %1396 = vmatprep.subr.mxu0 %v1324
        %1397 = vmatpush1.msra.mxu0 %v1323
        %1398 = vmatprep.subr.mxu0 %v1321
        %1399 = vmatpush1.msra.mxu0 %v1320
        %1400 = vmatprep.subr.mxu0 0.0
        %1401 = vmatpush2.msra.mxu0 0.0
        %1402 = vmatprep.subr.mxu0 0.0
        %1403 = vmatpush2.msra.mxu0 0.0
        %1404 = vmatprep.subr.mxu0 0.0
        %1405 = vmatpush2.msra.mxu0 0.0
        %1406 = vmatprep.subr.mxu0 0.0
        %1407 = vmatpush2.msra.mxu0 0.0
        %1408 = vmatprep.subr.mxu0 0.0
        %1409 = vmatpush2.msra.mxu0 0.0
        %1410 = vmatprep.subr.mxu0 0.0
        %1411 = vmatpush2.msra.mxu0 0.0
        %1412 = vmatprep.subr.mxu0 0.0
        %1413 = vmatpush2.msra.mxu0 0.0
        %1414 = vmatprep.subr.mxu0 0.0
        %1415 = vmatpush2.msra.mxu0 0.0
        %1416 = vmatprep.subr.mxu0 0.0
        %1417 = vmatpush2.msra.mxu0 0.0
        %1418 = vmatprep.subr.mxu0 0.0
        %1419 = vmatpush2.msra.mxu0 0.0
        %1420 = vmatprep.subr.mxu0 0.0
        %1421 = vmatpush2.msra.mxu0 0.0
        %1422 = vmatprep.subr.mxu0 0.0
        %1423 = vmatpush2.msra.mxu0 0.0
        %1424 = vmatprep.subr.mxu0 0.0
        %1425 = vmatpush2.msra.mxu0 0.0
        %1426 = vmatprep.subr.mxu0 0.0
        %1427 = vmatpush2.msra.mxu0 0.0
        %1428 = vmatprep.subr.mxu0 0.0
        %1429 = vmatpush2.msra.mxu0 0.0
        %1430 = vmatprep.subr.mxu0 0.0
        %1431 = vmatpush2.msra.mxu0 0.0
        %1432 = vmatprep.mubr.f32.mxu0 0.0
        %1433 = vmatmul.mubr.f32.gmra.mxu0 %v1313
        %v1434 = vpop.f32.mrf.mxu0
        %v1435 = vadd.f32 0.0, %v1434
        %v1436 = vpop.f32.mrf.mxu0
        %v1437 = vadd.f32 0.0, %v1436
        %1438 = vdwg.mxu0
        %1439 = vmatprep.subr.mxu0 0.0
        %1440 = vmatpush1.msra.mxu0 %v1367
        %1441 = vmatprep.subr.mxu0 0.0
        %1442 = vmatpush1.msra.mxu0 %v1364
        %1443 = vmatprep.subr.mxu0 0.0
        %1444 = vmatpush1.msra.mxu0 %v1361
        %1445 = vmatprep.subr.mxu0 0.0
        %1446 = vmatpush1.msra.mxu0 %v1358
        %1447 = vmatprep.subr.mxu0 0.0
        %1448 = vmatpush1.msra.mxu0 %v1355
        %1449 = vmatprep.subr.mxu0 0.0
        %1450 = vmatpush1.msra.mxu0 %v1352
        %1451 = vmatprep.subr.mxu0 0.0
        %1452 = vmatpush1.msra.mxu0 %v1349
        %1453 = vmatprep.subr.mxu0 0.0
        %1454 = vmatpush1.msra.mxu0 %v1346
        %1455 = vmatprep.subr.mxu0 0.0
        %1456 = vmatpush1.msra.mxu0 %v1343
        %1457 = vmatprep.subr.mxu0 0.0
        %1458 = vmatpush1.msra.mxu0 %v1340
        %1459 = vmatprep.subr.mxu0 0.0
        %1460 = vmatpush1.msra.mxu0 %v1337
        %1461 = vmatprep.subr.mxu0 0.0
        %1462 = vmatpush1.msra.mxu0 %v1334
        %1463 = vmatprep.subr.mxu0 0.0
        %1464 = vmatpush1.msra.mxu0 %v1331
        %1465 = vmatprep.subr.mxu0 0.0
        %1466 = vmatpush1.msra.mxu0 %v1328
        %1467 = vmatprep.subr.mxu0 0.0
        %1468 = vmatpush1.msra.mxu0 %v1325
        %1469 = vmatprep.subr.mxu0 0.0
        %1470 = vmatpush1.msra.mxu0 %v1322
        %1471 = vmatprep.subr.mxu0 0.0
        %1472 = vmatpush2.msra.mxu0 0.0
        %1473 = vmatprep.subr.mxu0 0.0
        %1474 = vmatpush2.msra.mxu0 0.0
        %1475 = vmatprep.subr.mxu0 0.0
        %1476 = vmatpush2.msra.mxu0 0.0
        %1477 = vmatprep.subr.mxu0 0.0
        %1478 = vmatpush2.msra.mxu0 0.0
        %1479 = vmatprep.subr.mxu0 0.0
        %1480 = vmatpush2.msra.mxu0 0.0
        %1481 = vmatprep.subr.mxu0 0.0
        %1482 = vmatpush2.msra.mxu0 0.0
        %1483 = vmatprep.subr.mxu0 0.0
        %1484 = vmatpush2.msra.mxu0 0.0
        %1485 = vmatprep.subr.mxu0 0.0
        %1486 = vmatpush2.msra.mxu0 0.0
        %1487 = vmatprep.subr.mxu0 0.0
        %1488 = vmatpush2.msra.mxu0 0.0
        %1489 = vmatprep.subr.mxu0 0.0
        %1490 = vmatpush2.msra.mxu0 0.0
        %1491 = vmatprep.subr.mxu0 0.0
        %1492 = vmatpush2.msra.mxu0 0.0
        %1493 = vmatprep.subr.mxu0 0.0
        %1494 = vmatpush2.msra.mxu0 0.0
        %1495 = vmatprep.subr.mxu0 0.0
        %1496 = vmatpush2.msra.mxu0 0.0
        %1497 = vmatprep.subr.mxu0 0.0
        %1498 = vmatpush2.msra.mxu0 0.0
        %1499 = vmatprep.subr.mxu0 0.0
        %1500 = vmatpush2.msra.mxu0 0.0
        %1501 = vmatprep.subr.mxu0 0.0
        %1502 = vmatpush2.msra.mxu0 0.0
        %1503 = vmatprep.mubr.f32.mxu0 0.0
        %1504 = vmatmul.mubr.f32.gmra.mxu0 %v1313
        %v1505 = vpop.f32.mrf.mxu0
        %v1506 = vadd.f32 0.0, %v1505
        %v1507 = vpop.f32.mrf.mxu0
        %1508 = vdwg.mxu0
        %v1509 = vadd.f32 %v1317, %v1435
        %v1510 = vxor.u32 %v1509, 2147483648
        %v1511 = vmul.f32 %v1510, 1.442695
        %v1512 = vpow.pop %v1511
        %v1513 = vadd.f32 %v1512, 1.0
        %v1514 = vrcp.pop %v1513
        %v1515 = vmul.f32 1.0, %v1514
        %v1516 = vadd.f32 %v1318, %v1437
        %v1517 = vxor.u32 %v1516, 2147483648
        %v1518 = vmul.f32 %v1517, 1.442695
        %v1519 = vpow.pop %v1518
        %v1520 = vadd.f32 %v1519, 1.0
        %v1521 = vrcp.pop %v1520
        %v1522 = vmul.f32 1.0, %v1521
        %v1523 = vadd.f32 %v1506, %v235
        %v1524 = vmul.f32 %v1515, %v1523
        %v1525 = vadd.f32 %v1319, %v1524
        %v1526 = vtanh.pop %v1525
        %v1527 = vsub.f32 %v1313, %v1526
        %v1528 = vmul.f32 %v1522, %v1527
        %v1529 = vadd.f32 %v1526, %v1528
        %s1530 = scalar_lea.vmem %s222, 40 [#allocation8]
        %1531 = vst [vmem:[%s1530] sm:$0xff] %v1529
        %s1532 = scalar_lea.vmem %s196, 144 [#allocation3]
        %v1533 = vld [vmem:[%s1532] sm:$0xff]
        %v1534 = vld [vmem:[%s1532 + $0x8] sm:$0xff]
        %v1535 = vld [vmem:[%s1532 + $0x10] sm:$0xff]
        %v1536 = vld [vmem:[#allocation6] sm:$0xff]
        %v1537 = vld [vmem:[#allocation6 + $0x8] sm:$0xff]
        %v1538 = vld [vmem:[#allocation6 + $0x10] sm:$0xff]
        %v1539 = vld [vmem:[#allocation6 + $0x18] sm:$0xff]
        %v1540 = vld [vmem:[#allocation6 + $0x20] sm:$0xff]
        %v1541 = vld [vmem:[#allocation6 + $0x28] sm:$0xff]
        %v1542 = vld [vmem:[#allocation6 + $0x30] sm:$0xff]
        %v1543 = vld [vmem:[#allocation6 + $0x38] sm:$0xff]
        %v1544 = vld [vmem:[#allocation6 + $0x40] sm:$0xff]
        %v1545 = vld [vmem:[#allocation6 + $0x48] sm:$0xff]
        %v1546 = vld [vmem:[#allocation6 + $0x50] sm:$0xff]
        %v1547 = vld [vmem:[#allocation6 + $0x58] sm:$0xff]
        %v1548 = vld [vmem:[#allocation6 + $0x60] sm:$0xff]
        %v1549 = vld [vmem:[#allocation6 + $0x68] sm:$0xff]
        %v1550 = vld [vmem:[#allocation6 + $0x70] sm:$0xff]
        %v1551 = vld [vmem:[#allocation6 + $0x78] sm:$0xff]
        %v1552 = vld [vmem:[#allocation6 + $0x80] sm:$0xff]
        %v1553 = vld [vmem:[#allocation6 + $0x88] sm:$0xff]
        %v1554 = vld [vmem:[#allocation6 + $0x90] sm:$0xff]
        %v1555 = vld [vmem:[#allocation6 + $0x98] sm:$0xff]
        %v1556 = vld [vmem:[#allocation6 + $0xa0] sm:$0xff]
        %v1557 = vld [vmem:[#allocation6 + $0xa8] sm:$0xff]
        %v1558 = vld [vmem:[#allocation6 + $0xb0] sm:$0xff]
        %v1559 = vld [vmem:[#allocation6 + $0xb8] sm:$0xff]
        %v1560 = vld [vmem:[#allocation6 + $0xc0] sm:$0xff]
        %v1561 = vld [vmem:[#allocation6 + $0xc8] sm:$0xff]
        %v1562 = vld [vmem:[#allocation6 + $0xd0] sm:$0xff]
        %v1563 = vld [vmem:[#allocation6 + $0xd8] sm:$0xff]
        %v1564 = vld [vmem:[#allocation6 + $0xe0] sm:$0xff]
        %v1565 = vld [vmem:[#allocation6 + $0xe8] sm:$0xff]
        %v1566 = vld [vmem:[#allocation6 + $0xf0] sm:$0xff]
        %v1567 = vld [vmem:[#allocation6 + $0xf8] sm:$0xff]
        %v1568 = vld [vmem:[#allocation6 + $0x100] sm:$0xff]
        %v1569 = vld [vmem:[#allocation6 + $0x108] sm:$0xff]
        %v1570 = vld [vmem:[#allocation6 + $0x110] sm:$0xff]
        %v1571 = vld [vmem:[#allocation6 + $0x118] sm:$0xff]
        %v1572 = vld [vmem:[#allocation6 + $0x120] sm:$0xff]
        %v1573 = vld [vmem:[#allocation6 + $0x128] sm:$0xff]
        %v1574 = vld [vmem:[#allocation6 + $0x130] sm:$0xff]
        %v1575 = vld [vmem:[#allocation6 + $0x138] sm:$0xff]
        %v1576 = vld [vmem:[#allocation6 + $0x140] sm:$0xff]
        %v1577 = vld [vmem:[#allocation6 + $0x148] sm:$0xff]
        %v1578 = vld [vmem:[#allocation6 + $0x150] sm:$0xff]
        %v1579 = vld [vmem:[#allocation6 + $0x158] sm:$0xff]
        %v1580 = vld [vmem:[#allocation6 + $0x160] sm:$0xff]
        %v1581 = vld [vmem:[#allocation6 + $0x168] sm:$0xff]
        %v1582 = vld [vmem:[#allocation6 + $0x170] sm:$0xff]
        %v1583 = vld [vmem:[#allocation6 + $0x178] sm:$0xff]
        %1584 = vmatprep.subr.mxu0 %v1582
        %1585 = vmatpush1.msra.mxu0 %v1581
        %1586 = vmatprep.subr.mxu0 %v1579
        %1587 = vmatpush1.msra.mxu0 %v1578
        %1588 = vmatprep.subr.mxu0 %v1576
        %1589 = vmatpush1.msra.mxu0 %v1575
        %1590 = vmatprep.subr.mxu0 %v1573
        %1591 = vmatpush1.msra.mxu0 %v1572
        %1592 = vmatprep.subr.mxu0 %v1570
        %1593 = vmatpush1.msra.mxu0 %v1569
        %1594 = vmatprep.subr.mxu0 %v1567
        %1595 = vmatpush1.msra.mxu0 %v1566
        %1596 = vmatprep.subr.mxu0 %v1564
        %1597 = vmatpush1.msra.mxu0 %v1563
        %1598 = vmatprep.subr.mxu0 %v1561
        %1599 = vmatpush1.msra.mxu0 %v1560
        %1600 = vmatprep.subr.mxu0 %v1558
        %1601 = vmatpush1.msra.mxu0 %v1557
        %1602 = vmatprep.subr.mxu0 %v1555
        %1603 = vmatpush1.msra.mxu0 %v1554
        %1604 = vmatprep.subr.mxu0 %v1552
        %1605 = vmatpush1.msra.mxu0 %v1551
        %1606 = vmatprep.subr.mxu0 %v1549
        %1607 = vmatpush1.msra.mxu0 %v1548
        %1608 = vmatprep.subr.mxu0 %v1546
        %1609 = vmatpush1.msra.mxu0 %v1545
        %1610 = vmatprep.subr.mxu0 %v1543
        %1611 = vmatpush1.msra.mxu0 %v1542
        %1612 = vmatprep.subr.mxu0 %v1540
        %1613 = vmatpush1.msra.mxu0 %v1539
        %1614 = vmatprep.subr.mxu0 %v1537
        %1615 = vmatpush1.msra.mxu0 %v1536
        %1616 = vmatprep.subr.mxu0 0.0
        %1617 = vmatpush2.msra.mxu0 0.0
        %1618 = vmatprep.subr.mxu0 0.0
        %1619 = vmatpush2.msra.mxu0 0.0
        %1620 = vmatprep.subr.mxu0 0.0
        %1621 = vmatpush2.msra.mxu0 0.0
        %1622 = vmatprep.subr.mxu0 0.0
        %1623 = vmatpush2.msra.mxu0 0.0
        %1624 = vmatprep.subr.mxu0 0.0
        %1625 = vmatpush2.msra.mxu0 0.0
        %1626 = vmatprep.subr.mxu0 0.0
        %1627 = vmatpush2.msra.mxu0 0.0
        %1628 = vmatprep.subr.mxu0 0.0
        %1629 = vmatpush2.msra.mxu0 0.0
        %1630 = vmatprep.subr.mxu0 0.0
        %1631 = vmatpush2.msra.mxu0 0.0
        %1632 = vmatprep.subr.mxu0 0.0
        %1633 = vmatpush2.msra.mxu0 0.0
        %1634 = vmatprep.subr.mxu0 0.0
        %1635 = vmatpush2.msra.mxu0 0.0
        %1636 = vmatprep.subr.mxu0 0.0
        %1637 = vmatpush2.msra.mxu0 0.0
        %1638 = vmatprep.subr.mxu0 0.0
        %1639 = vmatpush2.msra.mxu0 0.0
        %1640 = vmatprep.subr.mxu0 0.0
        %1641 = vmatpush2.msra.mxu0 0.0
        %1642 = vmatprep.subr.mxu0 0.0
        %1643 = vmatpush2.msra.mxu0 0.0
        %1644 = vmatprep.subr.mxu0 0.0
        %1645 = vmatpush2.msra.mxu0 0.0
        %1646 = vmatprep.subr.mxu0 0.0
        %1647 = vmatpush2.msra.mxu0 0.0
        %1648 = vmatprep.mubr.f32.mxu0 0.0
        %1649 = vmatmul.mubr.f32.gmra.mxu0 %v1529
        %v1650 = vpop.f32.mrf.mxu0
        %v1651 = vadd.f32 0.0, %v1650
        %v1652 = vpop.f32.mrf.mxu0
        %v1653 = vadd.f32 0.0, %v1652
        %1654 = vdwg.mxu0
        %1655 = vmatprep.subr.mxu0 0.0
        %1656 = vmatpush1.msra.mxu0 %v1583
        %1657 = vmatprep.subr.mxu0 0.0
        %1658 = vmatpush1.msra.mxu0 %v1580
        %1659 = vmatprep.subr.mxu0 0.0
        %1660 = vmatpush1.msra.mxu0 %v1577
        %1661 = vmatprep.subr.mxu0 0.0
        %1662 = vmatpush1.msra.mxu0 %v1574
        %1663 = vmatprep.subr.mxu0 0.0
        %1664 = vmatpush1.msra.mxu0 %v1571
        %1665 = vmatprep.subr.mxu0 0.0
        %1666 = vmatpush1.msra.mxu0 %v1568
        %1667 = vmatprep.subr.mxu0 0.0
        %1668 = vmatpush1.msra.mxu0 %v1565
        %1669 = vmatprep.subr.mxu0 0.0
        %1670 = vmatpush1.msra.mxu0 %v1562
        %1671 = vmatprep.subr.mxu0 0.0
        %1672 = vmatpush1.msra.mxu0 %v1559
        %1673 = vmatprep.subr.mxu0 0.0
        %1674 = vmatpush1.msra.mxu0 %v1556
        %1675 = vmatprep.subr.mxu0 0.0
        %1676 = vmatpush1.msra.mxu0 %v1553
        %1677 = vmatprep.subr.mxu0 0.0
        %1678 = vmatpush1.msra.mxu0 %v1550
        %1679 = vmatprep.subr.mxu0 0.0
        %1680 = vmatpush1.msra.mxu0 %v1547
        %1681 = vmatprep.subr.mxu0 0.0
        %1682 = vmatpush1.msra.mxu0 %v1544
        %1683 = vmatprep.subr.mxu0 0.0
        %1684 = vmatpush1.msra.mxu0 %v1541
        %1685 = vmatprep.subr.mxu0 0.0
        %1686 = vmatpush1.msra.mxu0 %v1538
        %1687 = vmatprep.subr.mxu0 0.0
        %1688 = vmatpush2.msra.mxu0 0.0
        %1689 = vmatprep.subr.mxu0 0.0
        %1690 = vmatpush2.msra.mxu0 0.0
        %1691 = vmatprep.subr.mxu0 0.0
        %1692 = vmatpush2.msra.mxu0 0.0
        %1693 = vmatprep.subr.mxu0 0.0
        %1694 = vmatpush2.msra.mxu0 0.0
        %1695 = vmatprep.subr.mxu0 0.0
        %1696 = vmatpush2.msra.mxu0 0.0
        %1697 = vmatprep.subr.mxu0 0.0
        %1698 = vmatpush2.msra.mxu0 0.0
        %1699 = vmatprep.subr.mxu0 0.0
        %1700 = vmatpush2.msra.mxu0 0.0
        %1701 = vmatprep.subr.mxu0 0.0
        %1702 = vmatpush2.msra.mxu0 0.0
        %1703 = vmatprep.subr.mxu0 0.0
        %1704 = vmatpush2.msra.mxu0 0.0
        %1705 = vmatprep.subr.mxu0 0.0
        %1706 = vmatpush2.msra.mxu0 0.0
        %1707 = vmatprep.subr.mxu0 0.0
        %1708 = vmatpush2.msra.mxu0 0.0
        %1709 = vmatprep.subr.mxu0 0.0
        %1710 = vmatpush2.msra.mxu0 0.0
        %1711 = vmatprep.subr.mxu0 0.0
        %1712 = vmatpush2.msra.mxu0 0.0
        %1713 = vmatprep.subr.mxu0 0.0
        %1714 = vmatpush2.msra.mxu0 0.0
        %1715 = vmatprep.subr.mxu0 0.0
        %1716 = vmatpush2.msra.mxu0 0.0
        %1717 = vmatprep.subr.mxu0 0.0
        %1718 = vmatpush2.msra.mxu0 0.0
        %1719 = vmatprep.mubr.f32.mxu0 0.0
        %1720 = vmatmul.mubr.f32.gmra.mxu0 %v1529
        %v1721 = vpop.f32.mrf.mxu0
        %v1722 = vadd.f32 0.0, %v1721
        %v1723 = vpop.f32.mrf.mxu0
        %1724 = vdwg.mxu0
        %v1725 = vadd.f32 %v1533, %v1651
        %v1726 = vxor.u32 %v1725, 2147483648
        %v1727 = vmul.f32 %v1726, 1.442695
        %v1728 = vpow.pop %v1727
        %v1729 = vadd.f32 %v1728, 1.0
        %v1730 = vrcp.pop %v1729
        %v1731 = vmul.f32 1.0, %v1730
        %v1732 = vadd.f32 %v1534, %v1653
        %v1733 = vxor.u32 %v1732, 2147483648
        %v1734 = vmul.f32 %v1733, 1.442695
        %v1735 = vpow.pop %v1734
        %v1736 = vadd.f32 %v1735, 1.0
        %v1737 = vrcp.pop %v1736
        %v1738 = vmul.f32 1.0, %v1737
        %v1739 = vadd.f32 %v1722, %v235
        %v1740 = vmul.f32 %v1731, %v1739
        %v1741 = vadd.f32 %v1535, %v1740
        %v1742 = vtanh.pop %v1741
        %v1743 = vsub.f32 %v1529, %v1742
        %v1744 = vmul.f32 %v1738, %v1743
        %v1745 = vadd.f32 %v1742, %v1744
        %s1746 = scalar_lea.vmem %s222, 48 [#allocation8]
        %1747 = vst [vmem:[%s1746] sm:$0xff] %v1745
        %s1748 = scalar_lea.vmem %s196, 168 [#allocation3]
        %v1749 = vld [vmem:[%s1748] sm:$0xff]
        %v1750 = vld [vmem:[%s1748 + $0x8] sm:$0xff]
        %v1751 = vld [vmem:[%s1748 + $0x10] sm:$0xff]
        %v1752 = vld [vmem:[#allocation6] sm:$0xff]
        %v1753 = vld [vmem:[#allocation6 + $0x8] sm:$0xff]
        %v1754 = vld [vmem:[#allocation6 + $0x10] sm:$0xff]
        %v1755 = vld [vmem:[#allocation6 + $0x18] sm:$0xff]
        %v1756 = vld [vmem:[#allocation6 + $0x20] sm:$0xff]
        %v1757 = vld [vmem:[#allocation6 + $0x28] sm:$0xff]
        %v1758 = vld [vmem:[#allocation6 + $0x30] sm:$0xff]
        %v1759 = vld [vmem:[#allocation6 + $0x38] sm:$0xff]
        %v1760 = vld [vmem:[#allocation6 + $0x40] sm:$0xff]
        %v1761 = vld [vmem:[#allocation6 + $0x48] sm:$0xff]
        %v1762 = vld [vmem:[#allocation6 + $0x50] sm:$0xff]
        %v1763 = vld [vmem:[#allocation6 + $0x58] sm:$0xff]
        %v1764 = vld [vmem:[#allocation6 + $0x60] sm:$0xff]
        %v1765 = vld [vmem:[#allocation6 + $0x68] sm:$0xff]
        %v1766 = vld [vmem:[#allocation6 + $0x70] sm:$0xff]
        %v1767 = vld [vmem:[#allocation6 + $0x78] sm:$0xff]
        %v1768 = vld [vmem:[#allocation6 + $0x80] sm:$0xff]
        %v1769 = vld [vmem:[#allocation6 + $0x88] sm:$0xff]
        %v1770 = vld [vmem:[#allocation6 + $0x90] sm:$0xff]
        %v1771 = vld [vmem:[#allocation6 + $0x98] sm:$0xff]
        %v1772 = vld [vmem:[#allocation6 + $0xa0] sm:$0xff]
        %v1773 = vld [vmem:[#allocation6 + $0xa8] sm:$0xff]
        %v1774 = vld [vmem:[#allocation6 + $0xb0] sm:$0xff]
        %v1775 = vld [vmem:[#allocation6 + $0xb8] sm:$0xff]
        %v1776 = vld [vmem:[#allocation6 + $0xc0] sm:$0xff]
        %v1777 = vld [vmem:[#allocation6 + $0xc8] sm:$0xff]
        %v1778 = vld [vmem:[#allocation6 + $0xd0] sm:$0xff]
        %v1779 = vld [vmem:[#allocation6 + $0xd8] sm:$0xff]
        %v1780 = vld [vmem:[#allocation6 + $0xe0] sm:$0xff]
        %v1781 = vld [vmem:[#allocation6 + $0xe8] sm:$0xff]
        %v1782 = vld [vmem:[#allocation6 + $0xf0] sm:$0xff]
        %v1783 = vld [vmem:[#allocation6 + $0xf8] sm:$0xff]
        %v1784 = vld [vmem:[#allocation6 + $0x100] sm:$0xff]
        %v1785 = vld [vmem:[#allocation6 + $0x108] sm:$0xff]
        %v1786 = vld [vmem:[#allocation6 + $0x110] sm:$0xff]
        %v1787 = vld [vmem:[#allocation6 + $0x118] sm:$0xff]
        %v1788 = vld [vmem:[#allocation6 + $0x120] sm:$0xff]
        %v1789 = vld [vmem:[#allocation6 + $0x128] sm:$0xff]
        %v1790 = vld [vmem:[#allocation6 + $0x130] sm:$0xff]
        %v1791 = vld [vmem:[#allocation6 + $0x138] sm:$0xff]
        %v1792 = vld [vmem:[#allocation6 + $0x140] sm:$0xff]
        %v1793 = vld [vmem:[#allocation6 + $0x148] sm:$0xff]
        %v1794 = vld [vmem:[#allocation6 + $0x150] sm:$0xff]
        %v1795 = vld [vmem:[#allocation6 + $0x158] sm:$0xff]
        %v1796 = vld [vmem:[#allocation6 + $0x160] sm:$0xff]
        %v1797 = vld [vmem:[#allocation6 + $0x168] sm:$0xff]
        %v1798 = vld [vmem:[#allocation6 + $0x170] sm:$0xff]
        %v1799 = vld [vmem:[#allocation6 + $0x178] sm:$0xff]
        %1800 = vmatprep.subr.mxu0 %v1798
        %1801 = vmatpush1.msra.mxu0 %v1797
        %1802 = vmatprep.subr.mxu0 %v1795
        %1803 = vmatpush1.msra.mxu0 %v1794
        %1804 = vmatprep.subr.mxu0 %v1792
        %1805 = vmatpush1.msra.mxu0 %v1791
        %1806 = vmatprep.subr.mxu0 %v1789
        %1807 = vmatpush1.msra.mxu0 %v1788
        %1808 = vmatprep.subr.mxu0 %v1786
        %1809 = vmatpush1.msra.mxu0 %v1785
        %1810 = vmatprep.subr.mxu0 %v1783
        %1811 = vmatpush1.msra.mxu0 %v1782
        %1812 = vmatprep.subr.mxu0 %v1780
        %1813 = vmatpush1.msra.mxu0 %v1779
        %1814 = vmatprep.subr.mxu0 %v1777
        %1815 = vmatpush1.msra.mxu0 %v1776
        %1816 = vmatprep.subr.mxu0 %v1774
        %1817 = vmatpush1.msra.mxu0 %v1773
        %1818 = vmatprep.subr.mxu0 %v1771
        %1819 = vmatpush1.msra.mxu0 %v1770
        %1820 = vmatprep.subr.mxu0 %v1768
        %1821 = vmatpush1.msra.mxu0 %v1767
        %1822 = vmatprep.subr.mxu0 %v1765
        %1823 = vmatpush1.msra.mxu0 %v1764
        %1824 = vmatprep.subr.mxu0 %v1762
        %1825 = vmatpush1.msra.mxu0 %v1761
        %1826 = vmatprep.subr.mxu0 %v1759
        %1827 = vmatpush1.msra.mxu0 %v1758
        %1828 = vmatprep.subr.mxu0 %v1756
        %1829 = vmatpush1.msra.mxu0 %v1755
        %1830 = vmatprep.subr.mxu0 %v1753
        %1831 = vmatpush1.msra.mxu0 %v1752
        %1832 = vmatprep.subr.mxu0 0.0
        %1833 = vmatpush2.msra.mxu0 0.0
        %1834 = vmatprep.subr.mxu0 0.0
        %1835 = vmatpush2.msra.mxu0 0.0
        %1836 = vmatprep.subr.mxu0 0.0
        %1837 = vmatpush2.msra.mxu0 0.0
        %1838 = vmatprep.subr.mxu0 0.0
        %1839 = vmatpush2.msra.mxu0 0.0
        %1840 = vmatprep.subr.mxu0 0.0
        %1841 = vmatpush2.msra.mxu0 0.0
        %1842 = vmatprep.subr.mxu0 0.0
        %1843 = vmatpush2.msra.mxu0 0.0
        %1844 = vmatprep.subr.mxu0 0.0
        %1845 = vmatpush2.msra.mxu0 0.0
        %1846 = vmatprep.subr.mxu0 0.0
        %1847 = vmatpush2.msra.mxu0 0.0
        %1848 = vmatprep.subr.mxu0 0.0
        %1849 = vmatpush2.msra.mxu0 0.0
        %1850 = vmatprep.subr.mxu0 0.0
        %1851 = vmatpush2.msra.mxu0 0.0
        %1852 = vmatprep.subr.mxu0 0.0
        %1853 = vmatpush2.msra.mxu0 0.0
        %1854 = vmatprep.subr.mxu0 0.0
        %1855 = vmatpush2.msra.mxu0 0.0
        %1856 = vmatprep.subr.mxu0 0.0
        %1857 = vmatpush2.msra.mxu0 0.0
        %1858 = vmatprep.subr.mxu0 0.0
        %1859 = vmatpush2.msra.mxu0 0.0
        %1860 = vmatprep.subr.mxu0 0.0
        %1861 = vmatpush2.msra.mxu0 0.0
        %1862 = vmatprep.subr.mxu0 0.0
        %1863 = vmatpush2.msra.mxu0 0.0
        %1864 = vmatprep.mubr.f32.mxu0 0.0
        %1865 = vmatmul.mubr.f32.gmra.mxu0 %v1745
        %v1866 = vpop.f32.mrf.mxu0
        %v1867 = vadd.f32 0.0, %v1866
        %v1868 = vpop.f32.mrf.mxu0
        %v1869 = vadd.f32 0.0, %v1868
        %1870 = vdwg.mxu0
        %1871 = vmatprep.subr.mxu0 0.0
        %1872 = vmatpush1.msra.mxu0 %v1799
        %1873 = vmatprep.subr.mxu0 0.0
        %1874 = vmatpush1.msra.mxu0 %v1796
        %1875 = vmatprep.subr.mxu0 0.0
        %1876 = vmatpush1.msra.mxu0 %v1793
        %1877 = vmatprep.subr.mxu0 0.0
        %1878 = vmatpush1.msra.mxu0 %v1790
        %1879 = vmatprep.subr.mxu0 0.0
        %1880 = vmatpush1.msra.mxu0 %v1787
        %1881 = vmatprep.subr.mxu0 0.0
        %1882 = vmatpush1.msra.mxu0 %v1784
        %1883 = vmatprep.subr.mxu0 0.0
        %1884 = vmatpush1.msra.mxu0 %v1781
        %1885 = vmatprep.subr.mxu0 0.0
        %1886 = vmatpush1.msra.mxu0 %v1778
        %1887 = vmatprep.subr.mxu0 0.0
        %1888 = vmatpush1.msra.mxu0 %v1775
        %1889 = vmatprep.subr.mxu0 0.0
        %1890 = vmatpush1.msra.mxu0 %v1772
        %1891 = vmatprep.subr.mxu0 0.0
        %1892 = vmatpush1.msra.mxu0 %v1769
        %1893 = vmatprep.subr.mxu0 0.0
        %1894 = vmatpush1.msra.mxu0 %v1766
        %1895 = vmatprep.subr.mxu0 0.0
        %1896 = vmatpush1.msra.mxu0 %v1763
        %1897 = vmatprep.subr.mxu0 0.0
        %1898 = vmatpush1.msra.mxu0 %v1760
        %1899 = vmatprep.subr.mxu0 0.0
        %1900 = vmatpush1.msra.mxu0 %v1757
        %1901 = vmatprep.subr.mxu0 0.0
        %1902 = vmatpush1.msra.mxu0 %v1754
        %1903 = vmatprep.subr.mxu0 0.0
        %1904 = vmatpush2.msra.mxu0 0.0
        %1905 = vmatprep.subr.mxu0 0.0
        %1906 = vmatpush2.msra.mxu0 0.0
        %1907 = vmatprep.subr.mxu0 0.0
        %1908 = vmatpush2.msra.mxu0 0.0
        %1909 = vmatprep.subr.mxu0 0.0
        %1910 = vmatpush2.msra.mxu0 0.0
        %1911 = vmatprep.subr.mxu0 0.0
        %1912 = vmatpush2.msra.mxu0 0.0
        %1913 = vmatprep.subr.mxu0 0.0
        %1914 = vmatpush2.msra.mxu0 0.0
        %1915 = vmatprep.subr.mxu0 0.0
        %1916 = vmatpush2.msra.mxu0 0.0
        %1917 = vmatprep.subr.mxu0 0.0
        %1918 = vmatpush2.msra.mxu0 0.0
        %1919 = vmatprep.subr.mxu0 0.0
        %1920 = vmatpush2.msra.mxu0 0.0
        %1921 = vmatprep.subr.mxu0 0.0
        %1922 = vmatpush2.msra.mxu0 0.0
        %1923 = vmatprep.subr.mxu0 0.0
        %1924 = vmatpush2.msra.mxu0 0.0
        %1925 = vmatprep.subr.mxu0 0.0
        %1926 = vmatpush2.msra.mxu0 0.0
        %1927 = vmatprep.subr.mxu0 0.0
        %1928 = vmatpush2.msra.mxu0 0.0
        %1929 = vmatprep.subr.mxu0 0.0
        %1930 = vmatpush2.msra.mxu0 0.0
        %1931 = vmatprep.subr.mxu0 0.0
        %1932 = vmatpush2.msra.mxu0 0.0
        %1933 = vmatprep.subr.mxu0 0.0
        %1934 = vmatpush2.msra.mxu0 0.0
        %1935 = vmatprep.mubr.f32.mxu0 0.0
        %1936 = vmatmul.mubr.f32.gmra.mxu0 %v1745
        %v1937 = vpop.f32.mrf.mxu0
        %v1938 = vadd.f32 0.0, %v1937
        %v1939 = vpop.f32.mrf.mxu0
        %1940 = vdwg.mxu0
        %v1941 = vadd.f32 %v1749, %v1867
        %v1942 = vxor.u32 %v1941, 2147483648
        %v1943 = vmul.f32 %v1942, 1.442695
        %v1944 = vpow.pop %v1943
        %v1945 = vadd.f32 %v1944, 1.0
        %v1946 = vrcp.pop %v1945
        %v1947 = vmul.f32 1.0, %v1946
        %v1948 = vadd.f32 %v1750, %v1869
        %v1949 = vxor.u32 %v1948, 2147483648
        %v1950 = vmul.f32 %v1949, 1.442695
        %v1951 = vpow.pop %v1950
        %v1952 = vadd.f32 %v1951, 1.0
        %v1953 = vrcp.pop %v1952
        %v1954 = vmul.f32 1.0, %v1953
        %v1955 = vadd.f32 %v1938, %v235
        %v1956 = vmul.f32 %v1947, %v1955
        %v1957 = vadd.f32 %v1751, %v1956
        %v1958 = vtanh.pop %v1957
        %v1959 = vsub.f32 %v1745, %v1958
        %v1960 = vmul.f32 %v1954, %v1959
        %v1961 = vadd.f32 %v1958, %v1960
        %s1962 = scalar_lea.vmem %s222, 56 [#allocation8]
        %1963 = vst [vmem:[%s1962] sm:$0xff] %v1961
        %1964 = vst [vmem:[#allocation2] sm:$0xff] %v1961
        %s1965 = sand.u32 %s113, 1
        %s1966 = scalar_lea.sflag [#allocation5], %s1965
        %s1967 = sand.u32 %s113, 1
        %s1968 = smul.addr %s1967, 64
        %s1969 = scalar_lea.vmem [#allocation8], %s1968
        // Predicated region
        $region45: #{tpu_custom_call.1} parent=31 // pred_check
          %p1970 = pneg %p123
        $region46: #{tpu_custom_call.1} parent=31 // pred_check_branch
          %1972 = sbr.rel (%p1970) target = $region48
        $region47: #{tpu_custom_call.1} parent=31 // pred_region
          %s1973 = smul.u32 8, %s26
          %s1975 = ssub.s32 1024, 1024
          %1976 = vsyncadd %s1966, %s1975
          %s1977 = sadd.s32 %s25, %s1973
          %s1978 = smul.addr %s1977, 128
          %s1979 = scalar_lea.hbm %s3, %s1978
          %s1980 = sshll.u32 %s1969, 4
          %s1981 = int_to_ptr.vmem [resolvable:$true] %s1980
          %1986 = dma.vmem_to_hbm [thread:$0]  %s1981, 1024, %s1979, %s1966, 128, 128, 8
        $region48: #{tpu_custom_call.1} parent=31 // pred_fallthru
          _
      $region32: #{tpu_custom_call.1} parent=5 // pred_fallthru
        _
      %p1987 = scmp.le.s32.totalorder 2, %s16
      // Predicated region
      $region49: #{tpu_custom_call.1} parent=5 // pred_check
        %p1988 = pneg %p1987
      $region50: #{tpu_custom_call.1} parent=5 // pred_check_branch
        %1990 = sbr.rel (%p1988) target = $region52
      $region51: #{tpu_custom_call.1} parent=5 // pred_region
        %s1991 = ssub.s32 %s16, 2
        // Predicated region
        $region53: #{tpu_custom_call.1} parent=51 // pred_check
          %p1992 = pneg %p129
        $region54: #{tpu_custom_call.1} parent=51 // pred_check_branch
          %1994 = sbr.rel (%p1992) target = $region56
        $region55: #{tpu_custom_call.1} parent=51 // pred_region
          %s1995 = sand.u32 %s114, 1
          %s1996 = scalar_lea.sflag [#allocation5], %s1995
          %s1997 = sand.u32 %s114, 1
          %s1998 = smul.addr %s1997, 64
          %s1999 = scalar_lea.vmem [#allocation8], %s1998
          %2000 = dma.done %s1996, 1024
        $region56: #{tpu_custom_call.1} parent=51 // pred_fallthru
          _
      $region52: #{tpu_custom_call.1} parent=5 // pred_fallthru
        _
    $region6: #{tpu_custom_call.1} parent=1 // loop_footer
      %s20 = sadd.s32 1, %s16
    $region7: #{tpu_custom_call.1} parent=1 // loop_footer_branch
      %15 = sbr.rel target = $region3
    $region8: #{tpu_custom_call.1} parent=1 // loop_exit
      _
    %2001 = vsyncpa [#allocation4], 1
    %s2002 = scalar_lea.sflag [#allocation4], 1
    %2003 = vsyncpa %s2002, 1
    %2004 = vsyncpa [#allocation7], 1
    %2005 = vsyncpa [#allocation5], 1
    %s2006 = scalar_lea.sflag [#allocation5], 1
    %2007 = vsyncpa %s2006, 1

// kernel: tpu_custom_call.1
$region0: #{tpu_custom_call.1}
  #allocation0 [shape = 'u32[]', space=smem, size = 0x4, offset = 0x4, fixed_abs, tag = 'smem constant byte address 0x4 - core index']
  #allocation1 [shape = 'u32[144,128]{1,0:T(1,128)}', space=vmem, size = 0x12000, scoped, tag = 'internal scratch']
  #allocation2 [shape = 'f32[8,128]{1,0:T(8,128)}', space=vmem, size = 0x1000, scoped, tag = 'scratch operand']
  %s0 = inlined_call_operand.hbm [shape: f32[24,8,384], index: 0, kind: input, shape index: {}]
  %s1 = inlined_call_operand.hbm [shape: f32[128,384], index: 1, kind: input, shape index: {}]
  %s2 = inlined_call_operand.vmem [shape: f32[1,128], index: 2, kind: input, shape index: {}]
  %s3 = inlined_call_operand.hbm [shape: f32[24,8,128], index: 3, kind: output, shape index: {}]
  %s4 = sld [smem:[#allocation0]]
  $region57: #{tpu_custom_call.1} parent=0
    _
  %s6 = ssub.s32 1, %s4
  %s7 = scalar_select 0, %s6, %s4
  $region1: #{tpu_custom_call.1} parent=0
    #allocation3 [shape = 'u8[196608]{0}', space=vmem, size = 0x30000, scoped, tag = 'input window, operand 0']
    #allocation4 [shape = 's32[2]{0}', space=sflag, size = 0x8, scoped, tag = 'scoped memory for tpu_custom_call.1']
    #allocation5 [shape = 's32[2]{0}', space=sflag, size = 0x8, scoped, tag = 'scoped memory for tpu_custom_call.1']
    #allocation6 [shape = 'u8[196608]{0}', space=vmem, size = 0x30000, scoped, tag = 'input window, operand 1, single buffered']
    #allocation7 [shape = 's32[1]{0}', space=sflag, size = 0x4, scoped, tag = 'scoped memory for tpu_custom_call.1']
    #allocation8 [shape = 'u8[65536]{0}', space=vmem, size = 0x10000, scoped, tag = 'output window, operand 0']
    %8 = vsyncpa [#allocation4], 0
    %s9 = scalar_lea.sflag [#allocation4], 1
    %10 = vsyncpa %s9, 0
    %11 = vsyncpa [#allocation7], 0
    %12 = vsyncpa [#allocation5], 0
    %s13 = scalar_lea.sflag [#allocation5], 1
    %14 = vsyncpa %s13, 0
    loop: start=0, step=1, limit=5
    $region2: #{tpu_custom_call.1} parent=1 // loop_pre_header
      _
    $region3: #{tpu_custom_call.1} parent=1 // loop_header
      %s16 = sphi 0, %s20
      %p17 = scmp.ge.s32.totalorder %s16, 5
      %s23 = sphi 0, %s35
      %s24 = sphi 0, %s31
      %s25 = sphi 0, %s23
      %s26 = sphi 0, %s24
      %s27 = sphi 0, %s25
      %s28 = sphi 0, %s26
      %s40 = sphi 0, %s42
      %s43 = sphi 0, %s40
      %s44 = sphi 0, %s43
      %s60 = sphi 0, %s44
      %s64 = sphi 0, %s64
      %s66 = sphi 0, %s64
      %s67 = sphi 0, %s66
      %s81 = sphi 0, %s67
      %s85 = sphi 0, %s85
      %s87 = sphi 0, %s85
      %s88 = sphi 0, %s87
      %s102 = sphi 0, %s88
      %s110 = sphi 0, %s112
      %s113 = sphi 0, %s110
      %s114 = sphi 0, %s113
      %s130 = sphi 0, %s114
    $region4: #{tpu_custom_call.1} parent=1 // loop_header_branch
      %19 = sbr.rel (%p17) target = $region8
    $region5: #{tpu_custom_call.1} parent=1 // loop_body
      %s21 = ssub.s32 %s16, 1
      %s22 = ssub.s32 %s16, 2
      %s29 = sadd.s32 1, %s24
      %p30 = scmp.ge.s32.totalorder %s29, 3
      %s31 = scalar_select %p30, 0, %s29
      %s32 = sadd.s32 1, %s23
      %s33 = scalar_select %p30, %s32, %s23
      %p34 = scmp.ge.s32.totalorder %s33, 1
      %s35 = scalar_select %p34, 0, %s33
      %s36 = ssub.s32 %s24, %s31
      %s37 = ssub.s32 %s23, %s35
      %s38 = sor.u32 %s36, %s37
      %p39 = scmp.eq.s32.totalorder %s38, 0
      %s41 = sadd.s32 %s40, 1
      %s42 = scalar_select %p39, %s40, %s41
      %p45 = pneg %p39
      %p46 = scmp.eq.s32.totalorder %s16, 2
      %p47 = por %p45, %p46
      %p48 = scmp.ne.s32.totalorder %s40, %s43
      %p49 = scmp.eq.s32.totalorder %s16, 0
      %p50 = por %p48, %p49
      %p51 = scmp.ne.s32.totalorder %s40, %s43
      %p52 = scmp.eq.s32.totalorder %s21, 2
      %p53 = por %p51, %p52
      %p54 = scmp.ne.s32.totalorder %s43, %s44
      %p55 = scmp.eq.s32.totalorder %s21, 0
      %p56 = por %p54, %p55
      %p57 = scmp.ne.s32.totalorder %s43, %s44
      %p58 = scmp.eq.s32.totalorder %s22, 2
      %p59 = por %p57, %p58
      %p61 = scmp.ne.s32.totalorder %s44, %s60
      %p62 = scmp.eq.s32.totalorder %s22, 0
      %p63 = por %p61, %p62
      %s65 = sadd.s32 %s64, 1
      %p68 = scmp.eq.s32.totalorder %s16, 2
      %p69 = scmp.ne.s32.totalorder %s64, %s66
      %p70 = scmp.eq.s32.totalorder %s16, 0
      %p71 = por %p69, %p70
      %p72 = scmp.ne.s32.totalorder %s64, %s66
      %p73 = scmp.eq.s32.totalorder %s21, 2
      %p74 = por %p72, %p73
      %p75 = scmp.ne.s32.totalorder %s66, %s67
      %p76 = scmp.eq.s32.totalorder %s21, 0
      %p77 = por %p75, %p76
      %p78 = scmp.ne.s32.totalorder %s66, %s67
      %p79 = scmp.eq.s32.totalorder %s22, 2
      %p80 = por %p78, %p79
      %p82 = scmp.ne.s32.totalorder %s67, %s81
      %p83 = scmp.eq.s32.totalorder %s22, 0
      %p84 = por %p82, %p83
      %s86 = sadd.s32 %s85, 1
      %p89 = scmp.eq.s32.totalorder %s16, 2
      %p90 = scmp.ne.s32.totalorder %s85, %s87
      %p91 = scmp.eq.s32.totalorder %s16, 0
      %p92 = por %p90, %p91
      %p93 = scmp.ne.s32.totalorder %s85, %s87
      %p94 = scmp.eq.s32.totalorder %s21, 2
      %p95 = por %p93, %p94
      %p96 = scmp.ne.s32.totalorder %s87, %s88
      %p97 = scmp.eq.s32.totalorder %s21, 0
      %p98 = por %p96, %p97
      %p99 = scmp.ne.s32.totalorder %s87, %s88
      %p100 = scmp.eq.s32.totalorder %s22, 2
      %p101 = por %p99, %p100
      %p103 = scmp.ne.s32.totalorder %s88, %s102
      %p104 = scmp.eq.s32.totalorder %s22, 0
      %p105 = por %p103, %p104
      %s106 = ssub.s32 %s24, %s31
      %s107 = ssub.s32 %s23, %s35
      %s108 = sor.u32 %s106, %s107
      %p109 = scmp.eq.s32.totalorder %s108, 0
      %s111 = sadd.s32 %s110, 1
      %s112 = scalar_select %p109, %s110, %s111
      %p115 = pneg %p109
      %p116 = scmp.eq.s32.totalorder %s16, 2
      %p117 = por %p115, %p116
      %p118 = scmp.ne.s32.totalorder %s110, %s113
      %p119 = scmp.eq.s32.totalorder %s16, 0
      %p120 = por %p118, %p119
      %p121 = scmp.ne.s32.totalorder %s110, %s113
      %p122 = scmp.eq.s32.totalorder %s21, 2
      %p123 = por %p121, %p122
      %p124 = scmp.ne.s32.totalorder %s113, %s114
      %p125 = scmp.eq.s32.totalorder %s21, 0
      %p126 = por %p124, %p125
      %p127 = scmp.ne.s32.totalorder %s113, %s114
      %p128 = scmp.eq.s32.totalorder %s22, 2
      %p129 = por %p127, %p128
      %p131 = scmp.ne.s32.totalorder %s114, %s130
      %p132 = scmp.eq.s32.totalorder %s22, 0
      %p133 = por %p131, %p132
      %p134 = scmp.le.s32.totalorder 1, %s16
      %p135 = scmp.lt.s32.totalorder %s16, 4
      %p136 = pnand %p134, %p135
      %p137 = pneg %p136
      // Predicated region
      $region9: #{tpu_custom_call.1} parent=5 // pred_check
        _
      $region10: #{tpu_custom_call.1} parent=5 // pred_check_branch
        %139 = sbr.rel (%p136) target = $region12
      $region11: #{tpu_custom_call.1} parent=5 // pred_region
        %s140 = ssub.s32 %s16, 1
        // Predicated region
        $region13: #{tpu_custom_call.1} parent=11 // pred_check
          %p141 = pneg %p77
        $region14: #{tpu_custom_call.1} parent=11 // pred_check_branch
          %143 = sbr.rel (%p141) target = $region16
        $region15: #{tpu_custom_call.1} parent=11 // pred_region
          %s145 = ssub.s32 6144, 6144
          %146 = vsyncadd [#allocation7], %s145
          %s147 = sshll.u32 [#allocation6], 4
          %s148 = int_to_ptr.vmem [resolvable:$true] %s147
          %153 = dma.hbm_to_vmem [thread:$0]  %s1, 6144, %s148, [#allocation7], 384, 384, 24
        $region16: #{tpu_custom_call.1} parent=11 // pred_fallthru
          _
        // Predicated region
        $region17: #{tpu_custom_call.1} parent=11 // pred_check
          %p154 = pneg %p98
        $region18: #{tpu_custom_call.1} parent=11 // pred_check_branch
          %156 = sbr.rel (%p154) target = $region20
        $region19: #{tpu_custom_call.1} parent=11 // pred_region
          _
        $region20: #{tpu_custom_call.1} parent=11 // pred_fallthru
          _
      $region12: #{tpu_custom_call.1} parent=5 // pred_fallthru
        _
      %p157 = scmp.lt.s32.totalorder %s16, 3
      // Predicated region
      $region21: #{tpu_custom_call.1} parent=5 // pred_check
        %p158 = pneg %p157
      $region22: #{tpu_custom_call.1} parent=5 // pred_check_branch
        %160 = sbr.rel (%p158) target = $region24
      $region23: #{tpu_custom_call.1} parent=5 // pred_region
        // Predicated region
        $region25: #{tpu_custom_call.1} parent=23 // pred_check
          %p161 = pneg %p50
        $region26: #{tpu_custom_call.1} parent=23 // pred_check_branch
          %163 = sbr.rel (%p161) target = $region28
        $region27: #{tpu_custom_call.1} parent=23 // pred_region
          %s164 = sand.u32 %s40, 1
          %s165 = scalar_lea.sflag [#allocation4], %s164
          %s166 = sand.u32 %s40, 1
          %s167 = smul.addr %s166, 192
          %s168 = scalar_lea.vmem [#allocation3], %s167
          %s169 = smul.u32 8, %s24
          %s171 = ssub.s32 3072, 3072
          %172 = vsyncadd %s165, %s171
          %s173 = smul.addr %s23, 3
          %s174 = smul.addr %s169, 3
          %s175 = sadd.s32 %s173, %s174
          %s176 = smul.addr %s175, 128
          %s177 = scalar_lea.hbm %s0, %s176
          %s178 = sshll.u32 %s168, 4
          %s179 = int_to_ptr.vmem [resolvable:$true] %s178
          %184 = dma.hbm_to_vmem [thread:$0]  %s177, 3072, %s179, %s165, 384, 384, 24
        $region28: #{tpu_custom_call.1} parent=23 // pred_fallthru
          _
      $region24: #{tpu_custom_call.1} parent=5 // pred_fallthru
        _
      %p185 = scmp.le.s32.totalorder 1, %s16
      %p186 = scmp.lt.s32.totalorder %s16, 4
      %p187 = pnand %p185, %p186
      %p188 = pneg %p187
      // Predicated region
      $region29: #{tpu_custom_call.1} parent=5 // pred_check
        _
      $region30: #{tpu_custom_call.1} parent=5 // pred_check_branch
        %190 = sbr.rel (%p187) target = $region32
      $region31: #{tpu_custom_call.1} parent=5 // pred_region
        %s191 = ssub.s32 %s16, 1
        %s192 = sand.u32 %s43, 1
        %s193 = scalar_lea.sflag [#allocation4], %s192
        %s194 = sand.u32 %s43, 1
        %s195 = smul.addr %s194, 192
        %s196 = scalar_lea.vmem [#allocation3], %s195
        // Predicated region
        $region33: #{tpu_custom_call.1} parent=31 // pred_check
          %p197 = pneg %p56
        $region34: #{tpu_custom_call.1} parent=31 // pred_check_branch
          %199 = sbr.rel (%p197) target = $region36
        $region35: #{tpu_custom_call.1} parent=31 // pred_region
          %200 = dma.done %s193, 3072
        $region36: #{tpu_custom_call.1} parent=31 // pred_fallthru
          _
        // Predicated region
        $region37: #{tpu_custom_call.1} parent=31 // pred_check
          %p201 = pneg %p77
        $region38: #{tpu_custom_call.1} parent=31 // pred_check_branch
          %203 = sbr.rel (%p201) target = $region40
        $region39: #{tpu_custom_call.1} parent=31 // pred_region
          %204 = dma.done [#allocation7], 6144
        $region40: #{tpu_custom_call.1} parent=31 // pred_fallthru
          _
        %s205 = sand.u32 %s43, 1
        %s206 = scalar_lea.sflag [#allocation4], %s205
        %s207 = sand.u32 %s43, 1
        %s208 = smul.addr %s207, 192
        %s209 = scalar_lea.vmem [#allocation3], %s208
        %p210 = pneg %p56
        %p211 = pneg %p53
        %p212 = pneg %p77
        %p213 = pneg %p74
        %p214 = pneg %p98
        %p215 = pneg %p95
        %p216 = pneg %p126
        %p217 = pneg %p123
        %s218 = sand.u32 %s113, 1
        %s219 = scalar_lea.sflag [#allocation5], %s218
        %s220 = sand.u32 %s113, 1
        %s221 = smul.addr %s220, 64
        %s222 = scalar_lea.vmem [#allocation8], %s221
        %s223 = smul.u32 8, %s26
        %s224 = smul.u32 8, %s26
        %p225 = scmp.eq.s32.totalorder %s26, 0
        // Predicated region
        $region41: #{tpu_custom_call.1} parent=31 // pred_check
          %p226 = pneg %p225
        $region42: #{tpu_custom_call.1} parent=31 // pred_check_branch
          %228 = sbr.rel (%p226) target = $region44
        $region43: #{tpu_custom_call.1} parent=31 // pred_region
          %229 = vst [vmem:[#allocation2] sm:$0xff] 0.0
        $region44: #{tpu_custom_call.1} parent=31 // pred_fallthru
          _
        %v230 = vld [vmem:[%s2] sm:$0x1]
        %v232 = vlaneseq
        %v233 = vshrl.u32 %v232, 7
        %v234 = vsub.s32 0, %v233
        %v235 = vrot.slane %v230, %v234
        %v237 = vld [vmem:[#allocation2] sm:$0xff]
        %v238 = vld [vmem:[%s196] sm:$0xff]
        %v239 = vld [vmem:[%s196 + $0x8] sm:$0xff]
        %v240 = vld [vmem:[%s196 + $0x10] sm:$0xff]
        %v241 = vld [vmem:[#allocation6] sm:$0xff]
        %v242 = vld [vmem:[#allocation6 + $0x8] sm:$0xff]
        %v243 = vld [vmem:[#allocation6 + $0x10] sm:$0xff]
        %v244 = vld [vmem:[#allocation6 + $0x18] sm:$0xff]
        %v245 = vld [vmem:[#allocation6 + $0x20] sm:$0xff]
        %v246 = vld [vmem:[#allocation6 + $0x28] sm:$0xff]
        %v247 = vld [vmem:[#allocation6 + $0x30] sm:$0xff]
        %v248 = vld [vmem:[#allocation6 + $0x38] sm:$0xff]
        %v249 = vld [vmem:[#allocation6 + $0x40] sm:$0xff]
        %v250 = vld [vmem:[#allocation6 + $0x48] sm:$0xff]
        %v251 = vld [vmem:[#allocation6 + $0x50] sm:$0xff]
        %v252 = vld [vmem:[#allocation6 + $0x58] sm:$0xff]
        %v253 = vld [vmem:[#allocation6 + $0x60] sm:$0xff]
        %v254 = vld [vmem:[#allocation6 + $0x68] sm:$0xff]
        %v255 = vld [vmem:[#allocation6 + $0x70] sm:$0xff]
        %v256 = vld [vmem:[#allocation6 + $0x78] sm:$0xff]
        %v257 = vld [vmem:[#allocation6 + $0x80] sm:$0xff]
        %v258 = vld [vmem:[#allocation6 + $0x88] sm:$0xff]
        %v259 = vld [vmem:[#allocation6 + $0x90] sm:$0xff]
        %v260 = vld [vmem:[#allocation6 + $0x98] sm:$0xff]
        %v261 = vld [vmem:[#allocation6 + $0xa0] sm:$0xff]
        %v262 = vld [vmem:[#allocation6 + $0xa8] sm:$0xff]
        %v263 = vld [vmem:[#allocation6 + $0xb0] sm:$0xff]
        %v264 = vld [vmem:[#allocation6 + $0xb8] sm:$0xff]
        %v265 = vld [vmem:[#allocation6 + $0xc0] sm:$0xff]
        %v266 = vld [vmem:[#allocation6 + $0xc8] sm:$0xff]
        %v267 = vld [vmem:[#allocation6 + $0xd0] sm:$0xff]
        %v268 = vld [vmem:[#allocation6 + $0xd8] sm:$0xff]
        %v269 = vld [vmem:[#allocation6 + $0xe0] sm:$0xff]
        %v270 = vld [vmem:[#allocation6 + $0xe8] sm:$0xff]
        %v271 = vld [vmem:[#allocation6 + $0xf0] sm:$0xff]
        %v272 = vld [vmem:[#allocation6 + $0xf8] sm:$0xff]
        %v273 = vld [vmem:[#allocation6 + $0x100] sm:$0xff]
        %v274 = vld [vmem:[#allocation6 + $0x108] sm:$0xff]
        %v275 = vld [vmem:[#allocation6 + $0x110] sm:$0xff]
        %v276 = vld [vmem:[#allocation6 + $0x118] sm:$0xff]
        %v277 = vld [vmem:[#allocation6 + $0x120] sm:$0xff]
        %v278 = vld [vmem:[#allocation6 + $0x128] sm:$0xff]
        %v279 = vld [vmem:[#allocation6 + $0x130] sm:$0xff]
        %v280 = vld [vmem:[#allocation6 + $0x138] sm:$0xff]
        %v281 = vld [vmem:[#allocation6 + $0x140] sm:$0xff]
        %v282 = vld [vmem:[#allocation6 + $0x148] sm:$0xff]
        %v283 = vld [vmem:[#allocation6 + $0x150] sm:$0xff]
        %v284 = vld [vmem:[#allocation6 + $0x158] sm:$0xff]
        %v285 = vld [vmem:[#allocation6 + $0x160] sm:$0xff]
        %v286 = vld [vmem:[#allocation6 + $0x168] sm:$0xff]
        %v287 = vld [vmem:[#allocation6 + $0x170] sm:$0xff]
        %v288 = vld [vmem:[#allocation6 + $0x178] sm:$0xff]
        %289 = vmatprep.subr.mxu0 %v287
        %290 = vmatpush1.msra.mxu0 %v286
        %291 = vmatprep.subr.mxu0 %v284
        %292 = vmatpush1.msra.mxu0 %v283
        %293 = vmatprep.subr.mxu0 %v281
        %294 = vmatpush1.msra.mxu0 %v280
        %295 = vmatprep.subr.mxu0 %v278
        %296 = vmatpush1.msra.mxu0 %v277
        %297 = vmatprep.subr.mxu0 %v275
        %298 = vmatpush1.msra.mxu0 %v274
        %299 = vmatprep.subr.mxu0 %v272
        %300 = vmatpush1.msra.mxu0 %v271
        %301 = vmatprep.subr.mxu0 %v269
        %302 = vmatpush1.msra.mxu0 %v268
        %303 = vmatprep.subr.mxu0 %v266
        %304 = vmatpush1.msra.mxu0 %v265
        %305 = vmatprep.subr.mxu0 %v263
        %306 = vmatpush1.msra.mxu0 %v262
        %307 = vmatprep.subr.mxu0 %v260
        %308 = vmatpush1.msra.mxu0 %v259
        %309 = vmatprep.subr.mxu0 %v257
        %310 = vmatpush1.msra.mxu0 %v256
        %311 = vmatprep.subr.mxu0 %v254
        %312 = vmatpush1.msra.mxu0 %v253
        %313 = vmatprep.subr.mxu0 %v251
        %314 = vmatpush1.msra.mxu0 %v250
        %315 = vmatprep.subr.mxu0 %v248
        %316 = vmatpush1.msra.mxu0 %v247
        %317 = vmatprep.subr.mxu0 %v245
        %318 = vmatpush1.msra.mxu0 %v244
        %319 = vmatprep.subr.mxu0 %v242
        %320 = vmatpush1.msra.mxu0 %v241
        %321 = vmatprep.subr.mxu0 0.0
        %322 = vmatpush2.msra.mxu0 0.0
        %323 = vmatprep.subr.mxu0 0.0
        %324 = vmatpush2.msra.mxu0 0.0
        %325 = vmatprep.subr.mxu0 0.0
        %326 = vmatpush2.msra.mxu0 0.0
        %327 = vmatprep.subr.mxu0 0.0
        %328 = vmatpush2.msra.mxu0 0.0
        %329 = vmatprep.subr.mxu0 0.0
        %330 = vmatpush2.msra.mxu0 0.0
        %331 = vmatprep.subr.mxu0 0.0
        %332 = vmatpush2.msra.mxu0 0.0
        %333 = vmatprep.subr.mxu0 0.0
        %334 = vmatpush2.msra.mxu0 0.0
        %335 = vmatprep.subr.mxu0 0.0
        %336 = vmatpush2.msra.mxu0 0.0
        %337 = vmatprep.subr.mxu0 0.0
        %338 = vmatpush2.msra.mxu0 0.0
        %339 = vmatprep.subr.mxu0 0.0
        %340 = vmatpush2.msra.mxu0 0.0
        %341 = vmatprep.subr.mxu0 0.0
        %342 = vmatpush2.msra.mxu0 0.0
        %343 = vmatprep.subr.mxu0 0.0
        %344 = vmatpush2.msra.mxu0 0.0
        %345 = vmatprep.subr.mxu0 0.0
        %346 = vmatpush2.msra.mxu0 0.0
        %347 = vmatprep.subr.mxu0 0.0
        %348 = vmatpush2.msra.mxu0 0.0
        %349 = vmatprep.subr.mxu0 0.0
        %350 = vmatpush2.msra.mxu0 0.0
        %351 = vmatprep.subr.mxu0 0.0
        %352 = vmatpush2.msra.mxu0 0.0
        %353 = vmatprep.mubr.f32.mxu0 0.0
        %354 = vmatmul.mubr.f32.gmra.mxu0 %v237
        %v355 = vpop.f32.mrf.mxu0
        %v356 = vadd.f32 0.0, %v355
        %v357 = vpop.f32.mrf.mxu0
        %v358 = vadd.f32 0.0, %v357
        %359 = vdwg.mxu0
        %360 = vmatprep.subr.mxu0 0.0
        %361 = vmatpush1.msra.mxu0 %v288
        %362 = vmatprep.subr.mxu0 0.0
        %363 = vmatpush1.msra.mxu0 %v285
        %364 = vmatprep.subr.mxu0 0.0
        %365 = vmatpush1.msra.mxu0 %v282
        %366 = vmatprep.subr.mxu0 0.0
        %367 = vmatpush1.msra.mxu0 %v279
        %368 = vmatprep.subr.mxu0 0.0
        %369 = vmatpush1.msra.mxu0 %v276
        %370 = vmatprep.subr.mxu0 0.0
        %371 = vmatpush1.msra.mxu0 %v273
        %372 = vmatprep.subr.mxu0 0.0
        %373 = vmatpush1.msra.mxu0 %v270
        %374 = vmatprep.subr.mxu0 0.0
        %375 = vmatpush1.msra.mxu0 %v267
        %376 = vmatprep.subr.mxu0 0.0
        %377 = vmatpush1.msra.mxu0 %v264
        %378 = vmatprep.subr.mxu0 0.0
        %379 = vmatpush1.msra.mxu0 %v261
        %380 = vmatprep.subr.mxu0 0.0
        %381 = vmatpush1.msra.mxu0 %v258
        %382 = vmatprep.subr.mxu0 0.0
        %383 = vmatpush1.msra.mxu0 %v255
        %384 = vmatprep.subr.mxu0 0.0
        %385 = vmatpush1.msra.mxu0 %v252
        %386 = vmatprep.subr.mxu0 0.0
        %387 = vmatpush1.msra.mxu0 %v249
        %388 = vmatprep.subr.mxu0 0.0
        %389 = vmatpush1.msra.mxu0 %v246
        %390 = vmatprep.subr.mxu0 0.0
        %391 = vmatpush1.msra.mxu0 %v243
        %392 = vmatprep.subr.mxu0 0.0
        %393 = vmatpush2.msra.mxu0 0.0
        %394 = vmatprep.subr.mxu0 0.0
        %395 = vmatpush2.msra.mxu0 0.0
        %396 = vmatprep.subr.mxu0 0.0
        %397 = vmatpush2.msra.mxu0 0.0
        %398 = vmatprep.subr.mxu0 0.0
        %399 = vmatpush2.msra.mxu0 0.0
        %400 = vmatprep.subr.mxu0 0.0
        %401 = vmatpush2.msra.mxu0 0.0
        %402 = vmatprep.subr.mxu0 0.0
        %403 = vmatpush2.msra.mxu0 0.0
        %404 = vmatprep.subr.mxu0 0.0
        %405 = vmatpush2.msra.mxu0 0.0
        %406 = vmatprep.subr.mxu0 0.0
        %407 = vmatpush2.msra.mxu0 0.0
        %408 = vmatprep.subr.mxu0 0.0
        %409 = vmatpush2.msra.mxu0 0.0
        %410 = vmatprep.subr.mxu0 0.0
        %411 = vmatpush2.msra.mxu0 0.0
        %412 = vmatprep.subr.mxu0 0.0
        %413 = vmatpush2.msra.mxu0 0.0
        %414 = vmatprep.subr.mxu0 0.0
        %415 = vmatpush2.msra.mxu0 0.0
        %416 = vmatprep.subr.mxu0 0.0
        %417 = vmatpush2.msra.mxu0 0.0
        %418 = vmatprep.subr.mxu0 0.0
        %419 = vmatpush2.msra.mxu0 0.0
        %420 = vmatprep.subr.mxu0 0.0
        %421 = vmatpush2.msra.mxu0 0.0
        %422 = vmatprep.subr.mxu0 0.0
        %423 = vmatpush2.msra.mxu0 0.0
        %424 = vmatprep.mubr.f32.mxu0 0.0
        %425 = vmatmul.mubr.f32.gmra.mxu0 %v237
        %v426 = vpop.f32.mrf.mxu0
        %v427 = vadd.f32 0.0, %v426
        %v428 = vpop.f32.mrf.mxu0
        %429 = vdwg.mxu0
        %v430 = vadd.f32 %v238, %v356
        %v431 = vxor.u32 %v430, 2147483648
        %v432 = vmul.f32 %v431, 1.442695
        %v433 = vpow.pop %v432
        %v434 = vadd.f32 %v433, 1.0
        %v435 = vrcp.pop %v434
        %v436 = vmul.f32 1.0, %v435
        %v437 = vadd.f32 %v239, %v358
        %v438 = vxor.u32 %v437, 2147483648
        %v439 = vmul.f32 %v438, 1.442695
        %v440 = vpow.pop %v439
        %v441 = vadd.f32 %v440, 1.0
        %v442 = vrcp.pop %v441
        %v443 = vmul.f32 1.0, %v442
        %v444 = vadd.f32 %v427, %v235
        %v445 = vmul.f32 %v436, %v444
        %v446 = vadd.f32 %v240, %v445
        %v447 = vtanh.pop %v446
        %v448 = vsub.f32 %v237, %v447
        %v449 = vmul.f32 %v443, %v448
        %v450 = vadd.f32 %v447, %v449
        %451 = vst [vmem:[%s222] sm:$0xff] %v450
        %s452 = scalar_lea.vmem %s196, 24 [#allocation3]
        %v453 = vld [vmem:[%s452] sm:$0xff]
        %v454 = vld [vmem:[%s452 + $0x8] sm:$0xff]
        %v455 = vld [vmem:[%s452 + $0x10] sm:$0xff]
        %v456 = vld [vmem:[#allocation6] sm:$0xff]
        %v457 = vld [vmem:[#allocation6 + $0x8] sm:$0xff]
        %v458 = vld [vmem:[#allocation6 + $0x10] sm:$0xff]
        %v459 = vld [vmem:[#allocation6 + $0x18] sm:$0xff]
        %v460 = vld [vmem:[#allocation6 + $0x20] sm:$0xff]
        %v461 = vld [vmem:[#allocation6 + $0x28] sm:$0xff]
        %v462 = vld [vmem:[#allocation6 + $0x30] sm:$0xff]
        %v463 = vld [vmem:[#allocation6 + $0x38] sm:$0xff]
        %v464 = vld [vmem:[#allocation6 + $0x40] sm:$0xff]
        %v465 = vld [vmem:[#allocation6 + $0x48] sm:$0xff]
        %v466 = vld [vmem:[#allocation6 + $0x50] sm:$0xff]
        %v467 = vld [vmem:[#allocation6 + $0x58] sm:$0xff]
        %v468 = vld [vmem:[#allocation6 + $0x60] sm:$0xff]
        %v469 = vld [vmem:[#allocation6 + $0x68] sm:$0xff]
        %v470 = vld [vmem:[#allocation6 + $0x70] sm:$0xff]
        %v471 = vld [vmem:[#allocation6 + $0x78] sm:$0xff]
        %v472 = vld [vmem:[#allocation6 + $0x80] sm:$0xff]
        %v473 = vld [vmem:[#allocation6 + $0x88] sm:$0xff]
        %v474 = vld [vmem:[#allocation6 + $0x90] sm:$0xff]
        %v475 = vld [vmem:[#allocation6 + $0x98] sm:$0xff]
        %v476 = vld [vmem:[#allocation6 + $0xa0] sm:$0xff]
        %v477 = vld [vmem:[#allocation6 + $0xa8] sm:$0xff]
        %v478 = vld [vmem:[#allocation6 + $0xb0] sm:$0xff]
        %v479 = vld [vmem:[#allocation6 + $0xb8] sm:$0xff]
        %v480 = vld [vmem:[#allocation6 + $0xc0] sm:$0xff]
        %v481 = vld [vmem:[#allocation6 + $0xc8] sm:$0xff]
        %v482 = vld [vmem:[#allocation6 + $0xd0] sm:$0xff]
        %v483 = vld [vmem:[#allocation6 + $0xd8] sm:$0xff]
        %v484 = vld [vmem:[#allocation6 + $0xe0] sm:$0xff]
        %v485 = vld [vmem:[#allocation6 + $0xe8] sm:$0xff]
        %v486 = vld [vmem:[#allocation6 + $0xf0] sm:$0xff]
        %v487 = vld [vmem:[#allocation6 + $0xf8] sm:$0xff]
        %v488 = vld [vmem:[#allocation6 + $0x100] sm:$0xff]
        %v489 = vld [vmem:[#allocation6 + $0x108] sm:$0xff]
        %v490 = vld [vmem:[#allocation6 + $0x110] sm:$0xff]
        %v491 = vld [vmem:[#allocation6 + $0x118] sm:$0xff]
        %v492 = vld [vmem:[#allocation6 + $0x120] sm:$0xff]
        %v493 = vld [vmem:[#allocation6 + $0x128] sm:$0xff]
        %v494 = vld [vmem:[#allocation6 + $0x130] sm:$0xff]
        %v495 = vld [vmem:[#allocation6 + $0x138] sm:$0xff]
        %v496 = vld [vmem:[#allocation6 + $0x140] sm:$0xff]
        %v497 = vld [vmem:[#allocation6 + $0x148] sm:$0xff]
        %v498 = vld [vmem:[#allocation6 + $0x150] sm:$0xff]
        %v499 = vld [vmem:[#allocation6 + $0x158] sm:$0xff]
        %v500 = vld [vmem:[#allocation6 + $0x160] sm:$0xff]
        %v501 = vld [vmem:[#allocation6 + $0x168] sm:$0xff]
        %v502 = vld [vmem:[#allocation6 + $0x170] sm:$0xff]
        %v503 = vld [vmem:[#allocation6 + $0x178] sm:$0xff]
        %504 = vmatprep.subr.mxu0 %v502
        %505 = vmatpush1.msra.mxu0 %v501
        %506 = vmatprep.subr.mxu0 %v499
        %507 = vmatpush1.msra.mxu0 %v498
        %508 = vmatprep.subr.mxu0 %v496
        %509 = vmatpush1.msra.mxu0 %v495
        %510 = vmatprep.subr.mxu0 %v493
        %511 = vmatpush1.msra.mxu0 %v492
        %512 = vmatprep.subr.mxu0 %v490
        %513 = vmatpush1.msra.mxu0 %v489
        %514 = vmatprep.subr.mxu0 %v487
        %515 = vmatpush1.msra.mxu0 %v486
        %516 = vmatprep.subr.mxu0 %v484
        %517 = vmatpush1.msra.mxu0 %v483
        %518 = vmatprep.subr.mxu0 %v481
        %519 = vmatpush1.msra.mxu0 %v480
        %520 = vmatprep.subr.mxu0 %v478
        %521 = vmatpush1.msra.mxu0 %v477
        %522 = vmatprep.subr.mxu0 %v475
        %523 = vmatpush1.msra.mxu0 %v474
        %524 = vmatprep.subr.mxu0 %v472
        %525 = vmatpush1.msra.mxu0 %v471
        %526 = vmatprep.subr.mxu0 %v469
        %527 = vmatpush1.msra.mxu0 %v468
        %528 = vmatprep.subr.mxu0 %v466
        %529 = vmatpush1.msra.mxu0 %v465
        %530 = vmatprep.subr.mxu0 %v463
        %531 = vmatpush1.msra.mxu0 %v462
        %532 = vmatprep.subr.mxu0 %v460
        %533 = vmatpush1.msra.mxu0 %v459
        %534 = vmatprep.subr.mxu0 %v457
        %535 = vmatpush1.msra.mxu0 %v456
        %536 = vmatprep.subr.mxu0 0.0
        %537 = vmatpush2.msra.mxu0 0.0
        %538 = vmatprep.subr.mxu0 0.0
        %539 = vmatpush2.msra.mxu0 0.0
        %540 = vmatprep.subr.mxu0 0.0
        %541 = vmatpush2.msra.mxu0 0.0
        %542 = vmatprep.subr.mxu0 0.0
        %543 = vmatpush2.msra.mxu0 0.0
        %544 = vmatprep.subr.mxu0 0.0
        %545 = vmatpush2.msra.mxu0 0.0
        %546 = vmatprep.subr.mxu0 0.0
        %547 = vmatpush2.msra.mxu0 0.0
        %548 = vmatprep.subr.mxu0 0.0
        %549 = vmatpush2.msra.mxu0 0.0
        %550 = vmatprep.subr.mxu0 0.0
        %551 = vmatpush2.msra.mxu0 0.0
        %552 = vmatprep.subr.mxu0 0.0
        %553 = vmatpush2.msra.mxu0 0.0
        %554 = vmatprep.subr.mxu0 0.0
        %555 = vmatpush2.msra.mxu0 0.0
        %556 = vmatprep.subr.mxu0 0.0
        %557 = vmatpush2.msra.mxu0 0.0
        %558 = vmatprep.subr.mxu0 0.0
        %559 = vmatpush2.msra.mxu0 0.0
        %560 = vmatprep.subr.mxu0 0.0
        %561 = vmatpush2.msra.mxu0 0.0
        %562 = vmatprep.subr.mxu0 0.0
        %563 = vmatpush2.msra.mxu0 0.0
        %564 = vmatprep.subr.mxu0 0.0
        %565 = vmatpush2.msra.mxu0 0.0
        %566 = vmatprep.subr.mxu0 0.0
        %567 = vmatpush2.msra.mxu0 0.0
        %568 = vmatprep.mubr.f32.mxu0 0.0
        %569 = vmatmul.mubr.f32.gmra.mxu0 %v450
        %v570 = vpop.f32.mrf.mxu0
        %v571 = vadd.f32 0.0, %v570
        %v572 = vpop.f32.mrf.mxu0
        %v573 = vadd.f32 0.0, %v572
        %574 = vdwg.mxu0
        %575 = vmatprep.subr.mxu0 0.0
        %576 = vmatpush1.msra.mxu0 %v503
        %577 = vmatprep.subr.mxu0 0.0
        %578 = vmatpush1.msra.mxu0 %v500
        %579 = vmatprep.subr.mxu0 0.0
        %580 = vmatpush1.msra.mxu0 %v497
        %581 = vmatprep.subr.mxu0 0.0
        %582 = vmatpush1.msra.mxu0 %v494
        %583 = vmatprep.subr.mxu0 0.0
        %584 = vmatpush1.msra.mxu0 %v491
        %585 = vmatprep.subr.mxu0 0.0
        %586 = vmatpush1.msra.mxu0 %v488
        %587 = vmatprep.subr.mxu0 0.0
        %588 = vmatpush1.msra.mxu0 %v485
        %589 = vmatprep.subr.mxu0 0.0
        %590 = vmatpush1.msra.mxu0 %v482
        %591 = vmatprep.subr.mxu0 0.0
        %592 = vmatpush1.msra.mxu0 %v479
        %593 = vmatprep.subr.mxu0 0.0
        %594 = vmatpush1.msra.mxu0 %v476
        %595 = vmatprep.subr.mxu0 0.0
        %596 = vmatpush1.msra.mxu0 %v473
        %597 = vmatprep.subr.mxu0 0.0
        %598 = vmatpush1.msra.mxu0 %v470
        %599 = vmatprep.subr.mxu0 0.0
        %600 = vmatpush1.msra.mxu0 %v467
        %601 = vmatprep.subr.mxu0 0.0
        %602 = vmatpush1.msra.mxu0 %v464
        %603 = vmatprep.subr.mxu0 0.0
        %604 = vmatpush1.msra.mxu0 %v461
        %605 = vmatprep.subr.mxu0 0.0
        %606 = vmatpush1.msra.mxu0 %v458
        %607 = vmatprep.subr.mxu0 0.0
        %608 = vmatpush2.msra.mxu0 0.0
        %609 = vmatprep.subr.mxu0 0.0
        %610 = vmatpush2.msra.mxu0 0.0
        %611 = vmatprep.subr.mxu0 0.0
        %612 = vmatpush2.msra.mxu0 0.0
        %613 = vmatprep.subr.mxu0 0.0
        %614 = vmatpush2.msra.mxu0 0.0
        %615 = vmatprep.subr.mxu0 0.0
        %616 = vmatpush2.msra.mxu0 0.0
        %617 = vmatprep.subr.mxu0 0.0
        %618 = vmatpush2.msra.mxu0 0.0
        %619 = vmatprep.subr.mxu0 0.0
        %620 = vmatpush2.msra.mxu0 0.0
        %621 = vmatprep.subr.mxu0 0.0
        %622 = vmatpush2.msra.mxu0 0.0
        %623 = vmatprep.subr.mxu0 0.0
        %624 = vmatpush2.msra.mxu0 0.0
        %625 = vmatprep.subr.mxu0 0.0
        %626 = vmatpush2.msra.mxu0 0.0
        %627 = vmatprep.subr.mxu0 0.0
        %628 = vmatpush2.msra.mxu0 0.0
        %629 = vmatprep.subr.mxu0 0.0
        %630 = vmatpush2.msra.mxu0 0.0
        %631 = vmatprep.subr.mxu0 0.0
        %632 = vmatpush2.msra.mxu0 0.0
        %633 = vmatprep.subr.mxu0 0.0
        %634 = vmatpush2.msra.mxu0 0.0
        %635 = vmatprep.subr.mxu0 0.0
        %636 = vmatpush2.msra.mxu0 0.0
        %637 = vmatprep.subr.mxu0 0.0
        %638 = vmatpush2.msra.mxu0 0.0
        %639 = vmatprep.mubr.f32.mxu0 0.0
        %640 = vmatmul.mubr.f32.gmra.mxu0 %v450
        %v641 = vpop.f32.mrf.mxu0
        %v642 = vadd.f32 0.0, %v641
        %v643 = vpop.f32.mrf.mxu0
        %644 = vdwg.mxu0
        %v645 = vadd.f32 %v453, %v571
        %v646 = vxor.u32 %v645, 2147483648
        %v647 = vmul.f32 %v646, 1.442695
        %v648 = vpow.pop %v647
        %v649 = vadd.f32 %v648, 1.0
        %v650 = vrcp.pop %v649
        %v651 = vmul.f32 1.0, %v650
        %v652 = vadd.f32 %v454, %v573
        %v653 = vxor.u32 %v652, 2147483648
        %v654 = vmul.f32 %v653, 1.442695
        %v655 = vpow.pop %v654
        %v656 = vadd.f32 %v655, 1.0
        %v657 = vrcp.pop %v656
        %v658 = vmul.f32 1.0, %v657
        %v659 = vadd.f32 %v642, %v235
        %v660 = vmul.f32 %v651, %v659
        %v661 = vadd.f32 %v455, %v660
        %v662 = vtanh.pop %v661
        %v663 = vsub.f32 %v450, %v662
        %v664 = vmul.f32 %v658, %v663
        %v665 = vadd.f32 %v662, %v664
        %s666 = scalar_lea.vmem %s222, 8 [#allocation8]
        %667 = vst [vmem:[%s666] sm:$0xff] %v665
        %s668 = scalar_lea.vmem %s196, 48 [#allocation3]
        %v669 = vld [vmem:[%s668] sm:$0xff]
        %v670 = vld [vmem:[%s668 + $0x8] sm:$0xff]
        %v671 = vld [vmem:[%s668 + $0x10] sm:$0xff]
        %v672 = vld [vmem:[#allocation6] sm:$0xff]
        %v673 = vld [vmem:[#allocation6 + $0x8] sm:$0xff]
        %v674 = vld [vmem:[#allocation6 + $0x10] sm:$0xff]
        %v675 = vld [vmem:[#allocation6 + $0x18] sm:$0xff]
        %v676 = vld [vmem:[#allocation6 + $0x20] sm:$0xff]
        %v677 = vld [vmem:[#allocation6 + $0x28] sm:$0xff]
        %v678 = vld [vmem:[#allocation6 + $0x30] sm:$0xff]
        %v679 = vld [vmem:[#allocation6 + $0x38] sm:$0xff]
        %v680 = vld [vmem:[#allocation6 + $0x40] sm:$0xff]
        %v681 = vld [vmem:[#allocation6 + $0x48] sm:$0xff]
        %v682 = vld [vmem:[#allocation6 + $0x50] sm:$0xff]
        %v683 = vld [vmem:[#allocation6 + $0x58] sm:$0xff]
        %v684 = vld [vmem:[#allocation6 + $0x60] sm:$0xff]
        %v685 = vld [vmem:[#allocation6 + $0x68] sm:$0xff]
        %v686 = vld [vmem:[#allocation6 + $0x70] sm:$0xff]
        %v687 = vld [vmem:[#allocation6 + $0x78] sm:$0xff]
        %v688 = vld [vmem:[#allocation6 + $0x80] sm:$0xff]
        %v689 = vld [vmem:[#allocation6 + $0x88] sm:$0xff]
        %v690 = vld [vmem:[#allocation6 + $0x90] sm:$0xff]
        %v691 = vld [vmem:[#allocation6 + $0x98] sm:$0xff]
        %v692 = vld [vmem:[#allocation6 + $0xa0] sm:$0xff]
        %v693 = vld [vmem:[#allocation6 + $0xa8] sm:$0xff]
        %v694 = vld [vmem:[#allocation6 + $0xb0] sm:$0xff]
        %v695 = vld [vmem:[#allocation6 + $0xb8] sm:$0xff]
        %v696 = vld [vmem:[#allocation6 + $0xc0] sm:$0xff]
        %v697 = vld [vmem:[#allocation6 + $0xc8] sm:$0xff]
        %v698 = vld [vmem:[#allocation6 + $0xd0] sm:$0xff]
        %v699 = vld [vmem:[#allocation6 + $0xd8] sm:$0xff]
        %v700 = vld [vmem:[#allocation6 + $0xe0] sm:$0xff]
        %v701 = vld [vmem:[#allocation6 + $0xe8] sm:$0xff]
        %v702 = vld [vmem:[#allocation6 + $0xf0] sm:$0xff]
        %v703 = vld [vmem:[#allocation6 + $0xf8] sm:$0xff]
        %v704 = vld [vmem:[#allocation6 + $0x100] sm:$0xff]
        %v705 = vld [vmem:[#allocation6 + $0x108] sm:$0xff]
        %v706 = vld [vmem:[#allocation6 + $0x110] sm:$0xff]
        %v707 = vld [vmem:[#allocation6 + $0x118] sm:$0xff]
        %v708 = vld [vmem:[#allocation6 + $0x120] sm:$0xff]
        %v709 = vld [vmem:[#allocation6 + $0x128] sm:$0xff]
        %v710 = vld [vmem:[#allocation6 + $0x130] sm:$0xff]
        %v711 = vld [vmem:[#allocation6 + $0x138] sm:$0xff]
        %v712 = vld [vmem:[#allocation6 + $0x140] sm:$0xff]
        %v713 = vld [vmem:[#allocation6 + $0x148] sm:$0xff]
        %v714 = vld [vmem:[#allocation6 + $0x150] sm:$0xff]
        %v715 = vld [vmem:[#allocation6 + $0x158] sm:$0xff]
        %v716 = vld [vmem:[#allocation6 + $0x160] sm:$0xff]
        %v717 = vld [vmem:[#allocation6 + $0x168] sm:$0xff]
        %v718 = vld [vmem:[#allocation6 + $0x170] sm:$0xff]
        %v719 = vld [vmem:[#allocation6 + $0x178] sm:$0xff]
        %720 = vmatprep.subr.mxu0 %v718
        %721 = vmatpush1.msra.mxu0 %v717
        %722 = vmatprep.subr.mxu0 %v715
        %723 = vmatpush1.msra.mxu0 %v714
        %724 = vmatprep.subr.mxu0 %v712
        %725 = vmatpush1.msra.mxu0 %v711
        %726 = vmatprep.subr.mxu0 %v709
        %727 = vmatpush1.msra.mxu0 %v708
        %728 = vmatprep.subr.mxu0 %v706
        %729 = vmatpush1.msra.mxu0 %v705
        %730 = vmatprep.subr.mxu0 %v703
        %731 = vmatpush1.msra.mxu0 %v702
        %732 = vmatprep.subr.mxu0 %v700
        %733 = vmatpush1.msra.mxu0 %v699
        %734 = vmatprep.subr.mxu0 %v697
        %735 = vmatpush1.msra.mxu0 %v696
        %736 = vmatprep.subr.mxu0 %v694
        %737 = vmatpush1.msra.mxu0 %v693
        %738 = vmatprep.subr.mxu0 %v691
        %739 = vmatpush1.msra.mxu0 %v690
        %740 = vmatprep.subr.mxu0 %v688
        %741 = vmatpush1.msra.mxu0 %v687
        %742 = vmatprep.subr.mxu0 %v685
        %743 = vmatpush1.msra.mxu0 %v684
        %744 = vmatprep.subr.mxu0 %v682
        %745 = vmatpush1.msra.mxu0 %v681
        %746 = vmatprep.subr.mxu0 %v679
        %747 = vmatpush1.msra.mxu0 %v678
        %748 = vmatprep.subr.mxu0 %v676
        %749 = vmatpush1.msra.mxu0 %v675
        %750 = vmatprep.subr.mxu0 %v673
        %751 = vmatpush1.msra.mxu0 %v672
        %752 = vmatprep.subr.mxu0 0.0
        %753 = vmatpush2.msra.mxu0 0.0
        %754 = vmatprep.subr.mxu0 0.0
        %755 = vmatpush2.msra.mxu0 0.0
        %756 = vmatprep.subr.mxu0 0.0
        %757 = vmatpush2.msra.mxu0 0.0
        %758 = vmatprep.subr.mxu0 0.0
        %759 = vmatpush2.msra.mxu0 0.0
        %760 = vmatprep.subr.mxu0 0.0
        %761 = vmatpush2.msra.mxu0 0.0
        %762 = vmatprep.subr.mxu0 0.0
        %763 = vmatpush2.msra.mxu0 0.0
        %764 = vmatprep.subr.mxu0 0.0
        %765 = vmatpush2.msra.mxu0 0.0
        %766 = vmatprep.subr.mxu0 0.0
        %767 = vmatpush2.msra.mxu0 0.0
        %768 = vmatprep.subr.mxu0 0.0
        %769 = vmatpush2.msra.mxu0 0.0
        %770 = vmatprep.subr.mxu0 0.0
        %771 = vmatpush2.msra.mxu0 0.0
        %772 = vmatprep.subr.mxu0 0.0
        %773 = vmatpush2.msra.mxu0 0.0
        %774 = vmatprep.subr.mxu0 0.0
        %775 = vmatpush2.msra.mxu0 0.0
        %776 = vmatprep.subr.mxu0 0.0
        %777 = vmatpush2.msra.mxu0 0.0
        %778 = vmatprep.subr.mxu0 0.0
        %779 = vmatpush2.msra.mxu0 0.0
        %780 = vmatprep.subr.mxu0 0.0
        %781 = vmatpush2.msra.mxu0 0.0
        %782 = vmatprep.subr.mxu0 0.0
        %783 = vmatpush2.msra.mxu0 0.0
        %784 = vmatprep.mubr.f32.mxu0 0.0
        %785 = vmatmul.mubr.f32.gmra.mxu0 %v665
        %v786 = vpop.f32.mrf.mxu0
        %v787 = vadd.f32 0.0, %v786
        %v788 = vpop.f32.mrf.mxu0
        %v789 = vadd.f32 0.0, %v788
        %790 = vdwg.mxu0
        %791 = vmatprep.subr.mxu0 0.0
        %792 = vmatpush1.msra.mxu0 %v719
        %793 = vmatprep.subr.mxu0 0.0
        %794 = vmatpush1.msra.mxu0 %v716
        %795 = vmatprep.subr.mxu0 0.0
        %796 = vmatpush1.msra.mxu0 %v713
        %797 = vmatprep.subr.mxu0 0.0
        %798 = vmatpush1.msra.mxu0 %v710
        %799 = vmatprep.subr.mxu0 0.0
        %800 = vmatpush1.msra.mxu0 %v707
        %801 = vmatprep.subr.mxu0 0.0
        %802 = vmatpush1.msra.mxu0 %v704
        %803 = vmatprep.subr.mxu0 0.0
        %804 = vmatpush1.msra.mxu0 %v701
        %805 = vmatprep.subr.mxu0 0.0
        %806 = vmatpush1.msra.mxu0 %v698
        %807 = vmatprep.subr.mxu0 0.0
        %808 = vmatpush1.msra.mxu0 %v695
        %809 = vmatprep.subr.mxu0 0.0
        %810 = vmatpush1.msra.mxu0 %v692
        %811 = vmatprep.subr.mxu0 0.0
        %812 = vmatpush1.msra.mxu0 %v689
        %813 = vmatprep.subr.mxu0 0.0
        %814 = vmatpush1.msra.mxu0 %v686
        %815 = vmatprep.subr.mxu0 0.0
        %816 = vmatpush1.msra.mxu0 %v683
        %817 = vmatprep.subr.mxu0 0.0
        %818 = vmatpush1.msra.mxu0 %v680
        %819 = vmatprep.subr.mxu0 0.0
        %820 = vmatpush1.msra.mxu0 %v677
        %821 = vmatprep.subr.mxu0 0.0
        %822 = vmatpush1.msra.mxu0 %v674
        %823 = vmatprep.subr.mxu0 0.0
        %824 = vmatpush2.msra.mxu0 0.0
        %825 = vmatprep.subr.mxu0 0.0
        %826 = vmatpush2.msra.mxu0 0.0
        %827 = vmatprep.subr.mxu0 0.0
        %828 = vmatpush2.msra.mxu0 0.0
        %829 = vmatprep.subr.mxu0 0.0
        %830 = vmatpush2.msra.mxu0 0.0
        %831 = vmatprep.subr.mxu0 0.0
        %832 = vmatpush2.msra.mxu0 0.0
        %833 = vmatprep.subr.mxu0 0.0
        %834 = vmatpush2.msra.mxu0 0.0
        %835 = vmatprep.subr.mxu0 0.0
        %836 = vmatpush2.msra.mxu0 0.0
        %837 = vmatprep.subr.mxu0 0.0
        %838 = vmatpush2.msra.mxu0 0.0
        %839 = vmatprep.subr.mxu0 0.0
        %840 = vmatpush2.msra.mxu0 0.0
        %841 = vmatprep.subr.mxu0 0.0
        %842 = vmatpush2.msra.mxu0 0.0
        %843 = vmatprep.subr.mxu0 0.0
        %844 = vmatpush2.msra.mxu0 0.0
        %845 = vmatprep.subr.mxu0 0.0
        %846 = vmatpush2.msra.mxu0 0.0
        %847 = vmatprep.subr.mxu0 0.0
        %848 = vmatpush2.msra.mxu0 0.0
        %849 = vmatprep.subr.mxu0 0.0
        %850 = vmatpush2.msra.mxu0 0.0
        %851 = vmatprep.subr.mxu0 0.0
        %852 = vmatpush2.msra.mxu0 0.0
        %853 = vmatprep.subr.mxu0 0.0
        %854 = vmatpush2.msra.mxu0 0.0
        %855 = vmatprep.mubr.f32.mxu0 0.0
        %856 = vmatmul.mubr.f32.gmra.mxu0 %v665
        %v857 = vpop.f32.mrf.mxu0
        %v858 = vadd.f32 0.0, %v857
        %v859 = vpop.f32.mrf.mxu0
        %860 = vdwg.mxu0
        %v861 = vadd.f32 %v669, %v787
        %v862 = vxor.u32 %v861, 2147483648
        %v863 = vmul.f32 %v862, 1.442695
        %v864 = vpow.pop %v863
        %v865 = vadd.f32 %v864, 1.0
        %v866 = vrcp.pop %v865
        %v867 = vmul.f32 1.0, %v866
        %v868 = vadd.f32 %v670, %v789
        %v869 = vxor.u32 %v868, 2147483648
        %v870 = vmul.f32 %v869, 1.442695
        %v871 = vpow.pop %v870
        %v872 = vadd.f32 %v871, 1.0
        %v873 = vrcp.pop %v872
        %v874 = vmul.f32 1.0, %v873
        %v875 = vadd.f32 %v858, %v235
        %v876 = vmul.f32 %v867, %v875
        %v877 = vadd.f32 %v671, %v876
        %v878 = vtanh.pop %v877
        %v879 = vsub.f32 %v665, %v878
        %v880 = vmul.f32 %v874, %v879
        %v881 = vadd.f32 %v878, %v880
        %s882 = scalar_lea.vmem %s222, 16 [#allocation8]
        %883 = vst [vmem:[%s882] sm:$0xff] %v881
        %s884 = scalar_lea.vmem %s196, 72 [#allocation3]
        %v885 = vld [vmem:[%s884] sm:$0xff]
        %v886 = vld [vmem:[%s884 + $0x8] sm:$0xff]
        %v887 = vld [vmem:[%s884 + $0x10] sm:$0xff]
        %v888 = vld [vmem:[#allocation6] sm:$0xff]
        %v889 = vld [vmem:[#allocation6 + $0x8] sm:$0xff]
        %v890 = vld [vmem:[#allocation6 + $0x10] sm:$0xff]
        %v891 = vld [vmem:[#allocation6 + $0x18] sm:$0xff]
        %v892 = vld [vmem:[#allocation6 + $0x20] sm:$0xff]
        %v893 = vld [vmem:[#allocation6 + $0x28] sm:$0xff]
        %v894 = vld [vmem:[#allocation6 + $0x30] sm:$0xff]
        %v895 = vld [vmem:[#allocation6 + $0x38] sm:$0xff]
        %v896 = vld [vmem:[#allocation6 + $0x40] sm:$0xff]
        %v897 = vld [vmem:[#allocation6 + $0x48] sm:$0xff]
        %v898 = vld [vmem:[#allocation6 + $0x50] sm:$0xff]
        %v899 = vld [vmem:[#allocation6 + $0x58] sm:$0xff]
        %v900 = vld [vmem:[#allocation6 + $0x60] sm:$0xff]
        %v901 = vld [vmem:[#allocation6 + $0x68] sm:$0xff]
        %v902 = vld [vmem:[#allocation6 + $0x70] sm:$0xff]
        %v903 = vld [vmem:[#allocation6 + $0x78] sm:$0xff]
        %v904 = vld [vmem:[#allocation6 + $0x80] sm:$0xff]
        %v905 = vld [vmem:[#allocation6 + $0x88] sm:$0xff]
        %v906 = vld [vmem:[#allocation6 + $0x90] sm:$0xff]
        %v907 = vld [vmem:[#allocation6 + $0x98] sm:$0xff]
        %v908 = vld [vmem:[#allocation6 + $0xa0] sm:$0xff]
        %v909 = vld [vmem:[#allocation6 + $0xa8] sm:$0xff]
        %v910 = vld [vmem:[#allocation6 + $0xb0] sm:$0xff]
        %v911 = vld [vmem:[#allocation6 + $0xb8] sm:$0xff]
        %v912 = vld [vmem:[#allocation6 + $0xc0] sm:$0xff]
        %v913 = vld [vmem:[#allocation6 + $0xc8] sm:$0xff]
        %v914 = vld [vmem:[#allocation6 + $0xd0] sm:$0xff]
        %v915 = vld [vmem:[#allocation6 + $0xd8] sm:$0xff]
        %v916 = vld [vmem:[#allocation6 + $0xe0] sm:$0xff]
        %v917 = vld [vmem:[#allocation6 + $0xe8] sm:$0xff]
        %v918 = vld [vmem:[#allocation6 + $0xf0] sm:$0xff]
        %v919 = vld [vmem:[#allocation6 + $0xf8] sm:$0xff]
        %v920 = vld [vmem:[#allocation6 + $0x100] sm:$0xff]
        %v921 = vld [vmem:[#allocation6 + $0x108] sm:$0xff]
        %v922 = vld [vmem:[#allocation6 + $0x110] sm:$0xff]
        %v923 = vld [vmem:[#allocation6 + $0x118] sm:$0xff]
        %v924 = vld [vmem:[#allocation6 + $0x120] sm:$0xff]
        %v925 = vld [vmem:[#allocation6 + $0x128] sm:$0xff]
        %v926 = vld [vmem:[#allocation6 + $0x130] sm:$0xff]
        %v927 = vld [vmem:[#allocation6 + $0x138] sm:$0xff]
        %v928 = vld [vmem:[#allocation6 + $0x140] sm:$0xff]
        %v929 = vld [vmem:[#allocation6 + $0x148] sm:$0xff]
        %v930 = vld [vmem:[#allocation6 + $0x150] sm:$0xff]
        %v931 = vld [vmem:[#allocation6 + $0x158] sm:$0xff]
        %v932 = vld [vmem:[#allocation6 + $0x160] sm:$0xff]
        %v933 = vld [vmem:[#allocation6 + $0x168] sm:$0xff]
        %v934 = vld [vmem:[#allocation6 + $0x170] sm:$0xff]
        %v935 = vld [vmem:[#allocation6 + $0x178] sm:$0xff]
        %936 = vmatprep.subr.mxu0 %v934
        %937 = vmatpush1.msra.mxu0 %v933
        %938 = vmatprep.subr.mxu0 %v931
        %939 = vmatpush1.msra.mxu0 %v930
        %940 = vmatprep.subr.mxu0 %v928
        %941 = vmatpush1.msra.mxu0 %v927
        %942 = vmatprep.subr.mxu0 %v925
        %943 = vmatpush1.msra.mxu0 %v924
        %944 = vmatprep.subr.mxu0 %v922
        %945 = vmatpush1.msra.mxu0 %v921
        %946 = vmatprep.subr.mxu0 %v919
        %947 = vmatpush1.msra.mxu0 %v918
        %948 = vmatprep.subr.mxu0 %v916
        %949 = vmatpush1.msra.mxu0 %v915
        %950 = vmatprep.subr.mxu0 %v913
        %951 = vmatpush1.msra.mxu0 %v912
        %952 = vmatprep.subr.mxu0 %v910
        %953 = vmatpush1.msra.mxu0 %v909
        %954 = vmatprep.subr.mxu0 %v907
        %955 = vmatpush1.msra.mxu0 %v906
        %956 = vmatprep.subr.mxu0 %v904
        %957 = vmatpush1.msra.mxu0 %v903
        %958 = vmatprep.subr.mxu0 %v901
        %959 = vmatpush1.msra.mxu0 %v900
        %960 = vmatprep.subr.mxu0 %v898
        %961 = vmatpush1.msra.mxu0 %v897
        %962 = vmatprep.subr.mxu0 %v895
        %963 = vmatpush1.msra.mxu0 %v894
        %964 = vmatprep.subr.mxu0 %v892
        %965 = vmatpush1.msra.mxu0 %v891
        %966 = vmatprep.subr.mxu0 %v889
        %967 = vmatpush1.msra.mxu0 %v888
        %968 = vmatprep.subr.mxu0 0.0
        %969 = vmatpush2.msra.mxu0 0.0
        %970 = vmatprep.subr.mxu0 0.0
        %971 = vmatpush2.msra.mxu0 0.0
        %972 = vmatprep.subr.mxu0 0.0
        %973 = vmatpush2.msra.mxu0 0.0
        %974 = vmatprep.subr.mxu0 0.0
        %975 = vmatpush2.msra.mxu0 0.0
        %976 = vmatprep.subr.mxu0 0.0
        %977 = vmatpush2.msra.mxu0 0.0
        %978 = vmatprep.subr.mxu0 0.0
        %979 = vmatpush2.msra.mxu0 0.0
        %980 = vmatprep.subr.mxu0 0.0
        %981 = vmatpush2.msra.mxu0 0.0
        %982 = vmatprep.subr.mxu0 0.0
        %983 = vmatpush2.msra.mxu0 0.0
        %984 = vmatprep.subr.mxu0 0.0
        %985 = vmatpush2.msra.mxu0 0.0
        %986 = vmatprep.subr.mxu0 0.0
        %987 = vmatpush2.msra.mxu0 0.0
        %988 = vmatprep.subr.mxu0 0.0
        %989 = vmatpush2.msra.mxu0 0.0
        %990 = vmatprep.subr.mxu0 0.0
        %991 = vmatpush2.msra.mxu0 0.0
        %992 = vmatprep.subr.mxu0 0.0
        %993 = vmatpush2.msra.mxu0 0.0
        %994 = vmatprep.subr.mxu0 0.0
        %995 = vmatpush2.msra.mxu0 0.0
        %996 = vmatprep.subr.mxu0 0.0
        %997 = vmatpush2.msra.mxu0 0.0
        %998 = vmatprep.subr.mxu0 0.0
        %999 = vmatpush2.msra.mxu0 0.0
        %1000 = vmatprep.mubr.f32.mxu0 0.0
        %1001 = vmatmul.mubr.f32.gmra.mxu0 %v881
        %v1002 = vpop.f32.mrf.mxu0
        %v1003 = vadd.f32 0.0, %v1002
        %v1004 = vpop.f32.mrf.mxu0
        %v1005 = vadd.f32 0.0, %v1004
        %1006 = vdwg.mxu0
        %1007 = vmatprep.subr.mxu0 0.0
        %1008 = vmatpush1.msra.mxu0 %v935
        %1009 = vmatprep.subr.mxu0 0.0
        %1010 = vmatpush1.msra.mxu0 %v932
        %1011 = vmatprep.subr.mxu0 0.0
        %1012 = vmatpush1.msra.mxu0 %v929
        %1013 = vmatprep.subr.mxu0 0.0
        %1014 = vmatpush1.msra.mxu0 %v926
        %1015 = vmatprep.subr.mxu0 0.0
        %1016 = vmatpush1.msra.mxu0 %v923
        %1017 = vmatprep.subr.mxu0 0.0
        %1018 = vmatpush1.msra.mxu0 %v920
        %1019 = vmatprep.subr.mxu0 0.0
        %1020 = vmatpush1.msra.mxu0 %v917
        %1021 = vmatprep.subr.mxu0 0.0
        %1022 = vmatpush1.msra.mxu0 %v914
        %1023 = vmatprep.subr.mxu0 0.0
        %1024 = vmatpush1.msra.mxu0 %v911
        %1025 = vmatprep.subr.mxu0 0.0
        %1026 = vmatpush1.msra.mxu0 %v908
        %1027 = vmatprep.subr.mxu0 0.0
        %1028 = vmatpush1.msra.mxu0 %v905
        %1029 = vmatprep.subr.mxu0 0.0
        %1030 = vmatpush1.msra.mxu0 %v902
        %1031 = vmatprep.subr.mxu0 0.0
        %1032 = vmatpush1.msra.mxu0 %v899
        %1033 = vmatprep.subr.mxu0 0.0
        %1034 = vmatpush1.msra.mxu0 %v896
        %1035 = vmatprep.subr.mxu0 0.0
        %1036 = vmatpush1.msra.mxu0 %v893
        %1037 = vmatprep.subr.mxu0 0.0
        %1038 = vmatpush1.msra.mxu0 %v890
        %1039 = vmatprep.subr.mxu0 0.0
        %1040 = vmatpush2.msra.mxu0 0.0
        %1041 = vmatprep.subr.mxu0 0.0
        %1042 = vmatpush2.msra.mxu0 0.0
        %1043 = vmatprep.subr.mxu0 0.0
        %1044 = vmatpush2.msra.mxu0 0.0
        %1045 = vmatprep.subr.mxu0 0.0
        %1046 = vmatpush2.msra.mxu0 0.0
        %1047 = vmatprep.subr.mxu0 0.0
        %1048 = vmatpush2.msra.mxu0 0.0
        %1049 = vmatprep.subr.mxu0 0.0
        %1050 = vmatpush2.msra.mxu0 0.0
        %1051 = vmatprep.subr.mxu0 0.0
        %1052 = vmatpush2.msra.mxu0 0.0
        %1053 = vmatprep.subr.mxu0 0.0
        %1054 = vmatpush2.msra.mxu0 0.0
        %1055 = vmatprep.subr.mxu0 0.0
        %1056 = vmatpush2.msra.mxu0 0.0
        %1057 = vmatprep.subr.mxu0 0.0
        %1058 = vmatpush2.msra.mxu0 0.0
        %1059 = vmatprep.subr.mxu0 0.0
        %1060 = vmatpush2.msra.mxu0 0.0
        %1061 = vmatprep.subr.mxu0 0.0
        %1062 = vmatpush2.msra.mxu0 0.0
        %1063 = vmatprep.subr.mxu0 0.0
        %1064 = vmatpush2.msra.mxu0 0.0
        %1065 = vmatprep.subr.mxu0 0.0
        %1066 = vmatpush2.msra.mxu0 0.0
        %1067 = vmatprep.subr.mxu0 0.0
        %1068 = vmatpush2.msra.mxu0 0.0
        %1069 = vmatprep.subr.mxu0 0.0
        %1070 = vmatpush2.msra.mxu0 0.0
        %1071 = vmatprep.mubr.f32.mxu0 0.0
        %1072 = vmatmul.mubr.f32.gmra.mxu0 %v881
        %v1073 = vpop.f32.mrf.mxu0
        %v1074 = vadd.f32 0.0, %v1073
        %v1075 = vpop.f32.mrf.mxu0
        %1076 = vdwg.mxu0
        %v1077 = vadd.f32 %v885, %v1003
        %v1078 = vxor.u32 %v1077, 2147483648
        %v1079 = vmul.f32 %v1078, 1.442695
        %v1080 = vpow.pop %v1079
        %v1081 = vadd.f32 %v1080, 1.0
        %v1082 = vrcp.pop %v1081
        %v1083 = vmul.f32 1.0, %v1082
        %v1084 = vadd.f32 %v886, %v1005
        %v1085 = vxor.u32 %v1084, 2147483648
        %v1086 = vmul.f32 %v1085, 1.442695
        %v1087 = vpow.pop %v1086
        %v1088 = vadd.f32 %v1087, 1.0
        %v1089 = vrcp.pop %v1088
        %v1090 = vmul.f32 1.0, %v1089
        %v1091 = vadd.f32 %v1074, %v235
        %v1092 = vmul.f32 %v1083, %v1091
        %v1093 = vadd.f32 %v887, %v1092
        %v1094 = vtanh.pop %v1093
        %v1095 = vsub.f32 %v881, %v1094
        %v1096 = vmul.f32 %v1090, %v1095
        %v1097 = vadd.f32 %v1094, %v1096
        %s1098 = scalar_lea.vmem %s222, 24 [#allocation8]
        %1099 = vst [vmem:[%s1098] sm:$0xff] %v1097
        %s1100 = scalar_lea.vmem %s196, 96 [#allocation3]
        %v1101 = vld [vmem:[%s1100] sm:$0xff]
        %v1102 = vld [vmem:[%s1100 + $0x8] sm:$0xff]
        %v1103 = vld [vmem:[%s1100 + $0x10] sm:$0xff]
        %v1104 = vld [vmem:[#allocation6] sm:$0xff]
        %v1105 = vld [vmem:[#allocation6 + $0x8] sm:$0xff]
        %v1106 = vld [vmem:[#allocation6 + $0x10] sm:$0xff]
        %v1107 = vld [vmem:[#allocation6 + $0x18] sm:$0xff]
        %v1108 = vld [vmem:[#allocation6 + $0x20] sm:$0xff]
        %v1109 = vld [vmem:[#allocation6 + $0x28] sm:$0xff]
        %v1110 = vld [vmem:[#allocation6 + $0x30] sm:$0xff]
        %v1111 = vld [vmem:[#allocation6 + $0x38] sm:$0xff]
        %v1112 = vld [vmem:[#allocation6 + $0x40] sm:$0xff]
        %v1113 = vld [vmem:[#allocation6 + $0x48] sm:$0xff]
        %v1114 = vld [vmem:[#allocation6 + $0x50] sm:$0xff]
        %v1115 = vld [vmem:[#allocation6 + $0x58] sm:$0xff]
        %v1116 = vld [vmem:[#allocation6 + $0x60] sm:$0xff]
        %v1117 = vld [vmem:[#allocation6 + $0x68] sm:$0xff]
        %v1118 = vld [vmem:[#allocation6 + $0x70] sm:$0xff]
        %v1119 = vld [vmem:[#allocation6 + $0x78] sm:$0xff]
        %v1120 = vld [vmem:[#allocation6 + $0x80] sm:$0xff]
        %v1121 = vld [vmem:[#allocation6 + $0x88] sm:$0xff]
        %v1122 = vld [vmem:[#allocation6 + $0x90] sm:$0xff]
        %v1123 = vld [vmem:[#allocation6 + $0x98] sm:$0xff]
        %v1124 = vld [vmem:[#allocation6 + $0xa0] sm:$0xff]
        %v1125 = vld [vmem:[#allocation6 + $0xa8] sm:$0xff]
        %v1126 = vld [vmem:[#allocation6 + $0xb0] sm:$0xff]
        %v1127 = vld [vmem:[#allocation6 + $0xb8] sm:$0xff]
        %v1128 = vld [vmem:[#allocation6 + $0xc0] sm:$0xff]
        %v1129 = vld [vmem:[#allocation6 + $0xc8] sm:$0xff]
        %v1130 = vld [vmem:[#allocation6 + $0xd0] sm:$0xff]
        %v1131 = vld [vmem:[#allocation6 + $0xd8] sm:$0xff]
        %v1132 = vld [vmem:[#allocation6 + $0xe0] sm:$0xff]
        %v1133 = vld [vmem:[#allocation6 + $0xe8] sm:$0xff]
        %v1134 = vld [vmem:[#allocation6 + $0xf0] sm:$0xff]
        %v1135 = vld [vmem:[#allocation6 + $0xf8] sm:$0xff]
        %v1136 = vld [vmem:[#allocation6 + $0x100] sm:$0xff]
        %v1137 = vld [vmem:[#allocation6 + $0x108] sm:$0xff]
        %v1138 = vld [vmem:[#allocation6 + $0x110] sm:$0xff]
        %v1139 = vld [vmem:[#allocation6 + $0x118] sm:$0xff]
        %v1140 = vld [vmem:[#allocation6 + $0x120] sm:$0xff]
        %v1141 = vld [vmem:[#allocation6 + $0x128] sm:$0xff]
        %v1142 = vld [vmem:[#allocation6 + $0x130] sm:$0xff]
        %v1143 = vld [vmem:[#allocation6 + $0x138] sm:$0xff]
        %v1144 = vld [vmem:[#allocation6 + $0x140] sm:$0xff]
        %v1145 = vld [vmem:[#allocation6 + $0x148] sm:$0xff]
        %v1146 = vld [vmem:[#allocation6 + $0x150] sm:$0xff]
        %v1147 = vld [vmem:[#allocation6 + $0x158] sm:$0xff]
        %v1148 = vld [vmem:[#allocation6 + $0x160] sm:$0xff]
        %v1149 = vld [vmem:[#allocation6 + $0x168] sm:$0xff]
        %v1150 = vld [vmem:[#allocation6 + $0x170] sm:$0xff]
        %v1151 = vld [vmem:[#allocation6 + $0x178] sm:$0xff]
        %1152 = vmatprep.subr.mxu0 %v1150
        %1153 = vmatpush1.msra.mxu0 %v1149
        %1154 = vmatprep.subr.mxu0 %v1147
        %1155 = vmatpush1.msra.mxu0 %v1146
        %1156 = vmatprep.subr.mxu0 %v1144
        %1157 = vmatpush1.msra.mxu0 %v1143
        %1158 = vmatprep.subr.mxu0 %v1141
        %1159 = vmatpush1.msra.mxu0 %v1140
        %1160 = vmatprep.subr.mxu0 %v1138
        %1161 = vmatpush1.msra.mxu0 %v1137
        %1162 = vmatprep.subr.mxu0 %v1135
        %1163 = vmatpush1.msra.mxu0 %v1134
        %1164 = vmatprep.subr.mxu0 %v1132
        %1165 = vmatpush1.msra.mxu0 %v1131
        %1166 = vmatprep.subr.mxu0 %v1129
        %1167 = vmatpush1.msra.mxu0 %v1128
        %1168 = vmatprep.subr.mxu0 %v1126
        %1169 = vmatpush1.msra.mxu0 %v1125
        %1170 = vmatprep.subr.mxu0 %v1123
        %1171 = vmatpush1.msra.mxu0 %v1122
        %1172 = vmatprep.subr.mxu0 %v1120
        %1173 = vmatpush1.msra.mxu0 %v1119
        %1174 = vmatprep.subr.mxu0 %v1117
        %1175 = vmatpush1.msra.mxu0 %v1116
        %1176 = vmatprep.subr.mxu0 %v1114
        %1177 = vmatpush1.msra.mxu0 %v1113
        %1178 = vmatprep.subr.mxu0 %v1111
        %1179 = vmatpush1.msra.mxu0 %v1110
        %1180 = vmatprep.subr.mxu0 %v1108
        %1181 = vmatpush1.msra.mxu0 %v1107
        %1182 = vmatprep.subr.mxu0 %v1105
        %1183 = vmatpush1.msra.mxu0 %v1104
        %1184 = vmatprep.subr.mxu0 0.0
        %1185 = vmatpush2.msra.mxu0 0.0
        %1186 = vmatprep.subr.mxu0 0.0
        %1187 = vmatpush2.msra.mxu0 0.0
        %1188 = vmatprep.subr.mxu0 0.0
        %1189 = vmatpush2.msra.mxu0 0.0
        %1190 = vmatprep.subr.mxu0 0.0
        %1191 = vmatpush2.msra.mxu0 0.0
        %1192 = vmatprep.subr.mxu0 0.0
        %1193 = vmatpush2.msra.mxu0 0.0
        %1194 = vmatprep.subr.mxu0 0.0
        %1195 = vmatpush2.msra.mxu0 0.0
        %1196 = vmatprep.subr.mxu0 0.0
        %1197 = vmatpush2.msra.mxu0 0.0
        %1198 = vmatprep.subr.mxu0 0.0
        %1199 = vmatpush2.msra.mxu0 0.0
        %1200 = vmatprep.subr.mxu0 0.0
        %1201 = vmatpush2.msra.mxu0 0.0
        %1202 = vmatprep.subr.mxu0 0.0
        %1203 = vmatpush2.msra.mxu0 0.0
        %1204 = vmatprep.subr.mxu0 0.0
        %1205 = vmatpush2.msra.mxu0 0.0
        %1206 = vmatprep.subr.mxu0 0.0
        %1207 = vmatpush2.msra.mxu0 0.0
        %1208 = vmatprep.subr.mxu0 0.0
        %1209 = vmatpush2.msra.mxu0 0.0
        %1210 = vmatprep.subr.mxu0 0.0
        %1211 = vmatpush2.msra.mxu0 0.0
        %1212 = vmatprep.subr.mxu0 0.0
        %1213 = vmatpush2.msra.mxu0 0.0
        %1214 = vmatprep.subr.mxu0 0.0
        %1215 = vmatpush2.msra.mxu0 0.0
        %1216 = vmatprep.mubr.f32.mxu0 0.0
        %1217 = vmatmul.mubr.f32.gmra.mxu0 %v1097
        %v1218 = vpop.f32.mrf.mxu0
        %v1219 = vadd.f32 0.0, %v1218
        %v1220 = vpop.f32.mrf.mxu0
        %v1221 = vadd.f32 0.0, %v1220
        %1222 = vdwg.mxu0
        %1223 = vmatprep.subr.mxu0 0.0
        %1224 = vmatpush1.msra.mxu0 %v1151
        %1225 = vmatprep.subr.mxu0 0.0
        %1226 = vmatpush1.msra.mxu0 %v1148
        %1227 = vmatprep.subr.mxu0 0.0
        %1228 = vmatpush1.msra.mxu0 %v1145
        %1229 = vmatprep.subr.mxu0 0.0
        %1230 = vmatpush1.msra.mxu0 %v1142
        %1231 = vmatprep.subr.mxu0 0.0
        %1232 = vmatpush1.msra.mxu0 %v1139
        %1233 = vmatprep.subr.mxu0 0.0
        %1234 = vmatpush1.msra.mxu0 %v1136
        %1235 = vmatprep.subr.mxu0 0.0
        %1236 = vmatpush1.msra.mxu0 %v1133
        %1237 = vmatprep.subr.mxu0 0.0
        %1238 = vmatpush1.msra.mxu0 %v1130
        %1239 = vmatprep.subr.mxu0 0.0
        %1240 = vmatpush1.msra.mxu0 %v1127
        %1241 = vmatprep.subr.mxu0 0.0
        %1242 = vmatpush1.msra.mxu0 %v1124
        %1243 = vmatprep.subr.mxu0 0.0
        %1244 = vmatpush1.msra.mxu0 %v1121
        %1245 = vmatprep.subr.mxu0 0.0
        %1246 = vmatpush1.msra.mxu0 %v1118
        %1247 = vmatprep.subr.mxu0 0.0
        %1248 = vmatpush1.msra.mxu0 %v1115
        %1249 = vmatprep.subr.mxu0 0.0
        %1250 = vmatpush1.msra.mxu0 %v1112
        %1251 = vmatprep.subr.mxu0 0.0
        %1252 = vmatpush1.msra.mxu0 %v1109
        %1253 = vmatprep.subr.mxu0 0.0
        %1254 = vmatpush1.msra.mxu0 %v1106
        %1255 = vmatprep.subr.mxu0 0.0
        %1256 = vmatpush2.msra.mxu0 0.0
        %1257 = vmatprep.subr.mxu0 0.0
        %1258 = vmatpush2.msra.mxu0 0.0
        %1259 = vmatprep.subr.mxu0 0.0
        %1260 = vmatpush2.msra.mxu0 0.0
        %1261 = vmatprep.subr.mxu0 0.0
        %1262 = vmatpush2.msra.mxu0 0.0
        %1263 = vmatprep.subr.mxu0 0.0
        %1264 = vmatpush2.msra.mxu0 0.0
        %1265 = vmatprep.subr.mxu0 0.0
        %1266 = vmatpush2.msra.mxu0 0.0
        %1267 = vmatprep.subr.mxu0 0.0
        %1268 = vmatpush2.msra.mxu0 0.0
        %1269 = vmatprep.subr.mxu0 0.0
        %1270 = vmatpush2.msra.mxu0 0.0
        %1271 = vmatprep.subr.mxu0 0.0
        %1272 = vmatpush2.msra.mxu0 0.0
        %1273 = vmatprep.subr.mxu0 0.0
        %1274 = vmatpush2.msra.mxu0 0.0
        %1275 = vmatprep.subr.mxu0 0.0
        %1276 = vmatpush2.msra.mxu0 0.0
        %1277 = vmatprep.subr.mxu0 0.0
        %1278 = vmatpush2.msra.mxu0 0.0
        %1279 = vmatprep.subr.mxu0 0.0
        %1280 = vmatpush2.msra.mxu0 0.0
        %1281 = vmatprep.subr.mxu0 0.0
        %1282 = vmatpush2.msra.mxu0 0.0
        %1283 = vmatprep.subr.mxu0 0.0
        %1284 = vmatpush2.msra.mxu0 0.0
        %1285 = vmatprep.subr.mxu0 0.0
        %1286 = vmatpush2.msra.mxu0 0.0
        %1287 = vmatprep.mubr.f32.mxu0 0.0
        %1288 = vmatmul.mubr.f32.gmra.mxu0 %v1097
        %v1289 = vpop.f32.mrf.mxu0
        %v1290 = vadd.f32 0.0, %v1289
        %v1291 = vpop.f32.mrf.mxu0
        %1292 = vdwg.mxu0
        %v1293 = vadd.f32 %v1101, %v1219
        %v1294 = vxor.u32 %v1293, 2147483648
        %v1295 = vmul.f32 %v1294, 1.442695
        %v1296 = vpow.pop %v1295
        %v1297 = vadd.f32 %v1296, 1.0
        %v1298 = vrcp.pop %v1297
        %v1299 = vmul.f32 1.0, %v1298
        %v1300 = vadd.f32 %v1102, %v1221
        %v1301 = vxor.u32 %v1300, 2147483648
        %v1302 = vmul.f32 %v1301, 1.442695
        %v1303 = vpow.pop %v1302
        %v1304 = vadd.f32 %v1303, 1.0
        %v1305 = vrcp.pop %v1304
        %v1306 = vmul.f32 1.0, %v1305
        %v1307 = vadd.f32 %v1290, %v235
        %v1308 = vmul.f32 %v1299, %v1307
        %v1309 = vadd.f32 %v1103, %v1308
        %v1310 = vtanh.pop %v1309
        %v1311 = vsub.f32 %v1097, %v1310
        %v1312 = vmul.f32 %v1306, %v1311
        %v1313 = vadd.f32 %v1310, %v1312
        %s1314 = scalar_lea.vmem %s222, 32 [#allocation8]
        %1315 = vst [vmem:[%s1314] sm:$0xff] %v1313
        %s1316 = scalar_lea.vmem %s196, 120 [#allocation3]
        %v1317 = vld [vmem:[%s1316] sm:$0xff]
        %v1318 = vld [vmem:[%s1316 + $0x8] sm:$0xff]
        %v1319 = vld [vmem:[%s1316 + $0x10] sm:$0xff]
        %v1320 = vld [vmem:[#allocation6] sm:$0xff]
        %v1321 = vld [vmem:[#allocation6 + $0x8] sm:$0xff]
        %v1322 = vld [vmem:[#allocation6 + $0x10] sm:$0xff]
        %v1323 = vld [vmem:[#allocation6 + $0x18] sm:$0xff]
        %v1324 = vld [vmem:[#allocation6 + $0x20] sm:$0xff]
        %v1325 = vld [vmem:[#allocation6 + $0x28] sm:$0xff]
        %v1326 = vld [vmem:[#allocation6 + $0x30] sm:$0xff]
        %v1327 = vld [vmem:[#allocation6 + $0x38] sm:$0xff]
        %v1328 = vld [vmem:[#allocation6 + $0x40] sm:$0xff]
        %v1329 = vld [vmem:[#allocation6 + $0x48] sm:$0xff]
        %v1330 = vld [vmem:[#allocation6 + $0x50] sm:$0xff]
        %v1331 = vld [vmem:[#allocation6 + $0x58] sm:$0xff]
        %v1332 = vld [vmem:[#allocation6 + $0x60] sm:$0xff]
        %v1333 = vld [vmem:[#allocation6 + $0x68] sm:$0xff]
        %v1334 = vld [vmem:[#allocation6 + $0x70] sm:$0xff]
        %v1335 = vld [vmem:[#allocation6 + $0x78] sm:$0xff]
        %v1336 = vld [vmem:[#allocation6 + $0x80] sm:$0xff]
        %v1337 = vld [vmem:[#allocation6 + $0x88] sm:$0xff]
        %v1338 = vld [vmem:[#allocation6 + $0x90] sm:$0xff]
        %v1339 = vld [vmem:[#allocation6 + $0x98] sm:$0xff]
        %v1340 = vld [vmem:[#allocation6 + $0xa0] sm:$0xff]
        %v1341 = vld [vmem:[#allocation6 + $0xa8] sm:$0xff]
        %v1342 = vld [vmem:[#allocation6 + $0xb0] sm:$0xff]
        %v1343 = vld [vmem:[#allocation6 + $0xb8] sm:$0xff]
        %v1344 = vld [vmem:[#allocation6 + $0xc0] sm:$0xff]
        %v1345 = vld [vmem:[#allocation6 + $0xc8] sm:$0xff]
        %v1346 = vld [vmem:[#allocation6 + $0xd0] sm:$0xff]
        %v1347 = vld [vmem:[#allocation6 + $0xd8] sm:$0xff]
        %v1348 = vld [vmem:[#allocation6 + $0xe0] sm:$0xff]
        %v1349 = vld [vmem:[#allocation6 + $0xe8] sm:$0xff]
        %v1350 = vld [vmem:[#allocation6 + $0xf0] sm:$0xff]
        %v1351 = vld [vmem:[#allocation6 + $0xf8] sm:$0xff]
        %v1352 = vld [vmem:[#allocation6 + $0x100] sm:$0xff]
        %v1353 = vld [vmem:[#allocation6 + $0x108] sm:$0xff]
        %v1354 = vld [vmem:[#allocation6 + $0x110] sm:$0xff]
        %v1355 = vld [vmem:[#allocation6 + $0x118] sm:$0xff]
        %v1356 = vld [vmem:[#allocation6 + $0x120] sm:$0xff]
        %v1357 = vld [vmem:[#allocation6 + $0x128] sm:$0xff]
        %v1358 = vld [vmem:[#allocation6 + $0x130] sm:$0xff]
        %v1359 = vld [vmem:[#allocation6 + $0x138] sm:$0xff]
        %v1360 = vld [vmem:[#allocation6 + $0x140] sm:$0xff]
        %v1361 = vld [vmem:[#allocation6 + $0x148] sm:$0xff]
        %v1362 = vld [vmem:[#allocation6 + $0x150] sm:$0xff]
        %v1363 = vld [vmem:[#allocation6 + $0x158] sm:$0xff]
        %v1364 = vld [vmem:[#allocation6 + $0x160] sm:$0xff]
        %v1365 = vld [vmem:[#allocation6 + $0x168] sm:$0xff]
        %v1366 = vld [vmem:[#allocation6 + $0x170] sm:$0xff]
        %v1367 = vld [vmem:[#allocation6 + $0x178] sm:$0xff]
        %1368 = vmatprep.subr.mxu0 %v1366
        %1369 = vmatpush1.msra.mxu0 %v1365
        %1370 = vmatprep.subr.mxu0 %v1363
        %1371 = vmatpush1.msra.mxu0 %v1362
        %1372 = vmatprep.subr.mxu0 %v1360
        %1373 = vmatpush1.msra.mxu0 %v1359
        %1374 = vmatprep.subr.mxu0 %v1357
        %1375 = vmatpush1.msra.mxu0 %v1356
        %1376 = vmatprep.subr.mxu0 %v1354
        %1377 = vmatpush1.msra.mxu0 %v1353
        %1378 = vmatprep.subr.mxu0 %v1351
        %1379 = vmatpush1.msra.mxu0 %v1350
        %1380 = vmatprep.subr.mxu0 %v1348
        %1381 = vmatpush1.msra.mxu0 %v1347
        %1382 = vmatprep.subr.mxu0 %v1345
        %1383 = vmatpush1.msra.mxu0 %v1344
        %1384 = vmatprep.subr.mxu0 %v1342
        %1385 = vmatpush1.msra.mxu0 %v1341
        %1386 = vmatprep.subr.mxu0 %v1339
        %1387 = vmatpush1.msra.mxu0 %v1338
        %1388 = vmatprep.subr.mxu0 %v1336
        %1389 = vmatpush1.msra.mxu0 %v1335
        %1390 = vmatprep.subr.mxu0 %v1333
        %1391 = vmatpush1.msra.mxu0 %v1332
        %1392 = vmatprep.subr.mxu0 %v1330
        %1393 = vmatpush1.msra.mxu0 %v1329
        %1394 = vmatprep.subr.mxu0 %v1327
        %1395 = vmatpush1.msra.mxu0 %v1326
        %1396 = vmatprep.subr.mxu0 %v1324
        %1397 = vmatpush1.msra.mxu0 %v1323
        %1398 = vmatprep.subr.mxu0 %v1321
        %1399 = vmatpush1.msra.mxu0 %v1320
        %1400 = vmatprep.subr.mxu0 0.0
        %1401 = vmatpush2.msra.mxu0 0.0
        %1402 = vmatprep.subr.mxu0 0.0
        %1403 = vmatpush2.msra.mxu0 0.0
        %1404 = vmatprep.subr.mxu0 0.0
        %1405 = vmatpush2.msra.mxu0 0.0
        %1406 = vmatprep.subr.mxu0 0.0
        %1407 = vmatpush2.msra.mxu0 0.0
        %1408 = vmatprep.subr.mxu0 0.0
        %1409 = vmatpush2.msra.mxu0 0.0
        %1410 = vmatprep.subr.mxu0 0.0
        %1411 = vmatpush2.msra.mxu0 0.0
        %1412 = vmatprep.subr.mxu0 0.0
        %1413 = vmatpush2.msra.mxu0 0.0
        %1414 = vmatprep.subr.mxu0 0.0
        %1415 = vmatpush2.msra.mxu0 0.0
        %1416 = vmatprep.subr.mxu0 0.0
        %1417 = vmatpush2.msra.mxu0 0.0
        %1418 = vmatprep.subr.mxu0 0.0
        %1419 = vmatpush2.msra.mxu0 0.0
        %1420 = vmatprep.subr.mxu0 0.0
        %1421 = vmatpush2.msra.mxu0 0.0
        %1422 = vmatprep.subr.mxu0 0.0
        %1423 = vmatpush2.msra.mxu0 0.0
        %1424 = vmatprep.subr.mxu0 0.0
        %1425 = vmatpush2.msra.mxu0 0.0
        %1426 = vmatprep.subr.mxu0 0.0
        %1427 = vmatpush2.msra.mxu0 0.0
        %1428 = vmatprep.subr.mxu0 0.0
        %1429 = vmatpush2.msra.mxu0 0.0
        %1430 = vmatprep.subr.mxu0 0.0
        %1431 = vmatpush2.msra.mxu0 0.0
        %1432 = vmatprep.mubr.f32.mxu0 0.0
        %1433 = vmatmul.mubr.f32.gmra.mxu0 %v1313
        %v1434 = vpop.f32.mrf.mxu0
        %v1435 = vadd.f32 0.0, %v1434
        %v1436 = vpop.f32.mrf.mxu0
        %v1437 = vadd.f32 0.0, %v1436
        %1438 = vdwg.mxu0
        %1439 = vmatprep.subr.mxu0 0.0
        %1440 = vmatpush1.msra.mxu0 %v1367
        %1441 = vmatprep.subr.mxu0 0.0
        %1442 = vmatpush1.msra.mxu0 %v1364
        %1443 = vmatprep.subr.mxu0 0.0
        %1444 = vmatpush1.msra.mxu0 %v1361
        %1445 = vmatprep.subr.mxu0 0.0
        %1446 = vmatpush1.msra.mxu0 %v1358
        %1447 = vmatprep.subr.mxu0 0.0
        %1448 = vmatpush1.msra.mxu0 %v1355
        %1449 = vmatprep.subr.mxu0 0.0
        %1450 = vmatpush1.msra.mxu0 %v1352
        %1451 = vmatprep.subr.mxu0 0.0
        %1452 = vmatpush1.msra.mxu0 %v1349
        %1453 = vmatprep.subr.mxu0 0.0
        %1454 = vmatpush1.msra.mxu0 %v1346
        %1455 = vmatprep.subr.mxu0 0.0
        %1456 = vmatpush1.msra.mxu0 %v1343
        %1457 = vmatprep.subr.mxu0 0.0
        %1458 = vmatpush1.msra.mxu0 %v1340
        %1459 = vmatprep.subr.mxu0 0.0
        %1460 = vmatpush1.msra.mxu0 %v1337
        %1461 = vmatprep.subr.mxu0 0.0
        %1462 = vmatpush1.msra.mxu0 %v1334
        %1463 = vmatprep.subr.mxu0 0.0
        %1464 = vmatpush1.msra.mxu0 %v1331
        %1465 = vmatprep.subr.mxu0 0.0
        %1466 = vmatpush1.msra.mxu0 %v1328
        %1467 = vmatprep.subr.mxu0 0.0
        %1468 = vmatpush1.msra.mxu0 %v1325
        %1469 = vmatprep.subr.mxu0 0.0
        %1470 = vmatpush1.msra.mxu0 %v1322
        %1471 = vmatprep.subr.mxu0 0.0
        %1472 = vmatpush2.msra.mxu0 0.0
        %1473 = vmatprep.subr.mxu0 0.0
        %1474 = vmatpush2.msra.mxu0 0.0
        %1475 = vmatprep.subr.mxu0 0.0
        %1476 = vmatpush2.msra.mxu0 0.0
        %1477 = vmatprep.subr.mxu0 0.0
        %1478 = vmatpush2.msra.mxu0 0.0
        %1479 = vmatprep.subr.mxu0 0.0
        %1480 = vmatpush2.msra.mxu0 0.0
        %1481 = vmatprep.subr.mxu0 0.0
        %1482 = vmatpush2.msra.mxu0 0.0
        %1483 = vmatprep.subr.mxu0 0.0
        %1484 = vmatpush2.msra.mxu0 0.0
        %1485 = vmatprep.subr.mxu0 0.0
        %1486 = vmatpush2.msra.mxu0 0.0
        %1487 = vmatprep.subr.mxu0 0.0
        %1488 = vmatpush2.msra.mxu0 0.0
        %1489 = vmatprep.subr.mxu0 0.0
        %1490 = vmatpush2.msra.mxu0 0.0
        %1491 = vmatprep.subr.mxu0 0.0
        %1492 = vmatpush2.msra.mxu0 0.0
        %1493 = vmatprep.subr.mxu0 0.0
        %1494 = vmatpush2.msra.mxu0 0.0
        %1495 = vmatprep.subr.mxu0 0.0
        %1496 = vmatpush2.msra.mxu0 0.0
        %1497 = vmatprep.subr.mxu0 0.0
        %1498 = vmatpush2.msra.mxu0 0.0
        %1499 = vmatprep.subr.mxu0 0.0
        %1500 = vmatpush2.msra.mxu0 0.0
        %1501 = vmatprep.subr.mxu0 0.0
        %1502 = vmatpush2.msra.mxu0 0.0
        %1503 = vmatprep.mubr.f32.mxu0 0.0
        %1504 = vmatmul.mubr.f32.gmra.mxu0 %v1313
        %v1505 = vpop.f32.mrf.mxu0
        %v1506 = vadd.f32 0.0, %v1505
        %v1507 = vpop.f32.mrf.mxu0
        %1508 = vdwg.mxu0
        %v1509 = vadd.f32 %v1317, %v1435
        %v1510 = vxor.u32 %v1509, 2147483648
        %v1511 = vmul.f32 %v1510, 1.442695
        %v1512 = vpow.pop %v1511
        %v1513 = vadd.f32 %v1512, 1.0
        %v1514 = vrcp.pop %v1513
        %v1515 = vmul.f32 1.0, %v1514
        %v1516 = vadd.f32 %v1318, %v1437
        %v1517 = vxor.u32 %v1516, 2147483648
        %v1518 = vmul.f32 %v1517, 1.442695
        %v1519 = vpow.pop %v1518
        %v1520 = vadd.f32 %v1519, 1.0
        %v1521 = vrcp.pop %v1520
        %v1522 = vmul.f32 1.0, %v1521
        %v1523 = vadd.f32 %v1506, %v235
        %v1524 = vmul.f32 %v1515, %v1523
        %v1525 = vadd.f32 %v1319, %v1524
        %v1526 = vtanh.pop %v1525
        %v1527 = vsub.f32 %v1313, %v1526
        %v1528 = vmul.f32 %v1522, %v1527
        %v1529 = vadd.f32 %v1526, %v1528
        %s1530 = scalar_lea.vmem %s222, 40 [#allocation8]
        %1531 = vst [vmem:[%s1530] sm:$0xff] %v1529
        %s1532 = scalar_lea.vmem %s196, 144 [#allocation3]
        %v1533 = vld [vmem:[%s1532] sm:$0xff]
        %v1534 = vld [vmem:[%s1532 + $0x8] sm:$0xff]
        %v1535 = vld [vmem:[%s1532 + $0x10] sm:$0xff]
        %v1536 = vld [vmem:[#allocation6] sm:$0xff]
        %v1537 = vld [vmem:[#allocation6 + $0x8] sm:$0xff]
        %v1538 = vld [vmem:[#allocation6 + $0x10] sm:$0xff]
        %v1539 = vld [vmem:[#allocation6 + $0x18] sm:$0xff]
        %v1540 = vld [vmem:[#allocation6 + $0x20] sm:$0xff]
        %v1541 = vld [vmem:[#allocation6 + $0x28] sm:$0xff]
        %v1542 = vld [vmem:[#allocation6 + $0x30] sm:$0xff]
        %v1543 = vld [vmem:[#allocation6 + $0x38] sm:$0xff]
        %v1544 = vld [vmem:[#allocation6 + $0x40] sm:$0xff]
        %v1545 = vld [vmem:[#allocation6 + $0x48] sm:$0xff]
        %v1546 = vld [vmem:[#allocation6 + $0x50] sm:$0xff]
        %v1547 = vld [vmem:[#allocation6 + $0x58] sm:$0xff]
        %v1548 = vld [vmem:[#allocation6 + $0x60] sm:$0xff]
        %v1549 = vld [vmem:[#allocation6 + $0x68] sm:$0xff]
        %v1550 = vld [vmem:[#allocation6 + $0x70] sm:$0xff]
        %v1551 = vld [vmem:[#allocation6 + $0x78] sm:$0xff]
        %v1552 = vld [vmem:[#allocation6 + $0x80] sm:$0xff]
        %v1553 = vld [vmem:[#allocation6 + $0x88] sm:$0xff]
        %v1554 = vld [vmem:[#allocation6 + $0x90] sm:$0xff]
        %v1555 = vld [vmem:[#allocation6 + $0x98] sm:$0xff]
        %v1556 = vld [vmem:[#allocation6 + $0xa0] sm:$0xff]
        %v1557 = vld [vmem:[#allocation6 + $0xa8] sm:$0xff]
        %v1558 = vld [vmem:[#allocation6 + $0xb0] sm:$0xff]
        %v1559 = vld [vmem:[#allocation6 + $0xb8] sm:$0xff]
        %v1560 = vld [vmem:[#allocation6 + $0xc0] sm:$0xff]
        %v1561 = vld [vmem:[#allocation6 + $0xc8] sm:$0xff]
        %v1562 = vld [vmem:[#allocation6 + $0xd0] sm:$0xff]
        %v1563 = vld [vmem:[#allocation6 + $0xd8] sm:$0xff]
        %v1564 = vld [vmem:[#allocation6 + $0xe0] sm:$0xff]
        %v1565 = vld [vmem:[#allocation6 + $0xe8] sm:$0xff]
        %v1566 = vld [vmem:[#allocation6 + $0xf0] sm:$0xff]
        %v1567 = vld [vmem:[#allocation6 + $0xf8] sm:$0xff]
        %v1568 = vld [vmem:[#allocation6 + $0x100] sm:$0xff]
        %v1569 = vld [vmem:[#allocation6 + $0x108] sm:$0xff]
        %v1570 = vld [vmem:[#allocation6 + $0x110] sm:$0xff]
        %v1571 = vld [vmem:[#allocation6 + $0x118] sm:$0xff]
        %v1572 = vld [vmem:[#allocation6 + $0x120] sm:$0xff]
        %v1573 = vld [vmem:[#allocation6 + $0x128] sm:$0xff]
        %v1574 = vld [vmem:[#allocation6 + $0x130] sm:$0xff]
        %v1575 = vld [vmem:[#allocation6 + $0x138] sm:$0xff]
        %v1576 = vld [vmem:[#allocation6 + $0x140] sm:$0xff]
        %v1577 = vld [vmem:[#allocation6 + $0x148] sm:$0xff]
        %v1578 = vld [vmem:[#allocation6 + $0x150] sm:$0xff]
        %v1579 = vld [vmem:[#allocation6 + $0x158] sm:$0xff]
        %v1580 = vld [vmem:[#allocation6 + $0x160] sm:$0xff]
        %v1581 = vld [vmem:[#allocation6 + $0x168] sm:$0xff]
        %v1582 = vld [vmem:[#allocation6 + $0x170] sm:$0xff]
        %v1583 = vld [vmem:[#allocation6 + $0x178] sm:$0xff]
        %1584 = vmatprep.subr.mxu0 %v1582
        %1585 = vmatpush1.msra.mxu0 %v1581
        %1586 = vmatprep.subr.mxu0 %v1579
        %1587 = vmatpush1.msra.mxu0 %v1578
        %1588 = vmatprep.subr.mxu0 %v1576
        %1589 = vmatpush1.msra.mxu0 %v1575
        %1590 = vmatprep.subr.mxu0 %v1573
        %1591 = vmatpush1.msra.mxu0 %v1572
        %1592 = vmatprep.subr.mxu0 %v1570
        %1593 = vmatpush1.msra.mxu0 %v1569
        %1594 = vmatprep.subr.mxu0 %v1567
        %1595 = vmatpush1.msra.mxu0 %v1566
        %1596 = vmatprep.subr.mxu0 %v1564
        %1597 = vmatpush1.msra.mxu0 %v1563
        %1598 = vmatprep.subr.mxu0 %v1561
        %1599 = vmatpush1.msra.mxu0 %v1560
        %1600 = vmatprep.subr.mxu0 %v1558
        %1601 = vmatpush1.msra.mxu0 %v1557
        %1602 = vmatprep.subr.mxu0 %v1555
        %1603 = vmatpush1.msra.mxu0 %v1554
        %1604 = vmatprep.subr.mxu0 %v1552
        %1605 = vmatpush1.msra.mxu0 %v1551
        %1606 = vmatprep.subr.mxu0 %v1549
        %1607 = vmatpush1.msra.mxu0 %v1548
        %1608 = vmatprep.subr.mxu0 %v1546
        %1609 = vmatpush1.msra.mxu0 %v1545
        %1610 = vmatprep.subr.mxu0 %v1543
        %1611 = vmatpush1.msra.mxu0 %v1542
        %1612 = vmatprep.subr.mxu0 %v1540
        %1613 = vmatpush1.msra.mxu0 %v1539
        %1614 = vmatprep.subr.mxu0 %v1537
        %1615 = vmatpush1.msra.mxu0 %v1536
        %1616 = vmatprep.subr.mxu0 0.0
        %1617 = vmatpush2.msra.mxu0 0.0
        %1618 = vmatprep.subr.mxu0 0.0
        %1619 = vmatpush2.msra.mxu0 0.0
        %1620 = vmatprep.subr.mxu0 0.0
        %1621 = vmatpush2.msra.mxu0 0.0
        %1622 = vmatprep.subr.mxu0 0.0
        %1623 = vmatpush2.msra.mxu0 0.0
        %1624 = vmatprep.subr.mxu0 0.0
        %1625 = vmatpush2.msra.mxu0 0.0
        %1626 = vmatprep.subr.mxu0 0.0
        %1627 = vmatpush2.msra.mxu0 0.0
        %1628 = vmatprep.subr.mxu0 0.0
        %1629 = vmatpush2.msra.mxu0 0.0
        %1630 = vmatprep.subr.mxu0 0.0
        %1631 = vmatpush2.msra.mxu0 0.0
        %1632 = vmatprep.subr.mxu0 0.0
        %1633 = vmatpush2.msra.mxu0 0.0
        %1634 = vmatprep.subr.mxu0 0.0
        %1635 = vmatpush2.msra.mxu0 0.0
        %1636 = vmatprep.subr.mxu0 0.0
        %1637 = vmatpush2.msra.mxu0 0.0
        %1638 = vmatprep.subr.mxu0 0.0
        %1639 = vmatpush2.msra.mxu0 0.0
        %1640 = vmatprep.subr.mxu0 0.0
        %1641 = vmatpush2.msra.mxu0 0.0
        %1642 = vmatprep.subr.mxu0 0.0
        %1643 = vmatpush2.msra.mxu0 0.0
        %1644 = vmatprep.subr.mxu0 0.0
        %1645 = vmatpush2.msra.mxu0 0.0
        %1646 = vmatprep.subr.mxu0 0.0
        %1647 = vmatpush2.msra.mxu0 0.0
        %1648 = vmatprep.mubr.f32.mxu0 0.0
        %1649 = vmatmul.mubr.f32.gmra.mxu0 %v1529
        %v1650 = vpop.f32.mrf.mxu0
        %v1651 = vadd.f32 0.0, %v1650
        %v1652 = vpop.f32.mrf.mxu0
        %v1653 = vadd.f32 0.0, %v1652
        %1654 = vdwg.mxu0
        %1655 = vmatprep.subr.mxu0 0.0
        %1656 = vmatpush1.msra.mxu0 %v1583
        %1657 = vmatprep.subr.mxu0 0.0
        %1658 = vmatpush1.msra.mxu0 %v1580
        %1659 = vmatprep.subr.mxu0 0.0
        %1660 = vmatpush1.msra.mxu0 %v1577
        %1661 = vmatprep.subr.mxu0 0.0
        %1662 = vmatpush1.msra.mxu0 %v1574
        %1663 = vmatprep.subr.mxu0 0.0
        %1664 = vmatpush1.msra.mxu0 %v1571
        %1665 = vmatprep.subr.mxu0 0.0
        %1666 = vmatpush1.msra.mxu0 %v1568
        %1667 = vmatprep.subr.mxu0 0.0
        %1668 = vmatpush1.msra.mxu0 %v1565
        %1669 = vmatprep.subr.mxu0 0.0
        %1670 = vmatpush1.msra.mxu0 %v1562
        %1671 = vmatprep.subr.mxu0 0.0
        %1672 = vmatpush1.msra.mxu0 %v1559
        %1673 = vmatprep.subr.mxu0 0.0
        %1674 = vmatpush1.msra.mxu0 %v1556
        %1675 = vmatprep.subr.mxu0 0.0
        %1676 = vmatpush1.msra.mxu0 %v1553
        %1677 = vmatprep.subr.mxu0 0.0
        %1678 = vmatpush1.msra.mxu0 %v1550
        %1679 = vmatprep.subr.mxu0 0.0
        %1680 = vmatpush1.msra.mxu0 %v1547
        %1681 = vmatprep.subr.mxu0 0.0
        %1682 = vmatpush1.msra.mxu0 %v1544
        %1683 = vmatprep.subr.mxu0 0.0
        %1684 = vmatpush1.msra.mxu0 %v1541
        %1685 = vmatprep.subr.mxu0 0.0
        %1686 = vmatpush1.msra.mxu0 %v1538
        %1687 = vmatprep.subr.mxu0 0.0
        %1688 = vmatpush2.msra.mxu0 0.0
        %1689 = vmatprep.subr.mxu0 0.0
        %1690 = vmatpush2.msra.mxu0 0.0
        %1691 = vmatprep.subr.mxu0 0.0
        %1692 = vmatpush2.msra.mxu0 0.0
        %1693 = vmatprep.subr.mxu0 0.0
        %1694 = vmatpush2.msra.mxu0 0.0
        %1695 = vmatprep.subr.mxu0 0.0
        %1696 = vmatpush2.msra.mxu0 0.0
        %1697 = vmatprep.subr.mxu0 0.0
        %1698 = vmatpush2.msra.mxu0 0.0
        %1699 = vmatprep.subr.mxu0 0.0
        %1700 = vmatpush2.msra.mxu0 0.0
        %1701 = vmatprep.subr.mxu0 0.0
        %1702 = vmatpush2.msra.mxu0 0.0
        %1703 = vmatprep.subr.mxu0 0.0
        %1704 = vmatpush2.msra.mxu0 0.0
        %1705 = vmatprep.subr.mxu0 0.0
        %1706 = vmatpush2.msra.mxu0 0.0
        %1707 = vmatprep.subr.mxu0 0.0
        %1708 = vmatpush2.msra.mxu0 0.0
        %1709 = vmatprep.subr.mxu0 0.0
        %1710 = vmatpush2.msra.mxu0 0.0
        %1711 = vmatprep.subr.mxu0 0.0
        %1712 = vmatpush2.msra.mxu0 0.0
        %1713 = vmatprep.subr.mxu0 0.0
        %1714 = vmatpush2.msra.mxu0 0.0
        %1715 = vmatprep.subr.mxu0 0.0
        %1716 = vmatpush2.msra.mxu0 0.0
        %1717 = vmatprep.subr.mxu0 0.0
        %1718 = vmatpush2.msra.mxu0 0.0
        %1719 = vmatprep.mubr.f32.mxu0 0.0
        %1720 = vmatmul.mubr.f32.gmra.mxu0 %v1529
        %v1721 = vpop.f32.mrf.mxu0
        %v1722 = vadd.f32 0.0, %v1721
        %v1723 = vpop.f32.mrf.mxu0
        %1724 = vdwg.mxu0
        %v1725 = vadd.f32 %v1533, %v1651
        %v1726 = vxor.u32 %v1725, 2147483648
        %v1727 = vmul.f32 %v1726, 1.442695
        %v1728 = vpow.pop %v1727
        %v1729 = vadd.f32 %v1728, 1.0
        %v1730 = vrcp.pop %v1729
        %v1731 = vmul.f32 1.0, %v1730
        %v1732 = vadd.f32 %v1534, %v1653
        %v1733 = vxor.u32 %v1732, 2147483648
        %v1734 = vmul.f32 %v1733, 1.442695
        %v1735 = vpow.pop %v1734
        %v1736 = vadd.f32 %v1735, 1.0
        %v1737 = vrcp.pop %v1736
        %v1738 = vmul.f32 1.0, %v1737
        %v1739 = vadd.f32 %v1722, %v235
        %v1740 = vmul.f32 %v1731, %v1739
        %v1741 = vadd.f32 %v1535, %v1740
        %v1742 = vtanh.pop %v1741
        %v1743 = vsub.f32 %v1529, %v1742
        %v1744 = vmul.f32 %v1738, %v1743
        %v1745 = vadd.f32 %v1742, %v1744
        %s1746 = scalar_lea.vmem %s222, 48 [#allocation8]
        %1747 = vst [vmem:[%s1746] sm:$0xff] %v1745
        %s1748 = scalar_lea.vmem %s196, 168 [#allocation3]
        %v1749 = vld [vmem:[%s1748] sm:$0xff]
        %v1750 = vld [vmem:[%s1748 + $0x8] sm:$0xff]
        %v1751 = vld [vmem:[%s1748 + $0x10] sm:$0xff]
        %v1752 = vld [vmem:[#allocation6] sm:$0xff]
        %v1753 = vld [vmem:[#allocation6 + $0x8] sm:$0xff]
        %v1754 = vld [vmem:[#allocation6 + $0x10] sm:$0xff]
        %v1755 = vld [vmem:[#allocation6 + $0x18] sm:$0xff]
        %v1756 = vld [vmem:[#allocation6 + $0x20] sm:$0xff]
        %v1757 = vld [vmem:[#allocation6 + $0x28] sm:$0xff]
        %v1758 = vld [vmem:[#allocation6 + $0x30] sm:$0xff]
        %v1759 = vld [vmem:[#allocation6 + $0x38] sm:$0xff]
        %v1760 = vld [vmem:[#allocation6 + $0x40] sm:$0xff]
        %v1761 = vld [vmem:[#allocation6 + $0x48] sm:$0xff]
        %v1762 = vld [vmem:[#allocation6 + $0x50] sm:$0xff]
        %v1763 = vld [vmem:[#allocation6 + $0x58] sm:$0xff]
        %v1764 = vld [vmem:[#allocation6 + $0x60] sm:$0xff]
        %v1765 = vld [vmem:[#allocation6 + $0x68] sm:$0xff]
        %v1766 = vld [vmem:[#allocation6 + $0x70] sm:$0xff]
        %v1767 = vld [vmem:[#allocation6 + $0x78] sm:$0xff]
        %v1768 = vld [vmem:[#allocation6 + $0x80] sm:$0xff]
        %v1769 = vld [vmem:[#allocation6 + $0x88] sm:$0xff]
        %v1770 = vld [vmem:[#allocation6 + $0x90] sm:$0xff]
        %v1771 = vld [vmem:[#allocation6 + $0x98] sm:$0xff]
        %v1772 = vld [vmem:[#allocation6 + $0xa0] sm:$0xff]
        %v1773 = vld [vmem:[#allocation6 + $0xa8] sm:$0xff]
        %v1774 = vld [vmem:[#allocation6 + $0xb0] sm:$0xff]
        %v1775 = vld [vmem:[#allocation6 + $0xb8] sm:$0xff]
        %v1776 = vld [vmem:[#allocation6 + $0xc0] sm:$0xff]
        %v1777 = vld [vmem:[#allocation6 + $0xc8] sm:$0xff]
        %v1778 = vld [vmem:[#allocation6 + $0xd0] sm:$0xff]
        %v1779 = vld [vmem:[#allocation6 + $0xd8] sm:$0xff]
        %v1780 = vld [vmem:[#allocation6 + $0xe0] sm:$0xff]
        %v1781 = vld [vmem:[#allocation6 + $0xe8] sm:$0xff]
        %v1782 = vld [vmem:[#allocation6 + $0xf0] sm:$0xff]
        %v1783 = vld [vmem:[#allocation6 + $0xf8] sm:$0xff]
        %v1784 = vld [vmem:[#allocation6 + $0x100] sm:$0xff]
        %v1785 = vld [vmem:[#allocation6 + $0x108] sm:$0xff]
        %v1786 = vld [vmem:[#allocation6 + $0x110] sm:$0xff]
        %v1787 = vld [vmem:[#allocation6 + $0x118] sm:$0xff]
        %v1788 = vld [vmem:[#allocation6 + $0x120] sm:$0xff]
        %v1789 = vld [vmem:[#allocation6 + $0x128] sm:$0xff]
        %v1790 = vld [vmem:[#allocation6 + $0x130] sm:$0xff]
        %v1791 = vld [vmem:[#allocation6 + $0x138] sm:$0xff]
        %v1792 = vld [vmem:[#allocation6 + $0x140] sm:$0xff]
        %v1793 = vld [vmem:[#allocation6 + $0x148] sm:$0xff]
        %v1794 = vld [vmem:[#allocation6 + $0x150] sm:$0xff]
        %v1795 = vld [vmem:[#allocation6 + $0x158] sm:$0xff]
        %v1796 = vld [vmem:[#allocation6 + $0x160] sm:$0xff]
        %v1797 = vld [vmem:[#allocation6 + $0x168] sm:$0xff]
        %v1798 = vld [vmem:[#allocation6 + $0x170] sm:$0xff]
        %v1799 = vld [vmem:[#allocation6 + $0x178] sm:$0xff]
        %1800 = vmatprep.subr.mxu0 %v1798
        %1801 = vmatpush1.msra.mxu0 %v1797
        %1802 = vmatprep.subr.mxu0 %v1795
        %1803 = vmatpush1.msra.mxu0 %v1794
        %1804 = vmatprep.subr.mxu0 %v1792
        %1805 = vmatpush1.msra.mxu0 %v1791
        %1806 = vmatprep.subr.mxu0 %v1789
        %1807 = vmatpush1.msra.mxu0 %v1788
        %1808 = vmatprep.subr.mxu0 %v1786
        %1809 = vmatpush1.msra.mxu0 %v1785
        %1810 = vmatprep.subr.mxu0 %v1783
        %1811 = vmatpush1.msra.mxu0 %v1782
        %1812 = vmatprep.subr.mxu0 %v1780
        %1813 = vmatpush1.msra.mxu0 %v1779
        %1814 = vmatprep.subr.mxu0 %v1777
        %1815 = vmatpush1.msra.mxu0 %v1776
        %1816 = vmatprep.subr.mxu0 %v1774
        %1817 = vmatpush1.msra.mxu0 %v1773
        %1818 = vmatprep.subr.mxu0 %v1771
        %1819 = vmatpush1.msra.mxu0 %v1770
        %1820 = vmatprep.subr.mxu0 %v1768
        %1821 = vmatpush1.msra.mxu0 %v1767
        %1822 = vmatprep.subr.mxu0 %v1765
        %1823 = vmatpush1.msra.mxu0 %v1764
        %1824 = vmatprep.subr.mxu0 %v1762
        %1825 = vmatpush1.msra.mxu0 %v1761
        %1826 = vmatprep.subr.mxu0 %v1759
        %1827 = vmatpush1.msra.mxu0 %v1758
        %1828 = vmatprep.subr.mxu0 %v1756
        %1829 = vmatpush1.msra.mxu0 %v1755
        %1830 = vmatprep.subr.mxu0 %v1753
        %1831 = vmatpush1.msra.mxu0 %v1752
        %1832 = vmatprep.subr.mxu0 0.0
        %1833 = vmatpush2.msra.mxu0 0.0
        %1834 = vmatprep.subr.mxu0 0.0
        %1835 = vmatpush2.msra.mxu0 0.0
        %1836 = vmatprep.subr.mxu0 0.0
        %1837 = vmatpush2.msra.mxu0 0.0
        %1838 = vmatprep.subr.mxu0 0.0
        %1839 = vmatpush2.msra.mxu0 0.0
        %1840 = vmatprep.subr.mxu0 0.0
        %1841 = vmatpush2.msra.mxu0 0.0
        %1842 = vmatprep.subr.mxu0 0.0
        %1843 = vmatpush2.msra.mxu0 0.0
        %1844 = vmatprep.subr.mxu0 0.0
        %1845 = vmatpush2.msra.mxu0 0.0
        %1846 = vmatprep.subr.mxu0 0.0
        %1847 = vmatpush2.msra.mxu0 0.0
        %1848 = vmatprep.subr.mxu0 0.0
        %1849 = vmatpush2.msra.mxu0 0.0
        %1850 = vmatprep.subr.mxu0 0.0
        %1851 = vmatpush2.msra.mxu0 0.0
        %1852 = vmatprep.subr.mxu0 0.0
        %1853 = vmatpush2.msra.mxu0 0.0
        %1854 = vmatprep.subr.mxu0 0.0
        %1855 = vmatpush2.msra.mxu0 0.0
        %1856 = vmatprep.subr.mxu0 0.0
        %1857 = vmatpush2.msra.mxu0 0.0
        %1858 = vmatprep.subr.mxu0 0.0
        %1859 = vmatpush2.msra.mxu0 0.0
        %1860 = vmatprep.subr.mxu0 0.0
        %1861 = vmatpush2.msra.mxu0 0.0
        %1862 = vmatprep.subr.mxu0 0.0
        %1863 = vmatpush2.msra.mxu0 0.0
        %1864 = vmatprep.mubr.f32.mxu0 0.0
        %1865 = vmatmul.mubr.f32.gmra.mxu0 %v1745
        %v1866 = vpop.f32.mrf.mxu0
        %v1867 = vadd.f32 0.0, %v1866
        %v1868 = vpop.f32.mrf.mxu0
        %v1869 = vadd.f32 0.0, %v1868
        %1870 = vdwg.mxu0
        %1871 = vmatprep.subr.mxu0 0.0
        %1872 = vmatpush1.msra.mxu0 %v1799
        %1873 = vmatprep.subr.mxu0 0.0
        %1874 = vmatpush1.msra.mxu0 %v1796
        %1875 = vmatprep.subr.mxu0 0.0
        %1876 = vmatpush1.msra.mxu0 %v1793
        %1877 = vmatprep.subr.mxu0 0.0
        %1878 = vmatpush1.msra.mxu0 %v1790
        %1879 = vmatprep.subr.mxu0 0.0
        %1880 = vmatpush1.msra.mxu0 %v1787
        %1881 = vmatprep.subr.mxu0 0.0
        %1882 = vmatpush1.msra.mxu0 %v1784
        %1883 = vmatprep.subr.mxu0 0.0
        %1884 = vmatpush1.msra.mxu0 %v1781
        %1885 = vmatprep.subr.mxu0 0.0
        %1886 = vmatpush1.msra.mxu0 %v1778
        %1887 = vmatprep.subr.mxu0 0.0
        %1888 = vmatpush1.msra.mxu0 %v1775
        %1889 = vmatprep.subr.mxu0 0.0
        %1890 = vmatpush1.msra.mxu0 %v1772
        %1891 = vmatprep.subr.mxu0 0.0
        %1892 = vmatpush1.msra.mxu0 %v1769
        %1893 = vmatprep.subr.mxu0 0.0
        %1894 = vmatpush1.msra.mxu0 %v1766
        %1895 = vmatprep.subr.mxu0 0.0
        %1896 = vmatpush1.msra.mxu0 %v1763
        %1897 = vmatprep.subr.mxu0 0.0
        %1898 = vmatpush1.msra.mxu0 %v1760
        %1899 = vmatprep.subr.mxu0 0.0
        %1900 = vmatpush1.msra.mxu0 %v1757
        %1901 = vmatprep.subr.mxu0 0.0
        %1902 = vmatpush1.msra.mxu0 %v1754
        %1903 = vmatprep.subr.mxu0 0.0
        %1904 = vmatpush2.msra.mxu0 0.0
        %1905 = vmatprep.subr.mxu0 0.0
        %1906 = vmatpush2.msra.mxu0 0.0
        %1907 = vmatprep.subr.mxu0 0.0
        %1908 = vmatpush2.msra.mxu0 0.0
        %1909 = vmatprep.subr.mxu0 0.0
        %1910 = vmatpush2.msra.mxu0 0.0
        %1911 = vmatprep.subr.mxu0 0.0
        %1912 = vmatpush2.msra.mxu0 0.0
        %1913 = vmatprep.subr.mxu0 0.0
        %1914 = vmatpush2.msra.mxu0 0.0
        %1915 = vmatprep.subr.mxu0 0.0
        %1916 = vmatpush2.msra.mxu0 0.0
        %1917 = vmatprep.subr.mxu0 0.0
        %1918 = vmatpush2.msra.mxu0 0.0
        %1919 = vmatprep.subr.mxu0 0.0
        %1920 = vmatpush2.msra.mxu0 0.0
        %1921 = vmatprep.subr.mxu0 0.0
        %1922 = vmatpush2.msra.mxu0 0.0
        %1923 = vmatprep.subr.mxu0 0.0
        %1924 = vmatpush2.msra.mxu0 0.0
        %1925 = vmatprep.subr.mxu0 0.0
        %1926 = vmatpush2.msra.mxu0 0.0
        %1927 = vmatprep.subr.mxu0 0.0
        %1928 = vmatpush2.msra.mxu0 0.0
        %1929 = vmatprep.subr.mxu0 0.0
        %1930 = vmatpush2.msra.mxu0 0.0
        %1931 = vmatprep.subr.mxu0 0.0
        %1932 = vmatpush2.msra.mxu0 0.0
        %1933 = vmatprep.subr.mxu0 0.0
        %1934 = vmatpush2.msra.mxu0 0.0
        %1935 = vmatprep.mubr.f32.mxu0 0.0
        %1936 = vmatmul.mubr.f32.gmra.mxu0 %v1745
        %v1937 = vpop.f32.mrf.mxu0
        %v1938 = vadd.f32 0.0, %v1937
        %v1939 = vpop.f32.mrf.mxu0
        %1940 = vdwg.mxu0
        %v1941 = vadd.f32 %v1749, %v1867
        %v1942 = vxor.u32 %v1941, 2147483648
        %v1943 = vmul.f32 %v1942, 1.442695
        %v1944 = vpow.pop %v1943
        %v1945 = vadd.f32 %v1944, 1.0
        %v1946 = vrcp.pop %v1945
        %v1947 = vmul.f32 1.0, %v1946
        %v1948 = vadd.f32 %v1750, %v1869
        %v1949 = vxor.u32 %v1948, 2147483648
        %v1950 = vmul.f32 %v1949, 1.442695
        %v1951 = vpow.pop %v1950
        %v1952 = vadd.f32 %v1951, 1.0
        %v1953 = vrcp.pop %v1952
        %v1954 = vmul.f32 1.0, %v1953
        %v1955 = vadd.f32 %v1938, %v235
        %v1956 = vmul.f32 %v1947, %v1955
        %v1957 = vadd.f32 %v1751, %v1956
        %v1958 = vtanh.pop %v1957
        %v1959 = vsub.f32 %v1745, %v1958
        %v1960 = vmul.f32 %v1954, %v1959
        %v1961 = vadd.f32 %v1958, %v1960
        %s1962 = scalar_lea.vmem %s222, 56 [#allocation8]
        %1963 = vst [vmem:[%s1962] sm:$0xff] %v1961
        %1964 = vst [vmem:[#allocation2] sm:$0xff] %v1961
        %s1965 = sand.u32 %s113, 1
        %s1966 = scalar_lea.sflag [#allocation5], %s1965
        %s1967 = sand.u32 %s113, 1
        %s1968 = smul.addr %s1967, 64
        %s1969 = scalar_lea.vmem [#allocation8], %s1968
        // Predicated region
        $region45: #{tpu_custom_call.1} parent=31 // pred_check
          %p1970 = pneg %p123
        $region46: #{tpu_custom_call.1} parent=31 // pred_check_branch
          %1972 = sbr.rel (%p1970) target = $region48
        $region47: #{tpu_custom_call.1} parent=31 // pred_region
          %s1973 = smul.u32 8, %s26
          %s1975 = ssub.s32 1024, 1024
          %1976 = vsyncadd %s1966, %s1975
          %s1977 = sadd.s32 %s25, %s1973
          %s1978 = smul.addr %s1977, 128
          %s1979 = scalar_lea.hbm %s3, %s1978
          %s1980 = sshll.u32 %s1969, 4
          %s1981 = int_to_ptr.vmem [resolvable:$true] %s1980
          %1986 = dma.vmem_to_hbm [thread:$0]  %s1981, 1024, %s1979, %s1966, 128, 128, 8
        $region48: #{tpu_custom_call.1} parent=31 // pred_fallthru
          _
      $region32: #{tpu_custom_call.1} parent=5 // pred_fallthru
        _
      %p1987 = scmp.le.s32.totalorder 2, %s16
      // Predicated region
      $region49: #{tpu_custom_call.1} parent=5 // pred_check
        %p1988 = pneg %p1987
      $region50: #{tpu_custom_call.1} parent=5 // pred_check_branch
        %1990 = sbr.rel (%p1988) target = $region52
      $region51: #{tpu_custom_call.1} parent=5 // pred_region
        %s1991 = ssub.s32 %s16, 2
        // Predicated region
        $region53: #{tpu_custom_call.1} parent=51 // pred_check
          %p1992 = pneg %p129
        $region54: #{tpu_custom_call.1} parent=51 // pred_check_branch
          %1994 = sbr.rel (%p1992) target = $region56
        $region55: #{tpu_custom_call.1} parent=51 // pred_region
          %s1995 = sand.u32 %s114, 1
          %s1996 = scalar_lea.sflag [#allocation5], %s1995
          %s1997 = sand.u32 %s114, 1
          %s1998 = smul.addr %s1997, 64
          %s1999 = scalar_lea.vmem [#allocation8], %s1998
          %2000 = dma.done %s1996, 1024
        $region56: #{tpu_custom_call.1} parent=51 // pred_fallthru
          _
      $region52: #{tpu_custom_call.1} parent=5 // pred_fallthru
        _
    $region6: #{tpu_custom_call.1} parent=1 // loop_footer
      %s20 = sadd.s32 1, %s16
    $region7: #{tpu_custom_call.1} parent=1 // loop_footer_branch
      %15 = sbr.rel target = $region3
    $region8: #{tpu_custom_call.1} parent=1 // loop_exit
      _
    %2001 = vsyncpa [#allocation4], 1
    %s2002 = scalar_lea.sflag [#allocation4], 1
    %2003 = vsyncpa %s2002, 1
    %2004 = vsyncpa [#allocation7], 1
    %2005 = vsyncpa [#allocation5], 1
    %s2006 = scalar_lea.sflag [#allocation5], 1
    %2007 = vsyncpa %s2006, 1

</llo_original>
